<compile_context>
chip_gen: v7x
topology: tpu7x:2x2x1
jax: 0.10.0
libtpu: 0.0.40
codegen_flags: <defaults>
</compile_context>

<pallas_src>
import numpy as np
import jax
import jax.numpy as jnp
from jax.experimental import pallas as pl
from jax.experimental.pallas import tpu as pltpu

# ---------------------------------------------------------------------------
# Static model configuration (input_size=32, hidden_size=32, num_blocks=3)
# ---------------------------------------------------------------------------
B = 2                      # batch
L = 32                     # sequence length (input_size)
H = 32                     # hidden channels
NB = 3                     # residual blocks
O = H // 2                 # AdaptiveAvgPool1d output length
KAN_G, KAN_K = 3, 3
NSPLINE = KAN_G + KAN_K            # 6 spline coefficients per input feature
NKNOT = KAN_G + 2 * KAN_K + 1      # 10 extended knots


def _elu(x):
    # alpha=1 ELU, branch-free and overflow-safe: max(x,0) + (exp(min(x,0)) - 1)
    return jnp.maximum(x, 0.0) + jnp.exp(jnp.minimum(x, 0.0)) - 1.0


# ---------------------------------------------------------------------------
# Fused kernel
# ---------------------------------------------------------------------------
def kanreg_kernel(x_ref, w0_ref, b0_ref, wb_ref, bb_ref, pool_ref,
                  fw1_ref, fb1_ref, fw2_ref, fb2_ref,
                  kg_ref, kwb_ref, kws_ref,
                  o_ref,
                  pad_ref, cat_ref, flat_ref):
    f32 = jnp.float32

    # ---- pointwise conv (1 -> H); residual stream kept flat as (B*L, H) ----
    h0 = x_ref[...] * w0_ref[...] + b0_ref[...]            # (B*L,1)*(1,H) -> (B*L,H)

    # Zero only the two halo rows of the padded scratch, once (they stay zero).
    zrow = jnp.zeros((1, H), f32)
    for b in range(B):
        pad_ref[b, 0:1, :] = zrow
        pad_ref[b, L + 1:L + 2, :] = zrow

    def conv3(y, idx):
        # y: (B*L, H) flat.  Write the body into the padded scratch, build the
        # lane-concatenated 3-tap slab (B*L, 3H) in scratch, then one MXU matmul
        # against the (3H, H) BN-folded conv weight.
        for b in range(B):
            pad_ref[b, 1:L + 1, :] = y[b * L:(b + 1) * L, :]
        for b in range(B):
            for k in range(3):
                cat_ref[b * L:(b + 1) * L, k * H:(k + 1) * H] = pad_ref[b, k:k + L, :]
        w = wb_ref[idx]                                     # (3H, H)
        bias = bb_ref[idx:idx + 1, :]                       # (1, H)
        return jnp.dot(cat_ref[...], w, preferred_element_type=f32) + bias

    # ---- 3 residual blocks (BN folded; dropout = identity; shortcut = identity) ----
    y = h0
    for i in range(NB):
        h = jnp.maximum(conv3(y, 2 * i), 0.0)               # relu(bn1(conv1(y)))
        y = jnp.maximum(conv3(h, 2 * i + 1) + y, 0.0)       # relu(bn2(conv2(h)) + y)

    # ---- y = relu(x + y); AdaptiveAvgPool1d as a matmul; channel-last flatten ----
    z = jnp.maximum(h0 + y, 0.0)                            # (B*L, H)
    pool = pool_ref[...]                                    # (O, L)
    for b in range(B):
        pb = jnp.dot(pool, z[b * L:(b + 1) * L, :],
                     preferred_element_type=f32)            # (O, H)
        for oi in range(O):                                 # scatter into lane-dense flat
            flat_ref[b:b + 1, oi * H:(oi + 1) * H] = pb[oi:oi + 1, :]

    # ---- FC head: ELU -> Linear(512,64) -> ELU -> Linear(64,16) -> ELU ----
    f = _elu(flat_ref[...])                                 # (B, O*H), lane dense
    f = _elu(jnp.dot(f, fw1_ref[...], preferred_element_type=f32) + fb1_ref[...])
    f = _elu(jnp.dot(f, fw2_ref[...], preferred_element_type=f32) + fb2_ref[...])  # (B,16)

    # ---- KAN([16, 1], grid=3, k=3): SiLU base path + B-spline path ----
    g = kg_ref[...]                                         # (NKNOT, 16), knots-major
    # order-0 indicator bases, kept 2-D (B, 16) per knot interval
    bases = [((f >= g[j:j + 1, :]) & (f < g[j + 1:j + 2, :])).astype(jnp.float32)
             for j in range(NKNOT - 1)]
    # Cox-de Boor recursion up to order k=3
    for kk in range(1, KAN_K + 1):
        new_bases = []
        for j in range(len(bases) - 1):
            left = (f - g[j:j + 1, :]) / (g[j + kk:j + kk + 1, :] - g[j:j + 1, :])
            right = (g[j + kk + 1:j + kk + 2, :] - f) / (
                g[j + kk + 1:j + kk + 2, :] - g[j + 1:j + 2, :])
            new_bases.append(left * bases[j] + right * bases[j + 1])
        bases = new_bases                                   # ends with NSPLINE arrays

    silu_f = f * (1.0 / (1.0 + jnp.exp(-f)))
    acc = silu_f * kwb_ref[...]                             # base path     (B, 16)
    for j in range(NSPLINE):
        acc = acc + bases[j] * kws_ref[j:j + 1, :]          # spline path   (B, 16)
    o_ref[...] = jnp.sum(acc, axis=-1, keepdims=True)       # (B, 1)


# ---------------------------------------------------------------------------
# Wrapper: one pallas_call, everything resident in VMEM
# ---------------------------------------------------------------------------
@jax.jit
def kanreg_forward(params, x):
    # x: (B, L) float32   (PyTorch: x.unsqueeze(1) -> Conv1d(1, H, 1))
    x_col = x.reshape(B * L, 1)
    return pl.pallas_call(
        kanreg_kernel,
        out_shape=jax.ShapeDtypeStruct((B, 1), jnp.float32),
        scratch_shapes=[
            pltpu.VMEM((B, L + 2, H), jnp.float32),       # zero-padded conv input
            pltpu.VMEM((B * L, 3 * H), jnp.float32),      # lane-concatenated 3 taps
            pltpu.VMEM((B, O * H), jnp.float32),          # channel-major flatten (lane dense)
        ],
    )(x_col, params['w0'], params['b0'],
      params['w_blocks'], params['b_blocks'], params['pool_mat'],
      params['fc_w1'], params['fc_b1'], params['fc_w2'], params['fc_b2'],
      params['kan_grid'], params['kan_wb'], params['kan_ws'])


# ---------------------------------------------------------------------------
# Parameter construction (deterministic, synthetic; BN folded for eval mode)
# ---------------------------------------------------------------------------
def adaptive_avg_pool_matrix(length, out_len):
    P = np.zeros((out_len, length), np.float32)
    for i in range(out_len):
        s = (i * length) // out_len
        e = -((-(i + 1) * length) // out_len)   # ceil((i+1)*length/out_len)
        P[i, s:e] = 1.0 / (e - s)
    return jnp.asarray(P)


def init_params(key):
    keys = iter(jax.random.split(key, 64))
    nxt = lambda: next(keys)
    eps = 1e-5
    p = {}
    # Conv1d(1, H, kernel_size=1)
    p['w0'] = 0.5 * jax.random.normal(nxt(), (1, H), jnp.float32)
    p['b0'] = 0.1 * jax.random.normal(nxt(), (1, H), jnp.float32)

    # Residual blocks: two conv3+BN per block, folded into (3H, H) weights.
    w_list, b_list = [], []
    for _ in range(NB):
        for _conv in range(2):
            w = jax.random.normal(nxt(), (3, H, H), jnp.float32) / np.sqrt(3.0 * H)
            bconv = 0.05 * jax.random.normal(nxt(), (H,), jnp.float32)
            gamma = 1.0 + 0.1 * jax.random.normal(nxt(), (H,), jnp.float32)
            beta = 0.1 * jax.random.normal(nxt(), (H,), jnp.float32)
            rmean = 0.1 * jax.random.normal(nxt(), (H,), jnp.float32)
            rvar = 1.0 + 0.1 * jax.random.uniform(nxt(), (H,), jnp.float32)
            scale = gamma / jnp.sqrt(rvar + eps)                   # BN eval-mode fold
            w_list.append((w * scale[None, None, :]).reshape(3 * H, H))  # row = k*H+cin
            b_list.append((bconv - rmean) * scale + beta)
    p['w_blocks'] = jnp.stack(w_list)            # (2*NB, 3H, H)
    p['b_blocks'] = jnp.stack(b_list)            # (2*NB, H)

    p['pool_mat'] = adaptive_avg_pool_matrix(L, O)

    # fc_w1: PyTorch flattens (B, H, O) channel-major (index c*O + o); the kernel
    # flattens the pooled (O, H) slab as (o*H + c).  Fold that row permutation in.
    fin = H * O
    w1_cmaj = jax.random.normal(nxt(), (fin, 64), jnp.float32) / np.sqrt(fin)  # rows c*O+o
    p['fc_w1'] = w1_cmaj.reshape(H, O, 64).transpose(1, 0, 2).reshape(O * H, 64)
    p['fc_b1'] = 0.1 * jax.random.normal(nxt(), (1, 64), jnp.float32)
    p['fc_w2'] = jax.random.normal(nxt(), (64, 16), jnp.float32) / np.sqrt(64.0)
    p['fc_b2'] = 0.1 * jax.random.normal(nxt(), (1, 16), jnp.float32)

    # KAN([16, 1], grid=3, k=3): extended knot grid over [-1, 1], knots-major layout.
    h_step = 2.0 / KAN_G
    grid1d = jnp.arange(-KAN_K, KAN_G + KAN_K + 1, dtype=jnp.float32) * h_step - 1.0
    p['kan_grid'] = jnp.tile(grid1d[:, None], (1, 16))          # (NKNOT, 16)
    p['kan_wb'] = jax.random.normal(nxt(), (1, 16), jnp.float32) / np.sqrt(16.0)
    p['kan_ws'] = 0.1 * jax.random.normal(nxt(), (NSPLINE, 16), jnp.float32)
    return p


if __name__ == "__main__":
    params = init_params(jax.random.PRNGKey(0))
    x = jax.random.normal(jax.random.PRNGKey(1), (B, L), jnp.float32)
    out = kanreg_forward(params, x)
    out = jax.block_until_ready(out)
    assert out.shape == (B, 1) and out.dtype == jnp.float32
    print("KERNEL_OK")
</pallas_src>

<mosaic_0001>
module attributes {stable_mosaic.version = 11 : i64} {
  func.func @kanreg_kernel(%arg0: memref<64x1xf32, #tpu.memory_space<vmem>>, %arg1: memref<1x32xf32, #tpu.memory_space<vmem>>, %arg2: memref<1x32xf32, #tpu.memory_space<vmem>>, %arg3: memref<6x96x32xf32, #tpu.memory_space<vmem>>, %arg4: memref<6x32xf32, #tpu.memory_space<vmem>>, %arg5: memref<16x32xf32, #tpu.memory_space<vmem>>, %arg6: memref<512x64xf32, #tpu.memory_space<vmem>>, %arg7: memref<1x64xf32, #tpu.memory_space<vmem>>, %arg8: memref<64x16xf32, #tpu.memory_space<vmem>>, %arg9: memref<1x16xf32, #tpu.memory_space<vmem>>, %arg10: memref<10x16xf32, #tpu.memory_space<vmem>>, %arg11: memref<1x16xf32, #tpu.memory_space<vmem>>, %arg12: memref<6x16xf32, #tpu.memory_space<vmem>>, %arg13: memref<2x1xf32, #tpu.memory_space<vmem>>, %arg14: memref<2x34x32xf32, #tpu.memory_space<vmem>>, %arg15: memref<64x96xf32, #tpu.memory_space<vmem>>, %arg16: memref<2x512xf32, #tpu.memory_space<vmem>>) attributes {dimension_semantics = [], scalar_prefetch = 0 : i64, scratch_operands = 3 : i64, tpu.core_type = #tpu.core_type<tc>} {
    %c0 = arith.constant 0 : index
    %c0_0 = arith.constant 0 : index
    %0 = vector.load %arg0[%c0, %c0_0] : memref<64x1xf32, #tpu.memory_space<vmem>>, vector<64x1xf32>
    %c0_1 = arith.constant 0 : index
    %c0_2 = arith.constant 0 : index
    %1 = vector.load %arg1[%c0_1, %c0_2] : memref<1x32xf32, #tpu.memory_space<vmem>>, vector<1x32xf32>
    %2 = vector.broadcast %0 : vector<64x1xf32> to vector<64x32xf32>
    %3 = vector.broadcast %1 : vector<1x32xf32> to vector<64x32xf32>
    %4 = arith.mulf %2, %3 : vector<64x32xf32>
    %c0_3 = arith.constant 0 : index
    %c0_4 = arith.constant 0 : index
    %5 = vector.load %arg2[%c0_3, %c0_4] : memref<1x32xf32, #tpu.memory_space<vmem>>, vector<1x32xf32>
    %6 = vector.broadcast %5 : vector<1x32xf32> to vector<64x32xf32>
    %7 = arith.addf %4, %6 : vector<64x32xf32>
    %cst = arith.constant 0.000000e+00 : f32
    %8 = vector.broadcast %cst : f32 to vector<1x32xf32>
    %c0_5 = arith.constant 0 : index
    %c0_6 = arith.constant 0 : index
    %c0_7 = arith.constant 0 : index
    %9 = vector.load %arg14[%c0_5, %c0_6, %c0_7] : memref<2x34x32xf32, #tpu.memory_space<vmem>>, vector<1x1x32xf32>
    %10 = vector.shape_cast %9 : vector<1x1x32xf32> to vector<1x32xf32>
    %11 = vector.shape_cast %8 : vector<1x32xf32> to vector<1x1x32xf32>
    tpu.vector_store %arg14[%c0_5, %c0_6, %c0_7], %11 {strides = array<i32>} : memref<2x34x32xf32, #tpu.memory_space<vmem>>, vector<1x1x32xf32>,
    %c0_8 = arith.constant 0 : index
    %c33 = arith.constant 33 : index
    %c0_9 = arith.constant 0 : index
    %12 = vector.load %arg14[%c0_8, %c33, %c0_9] : memref<2x34x32xf32, #tpu.memory_space<vmem>>, vector<1x1x32xf32>
    %13 = vector.shape_cast %12 : vector<1x1x32xf32> to vector<1x32xf32>
    %14 = vector.shape_cast %8 : vector<1x32xf32> to vector<1x1x32xf32>
    tpu.vector_store %arg14[%c0_8, %c33, %c0_9], %14 {strides = array<i32>} : memref<2x34x32xf32, #tpu.memory_space<vmem>>, vector<1x1x32xf32>,
    %c1 = arith.constant 1 : index
    %c0_10 = arith.constant 0 : index
    %c0_11 = arith.constant 0 : index
    %15 = vector.load %arg14[%c1, %c0_10, %c0_11] : memref<2x34x32xf32, #tpu.memory_space<vmem>>, vector<1x1x32xf32>
    %16 = vector.shape_cast %15 : vector<1x1x32xf32> to vector<1x32xf32>
    %17 = vector.shape_cast %8 : vector<1x32xf32> to vector<1x1x32xf32>
    tpu.vector_store %arg14[%c1, %c0_10, %c0_11], %17 {strides = array<i32>} : memref<2x34x32xf32, #tpu.memory_space<vmem>>, vector<1x1x32xf32>,
    %c1_12 = arith.constant 1 : index
    %c33_13 = arith.constant 33 : index
    %c0_14 = arith.constant 0 : index
    %18 = vector.load %arg14[%c1_12, %c33_13, %c0_14] : memref<2x34x32xf32, #tpu.memory_space<vmem>>, vector<1x1x32xf32>
    %19 = vector.shape_cast %18 : vector<1x1x32xf32> to vector<1x32xf32>
    %20 = vector.shape_cast %8 : vector<1x32xf32> to vector<1x1x32xf32>
    tpu.vector_store %arg14[%c1_12, %c33_13, %c0_14], %20 {strides = array<i32>} : memref<2x34x32xf32, #tpu.memory_space<vmem>>, vector<1x1x32xf32>,
    %21 = vector.extract_strided_slice %7 {offsets = [0, 0], sizes = [32, 32], strides = [1, 1]} : vector<64x32xf32> to vector<32x32xf32>
    %c0_15 = arith.constant 0 : index
    %c1_16 = arith.constant 1 : index
    %c0_17 = arith.constant 0 : index
    %22 = vector.load %arg14[%c0_15, %c1_16, %c0_17] : memref<2x34x32xf32, #tpu.memory_space<vmem>>, vector<1x32x32xf32>
    %23 = vector.shape_cast %22 : vector<1x32x32xf32> to vector<32x32xf32>
    %24 = vector.shape_cast %21 : vector<32x32xf32> to vector<1x32x32xf32>
    tpu.vector_store %arg14[%c0_15, %c1_16, %c0_17], %24 {strides = array<i32>} : memref<2x34x32xf32, #tpu.memory_space<vmem>>, vector<1x32x32xf32>,
    %25 = vector.extract_strided_slice %7 {offsets = [32, 0], sizes = [32, 32], strides = [1, 1]} : vector<64x32xf32> to vector<32x32xf32>
    %c1_18 = arith.constant 1 : index
    %c1_19 = arith.constant 1 : index
    %c0_20 = arith.constant 0 : index
    %26 = vector.load %arg14[%c1_18, %c1_19, %c0_20] : memref<2x34x32xf32, #tpu.memory_space<vmem>>, vector<1x32x32xf32>
    %27 = vector.shape_cast %26 : vector<1x32x32xf32> to vector<32x32xf32>
    %28 = vector.shape_cast %25 : vector<32x32xf32> to vector<1x32x32xf32>
    tpu.vector_store %arg14[%c1_18, %c1_19, %c0_20], %28 {strides = array<i32>} : memref<2x34x32xf32, #tpu.memory_space<vmem>>, vector<1x32x32xf32>,
    %c0_21 = arith.constant 0 : index
    %c0_22 = arith.constant 0 : index
    %c0_23 = arith.constant 0 : index
    %29 = vector.load %arg14[%c0_21, %c0_22, %c0_23] : memref<2x34x32xf32, #tpu.memory_space<vmem>>, vector<1x32x32xf32>
    %30 = vector.shape_cast %29 : vector<1x32x32xf32> to vector<32x32xf32>
    %c0_24 = arith.constant 0 : index
    %c0_25 = arith.constant 0 : index
    %31 = vector.load %arg15[%c0_24, %c0_25] : memref<64x96xf32, #tpu.memory_space<vmem>>, vector<32x32xf32>
    tpu.vector_store %arg15[%c0_24, %c0_25], %30 {strides = array<i32>} : memref<64x96xf32, #tpu.memory_space<vmem>>, vector<32x32xf32>,
    %c0_26 = arith.constant 0 : index
    %c1_27 = arith.constant 1 : index
    %c0_28 = arith.constant 0 : index
    %32 = vector.load %arg14[%c0_26, %c1_27, %c0_28] : memref<2x34x32xf32, #tpu.memory_space<vmem>>, vector<1x32x32xf32>
    %33 = vector.shape_cast %32 : vector<1x32x32xf32> to vector<32x32xf32>
    %c0_29 = arith.constant 0 : index
    %c32 = arith.constant 32 : index
    %34 = vector.load %arg15[%c0_29, %c32] : memref<64x96xf32, #tpu.memory_space<vmem>>, vector<32x32xf32>
    tpu.vector_store %arg15[%c0_29, %c32], %33 {strides = array<i32>} : memref<64x96xf32, #tpu.memory_space<vmem>>, vector<32x32xf32>,
    %c0_30 = arith.constant 0 : index
    %c2 = arith.constant 2 : index
    %c0_31 = arith.constant 0 : index
    %35 = vector.load %arg14[%c0_30, %c2, %c0_31] : memref<2x34x32xf32, #tpu.memory_space<vmem>>, vector<1x32x32xf32>
    %36 = vector.shape_cast %35 : vector<1x32x32xf32> to vector<32x32xf32>
    %c0_32 = arith.constant 0 : index
    %c64 = arith.constant 64 : index
    %37 = vector.load %arg15[%c0_32, %c64] : memref<64x96xf32, #tpu.memory_space<vmem>>, vector<32x32xf32>
    tpu.vector_store %arg15[%c0_32, %c64], %36 {strides = array<i32>} : memref<64x96xf32, #tpu.memory_space<vmem>>, vector<32x32xf32>,
    %c1_33 = arith.constant 1 : index
    %c0_34 = arith.constant 0 : index
    %c0_35 = arith.constant 0 : index
    %38 = vector.load %arg14[%c1_33, %c0_34, %c0_35] : memref<2x34x32xf32, #tpu.memory_space<vmem>>, vector<1x32x32xf32>
    %39 = vector.shape_cast %38 : vector<1x32x32xf32> to vector<32x32xf32>
    %c32_36 = arith.constant 32 : index
    %c0_37 = arith.constant 0 : index
    %40 = vector.load %arg15[%c32_36, %c0_37] : memref<64x96xf32, #tpu.memory_space<vmem>>, vector<32x32xf32>
    tpu.vector_store %arg15[%c32_36, %c0_37], %39 {strides = array<i32>} : memref<64x96xf32, #tpu.memory_space<vmem>>, vector<32x32xf32>,
    %c1_38 = arith.constant 1 : index
    %c1_39 = arith.constant 1 : index
    %c0_40 = arith.constant 0 : index
    %41 = vector.load %arg14[%c1_38, %c1_39, %c0_40] : memref<2x34x32xf32, #tpu.memory_space<vmem>>, vector<1x32x32xf32>
    %42 = vector.shape_cast %41 : vector<1x32x32xf32> to vector<32x32xf32>
    %c32_41 = arith.constant 32 : index
    %c32_42 = arith.constant 32 : index
    %43 = vector.load %arg15[%c32_41, %c32_42] : memref<64x96xf32, #tpu.memory_space<vmem>>, vector<32x32xf32>
    tpu.vector_store %arg15[%c32_41, %c32_42], %42 {strides = array<i32>} : memref<64x96xf32, #tpu.memory_space<vmem>>, vector<32x32xf32>,
    %c1_43 = arith.constant 1 : index
    %c2_44 = arith.constant 2 : index
    %c0_45 = arith.constant 0 : index
    %44 = vector.load %arg14[%c1_43, %c2_44, %c0_45] : memref<2x34x32xf32, #tpu.memory_space<vmem>>, vector<1x32x32xf32>
    %45 = vector.shape_cast %44 : vector<1x32x32xf32> to vector<32x32xf32>
    %c32_46 = arith.constant 32 : index
    %c64_47 = arith.constant 64 : index
    %46 = vector.load %arg15[%c32_46, %c64_47] : memref<64x96xf32, #tpu.memory_space<vmem>>, vector<32x32xf32>
    tpu.vector_store %arg15[%c32_46, %c64_47], %45 {strides = array<i32>} : memref<64x96xf32, #tpu.memory_space<vmem>>, vector<32x32xf32>,
    %c0_48 = arith.constant 0 : index
    %c0_49 = arith.constant 0 : index
    %c0_50 = arith.constant 0 : index
    %47 = vector.load %arg3[%c0_48, %c0_49, %c0_50] : memref<6x96x32xf32, #tpu.memory_space<vmem>>, vector<1x96x32xf32>
    %48 = vector.shape_cast %47 : vector<1x96x32xf32> to vector<96x32xf32>
    %c0_51 = arith.constant 0 : index
    %c0_52 = arith.constant 0 : index
    %49 = vector.load %arg4[%c0_51, %c0_52] : memref<6x32xf32, #tpu.memory_space<vmem>>, vector<1x32xf32>
    %c0_53 = arith.constant 0 : index
    %c0_54 = arith.constant 0 : index
    %50 = vector.load %arg15[%c0_53, %c0_54] : memref<64x96xf32, #tpu.memory_space<vmem>>, vector<64x96xf32>
    %cst_55 = arith.constant dense<0.000000e+00> : vector<64x32xf32>
    %51 = tpu.matmul %50, %48, %cst_55 {dimension_numbers = #tpu.dot_dimension_numbers<[1], [0], [0], [1], [0, 0, 1, 1], [], []>} : vector<64x96xf32>, vector<96x32xf32>, vector<64x32xf32> -> vector<64x32xf32>
    %52 = vector.broadcast %49 : vector<1x32xf32> to vector<64x32xf32>
    %53 = arith.addf %51, %52 : vector<64x32xf32>
    %cst_56 = arith.constant 0.000000e+00 : f32
    %54 = vector.broadcast %cst_56 : f32 to vector<64x32xf32>
    %55 = arith.maximumf %53, %54 : vector<64x32xf32>
    %56 = vector.extract_strided_slice %55 {offsets = [0, 0], sizes = [32, 32], strides = [1, 1]} : vector<64x32xf32> to vector<32x32xf32>
    %c0_57 = arith.constant 0 : index
    %c1_58 = arith.constant 1 : index
    %c0_59 = arith.constant 0 : index
    %57 = vector.load %arg14[%c0_57, %c1_58, %c0_59] : memref<2x34x32xf32, #tpu.memory_space<vmem>>, vector<1x32x32xf32>
    %58 = vector.shape_cast %57 : vector<1x32x32xf32> to vector<32x32xf32>
    %59 = vector.shape_cast %56 : vector<32x32xf32> to vector<1x32x32xf32>
    tpu.vector_store %arg14[%c0_57, %c1_58, %c0_59], %59 {strides = array<i32>} : memref<2x34x32xf32, #tpu.memory_space<vmem>>, vector<1x32x32xf32>,
    %60 = vector.extract_strided_slice %55 {offsets = [32, 0], sizes = [32, 32], strides = [1, 1]} : vector<64x32xf32> to vector<32x32xf32>
    %c1_60 = arith.constant 1 : index
    %c1_61 = arith.constant 1 : index
    %c0_62 = arith.constant 0 : index
    %61 = vector.load %arg14[%c1_60, %c1_61, %c0_62] : memref<2x34x32xf32, #tpu.memory_space<vmem>>, vector<1x32x32xf32>
    %62 = vector.shape_cast %61 : vector<1x32x32xf32> to vector<32x32xf32>
    %63 = vector.shape_cast %60 : vector<32x32xf32> to vector<1x32x32xf32>
    tpu.vector_store %arg14[%c1_60, %c1_61, %c0_62], %63 {strides = array<i32>} : memref<2x34x32xf32, #tpu.memory_space<vmem>>, vector<1x32x32xf32>,
    %c0_63 = arith.constant 0 : index
    %c0_64 = arith.constant 0 : index
    %c0_65 = arith.constant 0 : index
    %64 = vector.load %arg14[%c0_63, %c0_64, %c0_65] : memref<2x34x32xf32, #tpu.memory_space<vmem>>, vector<1x32x32xf32>
    %65 = vector.shape_cast %64 : vector<1x32x32xf32> to vector<32x32xf32>
    %c0_66 = arith.constant 0 : index
    %c0_67 = arith.constant 0 : index
    %66 = vector.load %arg15[%c0_66, %c0_67] : memref<64x96xf32, #tpu.memory_space<vmem>>, vector<32x32xf32>
    tpu.vector_store %arg15[%c0_66, %c0_67], %65 {strides = array<i32>} : memref<64x96xf32, #tpu.memory_space<vmem>>, vector<32x32xf32>,
    %c0_68 = arith.constant 0 : index
    %c1_69 = arith.constant 1 : index
    %c0_70 = arith.constant 0 : index
    %67 = vector.load %arg14[%c0_68, %c1_69, %c0_70] : memref<2x34x32xf32, #tpu.memory_space<vmem>>, vector<1x32x32xf32>
    %68 = vector.shape_cast %67 : vector<1x32x32xf32> to vector<32x32xf32>
    %c0_71 = arith.constant 0 : index
    %c32_72 = arith.constant 32 : index
    %69 = vector.load %arg15[%c0_71, %c32_72] : memref<64x96xf32, #tpu.memory_space<vmem>>, vector<32x32xf32>
    tpu.vector_store %arg15[%c0_71, %c32_72], %68 {strides = array<i32>} : memref<64x96xf32, #tpu.memory_space<vmem>>, vector<32x32xf32>,
    %c0_73 = arith.constant 0 : index
    %c2_74 = arith.constant 2 : index
    %c0_75 = arith.constant 0 : index
    %70 = vector.load %arg14[%c0_73, %c2_74, %c0_75] : memref<2x34x32xf32, #tpu.memory_space<vmem>>, vector<1x32x32xf32>
    %71 = vector.shape_cast %70 : vector<1x32x32xf32> to vector<32x32xf32>
    %c0_76 = arith.constant 0 : index
    %c64_77 = arith.constant 64 : index
    %72 = vector.load %arg15[%c0_76, %c64_77] : memref<64x96xf32, #tpu.memory_space<vmem>>, vector<32x32xf32>
    tpu.vector_store %arg15[%c0_76, %c64_77], %71 {strides = array<i32>} : memref<64x96xf32, #tpu.memory_space<vmem>>, vector<32x32xf32>,
    %c1_78 = arith.constant 1 : index
    %c0_79 = arith.constant 0 : index
    %c0_80 = arith.constant 0 : index
    %73 = vector.load %arg14[%c1_78, %c0_79, %c0_80] : memref<2x34x32xf32, #tpu.memory_space<vmem>>, vector<1x32x32xf32>
    %74 = vector.shape_cast %73 : vector<1x32x32xf32> to vector<32x32xf32>
    %c32_81 = arith.constant 32 : index
    %c0_82 = arith.constant 0 : index
    %75 = vector.load %arg15[%c32_81, %c0_82] : memref<64x96xf32, #tpu.memory_space<vmem>>, vector<32x32xf32>
    tpu.vector_store %arg15[%c32_81, %c0_82], %74 {strides = array<i32>} : memref<64x96xf32, #tpu.memory_space<vmem>>, vector<32x32xf32>,
    %c1_83 = arith.constant 1 : index
    %c1_84 = arith.constant 1 : index
    %c0_85 = arith.constant 0 : index
    %76 = vector.load %arg14[%c1_83, %c1_84, %c0_85] : memref<2x34x32xf32, #tpu.memory_space<vmem>>, vector<1x32x32xf32>
    %77 = vector.shape_cast %76 : vector<1x32x32xf32> to vector<32x32xf32>
    %c32_86 = arith.constant 32 : index
    %c32_87 = arith.constant 32 : index
    %78 = vector.load %arg15[%c32_86, %c32_87] : memref<64x96xf32, #tpu.memory_space<vmem>>, vector<32x32xf32>
    tpu.vector_store %arg15[%c32_86, %c32_87], %77 {strides = array<i32>} : memref<64x96xf32, #tpu.memory_space<vmem>>, vector<32x32xf32>,
    %c1_88 = arith.constant 1 : index
    %c2_89 = arith.constant 2 : index
    %c0_90 = arith.constant 0 : index
    %79 = vector.load %arg14[%c1_88, %c2_89, %c0_90] : memref<2x34x32xf32, #tpu.memory_space<vmem>>, vector<1x32x32xf32>
    %80 = vector.shape_cast %79 : vector<1x32x32xf32> to vector<32x32xf32>
    %c32_91 = arith.constant 32 : index
    %c64_92 = arith.constant 64 : index
    %81 = vector.load %arg15[%c32_91, %c64_92] : memref<64x96xf32, #tpu.memory_space<vmem>>, vector<32x32xf32>
    tpu.vector_store %arg15[%c32_91, %c64_92], %80 {strides = array<i32>} : memref<64x96xf32, #tpu.memory_space<vmem>>, vector<32x32xf32>,
    %c1_93 = arith.constant 1 : index
    %c0_94 = arith.constant 0 : index
    %c0_95 = arith.constant 0 : index
    %82 = vector.load %arg3[%c1_93, %c0_94, %c0_95] : memref<6x96x32xf32, #tpu.memory_space<vmem>>, vector<1x96x32xf32>
    %83 = vector.shape_cast %82 : vector<1x96x32xf32> to vector<96x32xf32>
    %c1_96 = arith.constant 1 : index
    %c0_97 = arith.constant 0 : index
    %84 = vector.load %arg4[%c1_96, %c0_97] : memref<6x32xf32, #tpu.memory_space<vmem>>, vector<1x32xf32>
    %c0_98 = arith.constant 0 : index
    %c0_99 = arith.constant 0 : index
    %85 = vector.load %arg15[%c0_98, %c0_99] : memref<64x96xf32, #tpu.memory_space<vmem>>, vector<64x96xf32>
    %cst_100 = arith.constant dense<0.000000e+00> : vector<64x32xf32>
    %86 = tpu.matmul %85, %83, %cst_100 {dimension_numbers = #tpu.dot_dimension_numbers<[1], [0], [0], [1], [0, 0, 1, 1], [], []>} : vector<64x96xf32>, vector<96x32xf32>, vector<64x32xf32> -> vector<64x32xf32>
    %87 = vector.broadcast %84 : vector<1x32xf32> to vector<64x32xf32>
    %88 = arith.addf %86, %87 : vector<64x32xf32>
    %89 = arith.addf %88, %7 : vector<64x32xf32>
    %cst_101 = arith.constant 0.000000e+00 : f32
    %90 = vector.broadcast %cst_101 : f32 to vector<64x32xf32>
    %91 = arith.maximumf %89, %90 : vector<64x32xf32>
    %92 = vector.extract_strided_slice %91 {offsets = [0, 0], sizes = [32, 32], strides = [1, 1]} : vector<64x32xf32> to vector<32x32xf32>
    %c0_102 = arith.constant 0 : index
    %c1_103 = arith.constant 1 : index
    %c0_104 = arith.constant 0 : index
    %93 = vector.load %arg14[%c0_102, %c1_103, %c0_104] : memref<2x34x32xf32, #tpu.memory_space<vmem>>, vector<1x32x32xf32>
    %94 = vector.shape_cast %93 : vector<1x32x32xf32> to vector<32x32xf32>
    %95 = vector.shape_cast %92 : vector<32x32xf32> to vector<1x32x32xf32>
    tpu.vector_store %arg14[%c0_102, %c1_103, %c0_104], %95 {strides = array<i32>} : memref<2x34x32xf32, #tpu.memory_space<vmem>>, vector<1x32x32xf32>,
    %96 = vector.extract_strided_slice %91 {offsets = [32, 0], sizes = [32, 32], strides = [1, 1]} : vector<64x32xf32> to vector<32x32xf32>
    %c1_105 = arith.constant 1 : index
    %c1_106 = arith.constant 1 : index
    %c0_107 = arith.constant 0 : index
    %97 = vector.load %arg14[%c1_105, %c1_106, %c0_107] : memref<2x34x32xf32, #tpu.memory_space<vmem>>, vector<1x32x32xf32>
    %98 = vector.shape_cast %97 : vector<1x32x32xf32> to vector<32x32xf32>
    %99 = vector.shape_cast %96 : vector<32x32xf32> to vector<1x32x32xf32>
    tpu.vector_store %arg14[%c1_105, %c1_106, %c0_107], %99 {strides = array<i32>} : memref<2x34x32xf32, #tpu.memory_space<vmem>>, vector<1x32x32xf32>,
    %c0_108 = arith.constant 0 : index
    %c0_109 = arith.constant 0 : index
    %c0_110 = arith.constant 0 : index
    %100 = vector.load %arg14[%c0_108, %c0_109, %c0_110] : memref<2x34x32xf32, #tpu.memory_space<vmem>>, vector<1x32x32xf32>
    %101 = vector.shape_cast %100 : vector<1x32x32xf32> to vector<32x32xf32>
    %c0_111 = arith.constant 0 : index
    %c0_112 = arith.constant 0 : index
    %102 = vector.load %arg15[%c0_111, %c0_112] : memref<64x96xf32, #tpu.memory_space<vmem>>, vector<32x32xf32>
    tpu.vector_store %arg15[%c0_111, %c0_112], %101 {strides = array<i32>} : memref<64x96xf32, #tpu.memory_space<vmem>>, vector<32x32xf32>,
    %c0_113 = arith.constant 0 : index
    %c1_114 = arith.constant 1 : index
    %c0_115 = arith.constant 0 : index
    %103 = vector.load %arg14[%c0_113, %c1_114, %c0_115] : memref<2x34x32xf32, #tpu.memory_space<vmem>>, vector<1x32x32xf32>
    %104 = vector.shape_cast %103 : vector<1x32x32xf32> to vector<32x32xf32>
    %c0_116 = arith.constant 0 : index
    %c32_117 = arith.constant 32 : index
    %105 = vector.load %arg15[%c0_116, %c32_117] : memref<64x96xf32, #tpu.memory_space<vmem>>, vector<32x32xf32>
    tpu.vector_store %arg15[%c0_116, %c32_117], %104 {strides = array<i32>} : memref<64x96xf32, #tpu.memory_space<vmem>>, vector<32x32xf32>,
    %c0_118 = arith.constant 0 : index
    %c2_119 = arith.constant 2 : index
    %c0_120 = arith.constant 0 : index
    %106 = vector.load %arg14[%c0_118, %c2_119, %c0_120] : memref<2x34x32xf32, #tpu.memory_space<vmem>>, vector<1x32x32xf32>
    %107 = vector.shape_cast %106 : vector<1x32x32xf32> to vector<32x32xf32>
    %c0_121 = arith.constant 0 : index
    %c64_122 = arith.constant 64 : index
    %108 = vector.load %arg15[%c0_121, %c64_122] : memref<64x96xf32, #tpu.memory_space<vmem>>, vector<32x32xf32>
    tpu.vector_store %arg15[%c0_121, %c64_122], %107 {strides = array<i32>} : memref<64x96xf32, #tpu.memory_space<vmem>>, vector<32x32xf32>,
    %c1_123 = arith.constant 1 : index
    %c0_124 = arith.constant 0 : index
    %c0_125 = arith.constant 0 : index
    %109 = vector.load %arg14[%c1_123, %c0_124, %c0_125] : memref<2x34x32xf32, #tpu.memory_space<vmem>>, vector<1x32x32xf32>
    %110 = vector.shape_cast %109 : vector<1x32x32xf32> to vector<32x32xf32>
    %c32_126 = arith.constant 32 : index
    %c0_127 = arith.constant 0 : index
    %111 = vector.load %arg15[%c32_126, %c0_127] : memref<64x96xf32, #tpu.memory_space<vmem>>, vector<32x32xf32>
    tpu.vector_store %arg15[%c32_126, %c0_127], %110 {strides = array<i32>} : memref<64x96xf32, #tpu.memory_space<vmem>>, vector<32x32xf32>,
    %c1_128 = arith.constant 1 : index
    %c1_129 = arith.constant 1 : index
    %c0_130 = arith.constant 0 : index
    %112 = vector.load %arg14[%c1_128, %c1_129, %c0_130] : memref<2x34x32xf32, #tpu.memory_space<vmem>>, vector<1x32x32xf32>
    %113 = vector.shape_cast %112 : vector<1x32x32xf32> to vector<32x32xf32>
    %c32_131 = arith.constant 32 : index
    %c32_132 = arith.constant 32 : index
    %114 = vector.load %arg15[%c32_131, %c32_132] : memref<64x96xf32, #tpu.memory_space<vmem>>, vector<32x32xf32>
    tpu.vector_store %arg15[%c32_131, %c32_132], %113 {strides = array<i32>} : memref<64x96xf32, #tpu.memory_space<vmem>>, vector<32x32xf32>,
    %c1_133 = arith.constant 1 : index
    %c2_134 = arith.constant 2 : index
    %c0_135 = arith.constant 0 : index
    %115 = vector.load %arg14[%c1_133, %c2_134, %c0_135] : memref<2x34x32xf32, #tpu.memory_space<vmem>>, vector<1x32x32xf32>
    %116 = vector.shape_cast %115 : vector<1x32x32xf32> to vector<32x32xf32>
    %c32_136 = arith.constant 32 : index
    %c64_137 = arith.constant 64 : index
    %117 = vector.load %arg15[%c32_136, %c64_137] : memref<64x96xf32, #tpu.memory_space<vmem>>, vector<32x32xf32>
    tpu.vector_store %arg15[%c32_136, %c64_137], %116 {strides = array<i32>} : memref<64x96xf32, #tpu.memory_space<vmem>>, vector<32x32xf32>,
    %c2_138 = arith.constant 2 : index
    %c0_139 = arith.constant 0 : index
    %c0_140 = arith.constant 0 : index
    %118 = vector.load %arg3[%c2_138, %c0_139, %c0_140] : memref<6x96x32xf32, #tpu.memory_space<vmem>>, vector<1x96x32xf32>
    %119 = vector.shape_cast %118 : vector<1x96x32xf32> to vector<96x32xf32>
    %c2_141 = arith.constant 2 : index
    %c0_142 = arith.constant 0 : index
    %120 = vector.load %arg4[%c2_141, %c0_142] : memref<6x32xf32, #tpu.memory_space<vmem>>, vector<1x32xf32>
    %c0_143 = arith.constant 0 : index
    %c0_144 = arith.constant 0 : index
    %121 = vector.load %arg15[%c0_143, %c0_144] : memref<64x96xf32, #tpu.memory_space<vmem>>, vector<64x96xf32>
    %cst_145 = arith.constant dense<0.000000e+00> : vector<64x32xf32>
    %122 = tpu.matmul %121, %119, %cst_145 {dimension_numbers = #tpu.dot_dimension_numbers<[1], [0], [0], [1], [0, 0, 1, 1], [], []>} : vector<64x96xf32>, vector<96x32xf32>, vector<64x32xf32> -> vector<64x32xf32>
    %123 = vector.broadcast %120 : vector<1x32xf32> to vector<64x32xf32>
    %124 = arith.addf %122, %123 : vector<64x32xf32>
    %cst_146 = arith.constant 0.000000e+00 : f32
    %125 = vector.broadcast %cst_146 : f32 to vector<64x32xf32>
    %126 = arith.maximumf %124, %125 : vector<64x32xf32>
    %127 = vector.extract_strided_slice %126 {offsets = [0, 0], sizes = [32, 32], strides = [1, 1]} : vector<64x32xf32> to vector<32x32xf32>
    %c0_147 = arith.constant 0 : index
    %c1_148 = arith.constant 1 : index
    %c0_149 = arith.constant 0 : index
    %128 = vector.load %arg14[%c0_147, %c1_148, %c0_149] : memref<2x34x32xf32, #tpu.memory_space<vmem>>, vector<1x32x32xf32>
    %129 = vector.shape_cast %128 : vector<1x32x32xf32> to vector<32x32xf32>
    %130 = vector.shape_cast %127 : vector<32x32xf32> to vector<1x32x32xf32>
    tpu.vector_store %arg14[%c0_147, %c1_148, %c0_149], %130 {strides = array<i32>} : memref<2x34x32xf32, #tpu.memory_space<vmem>>, vector<1x32x32xf32>,
    %131 = vector.extract_strided_slice %126 {offsets = [32, 0], sizes = [32, 32], strides = [1, 1]} : vector<64x32xf32> to vector<32x32xf32>
    %c1_150 = arith.constant 1 : index
    %c1_151 = arith.constant 1 : index
    %c0_152 = arith.constant 0 : index
    %132 = vector.load %arg14[%c1_150, %c1_151, %c0_152] : memref<2x34x32xf32, #tpu.memory_space<vmem>>, vector<1x32x32xf32>
    %133 = vector.shape_cast %132 : vector<1x32x32xf32> to vector<32x32xf32>
    %134 = vector.shape_cast %131 : vector<32x32xf32> to vector<1x32x32xf32>
    tpu.vector_store %arg14[%c1_150, %c1_151, %c0_152], %134 {strides = array<i32>} : memref<2x34x32xf32, #tpu.memory_space<vmem>>, vector<1x32x32xf32>,
    %c0_153 = arith.constant 0 : index
    %c0_154 = arith.constant 0 : index
    %c0_155 = arith.constant 0 : index
    %135 = vector.load %arg14[%c0_153, %c0_154, %c0_155] : memref<2x34x32xf32, #tpu.memory_space<vmem>>, vector<1x32x32xf32>
    %136 = vector.shape_cast %135 : vector<1x32x32xf32> to vector<32x32xf32>
    %c0_156 = arith.constant 0 : index
    %c0_157 = arith.constant 0 : index
    %137 = vector.load %arg15[%c0_156, %c0_157] : memref<64x96xf32, #tpu.memory_space<vmem>>, vector<32x32xf32>
    tpu.vector_store %arg15[%c0_156, %c0_157], %136 {strides = array<i32>} : memref<64x96xf32, #tpu.memory_space<vmem>>, vector<32x32xf32>,
    %c0_158 = arith.constant 0 : index
    %c1_159 = arith.constant 1 : index
    %c0_160 = arith.constant 0 : index
    %138 = vector.load %arg14[%c0_158, %c1_159, %c0_160] : memref<2x34x32xf32, #tpu.memory_space<vmem>>, vector<1x32x32xf32>
    %139 = vector.shape_cast %138 : vector<1x32x32xf32> to vector<32x32xf32>
    %c0_161 = arith.constant 0 : index
    %c32_162 = arith.constant 32 : index
    %140 = vector.load %arg15[%c0_161, %c32_162] : memref<64x96xf32, #tpu.memory_space<vmem>>, vector<32x32xf32>
    tpu.vector_store %arg15[%c0_161, %c32_162], %139 {strides = array<i32>} : memref<64x96xf32, #tpu.memory_space<vmem>>, vector<32x32xf32>,
    %c0_163 = arith.constant 0 : index
    %c2_164 = arith.constant 2 : index
    %c0_165 = arith.constant 0 : index
    %141 = vector.load %arg14[%c0_163, %c2_164, %c0_165] : memref<2x34x32xf32, #tpu.memory_space<vmem>>, vector<1x32x32xf32>
    %142 = vector.shape_cast %141 : vector<1x32x32xf32> to vector<32x32xf32>
    %c0_166 = arith.constant 0 : index
    %c64_167 = arith.constant 64 : index
    %143 = vector.load %arg15[%c0_166, %c64_167] : memref<64x96xf32, #tpu.memory_space<vmem>>, vector<32x32xf32>
    tpu.vector_store %arg15[%c0_166, %c64_167], %142 {strides = array<i32>} : memref<64x96xf32, #tpu.memory_space<vmem>>, vector<32x32xf32>,
    %c1_168 = arith.constant 1 : index
    %c0_169 = arith.constant 0 : index
    %c0_170 = arith.constant 0 : index
    %144 = vector.load %arg14[%c1_168, %c0_169, %c0_170] : memref<2x34x32xf32, #tpu.memory_space<vmem>>, vector<1x32x32xf32>
    %145 = vector.shape_cast %144 : vector<1x32x32xf32> to vector<32x32xf32>
    %c32_171 = arith.constant 32 : index
    %c0_172 = arith.constant 0 : index
    %146 = vector.load %arg15[%c32_171, %c0_172] : memref<64x96xf32, #tpu.memory_space<vmem>>, vector<32x32xf32>
    tpu.vector_store %arg15[%c32_171, %c0_172], %145 {strides = array<i32>} : memref<64x96xf32, #tpu.memory_space<vmem>>, vector<32x32xf32>,
    %c1_173 = arith.constant 1 : index
    %c1_174 = arith.constant 1 : index
    %c0_175 = arith.constant 0 : index
    %147 = vector.load %arg14[%c1_173, %c1_174, %c0_175] : memref<2x34x32xf32, #tpu.memory_space<vmem>>, vector<1x32x32xf32>
    %148 = vector.shape_cast %147 : vector<1x32x32xf32> to vector<32x32xf32>
    %c32_176 = arith.constant 32 : index
    %c32_177 = arith.constant 32 : index
    %149 = vector.load %arg15[%c32_176, %c32_177] : memref<64x96xf32, #tpu.memory_space<vmem>>, vector<32x32xf32>
    tpu.vector_store %arg15[%c32_176, %c32_177], %148 {strides = array<i32>} : memref<64x96xf32, #tpu.memory_space<vmem>>, vector<32x32xf32>,
    %c1_178 = arith.constant 1 : index
    %c2_179 = arith.constant 2 : index
    %c0_180 = arith.constant 0 : index
    %150 = vector.load %arg14[%c1_178, %c2_179, %c0_180] : memref<2x34x32xf32, #tpu.memory_space<vmem>>, vector<1x32x32xf32>
    %151 = vector.shape_cast %150 : vector<1x32x32xf32> to vector<32x32xf32>
    %c32_181 = arith.constant 32 : index
    %c64_182 = arith.constant 64 : index
    %152 = vector.load %arg15[%c32_181, %c64_182] : memref<64x96xf32, #tpu.memory_space<vmem>>, vector<32x32xf32>
    tpu.vector_store %arg15[%c32_181, %c64_182], %151 {strides = array<i32>} : memref<64x96xf32, #tpu.memory_space<vmem>>, vector<32x32xf32>,
    %c3 = arith.constant 3 : index
    %c0_183 = arith.constant 0 : index
    %c0_184 = arith.constant 0 : index
    %153 = vector.load %arg3[%c3, %c0_183, %c0_184] : memref<6x96x32xf32, #tpu.memory_space<vmem>>, vector<1x96x32xf32>
    %154 = vector.shape_cast %153 : vector<1x96x32xf32> to vector<96x32xf32>
    %c3_185 = arith.constant 3 : index
    %c0_186 = arith.constant 0 : index
    %155 = vector.load %arg4[%c3_185, %c0_186] : memref<6x32xf32, #tpu.memory_space<vmem>>, vector<1x32xf32>
    %c0_187 = arith.constant 0 : index
    %c0_188 = arith.constant 0 : index
    %156 = vector.load %arg15[%c0_187, %c0_188] : memref<64x96xf32, #tpu.memory_space<vmem>>, vector<64x96xf32>
    %cst_189 = arith.constant dense<0.000000e+00> : vector<64x32xf32>
    %157 = tpu.matmul %156, %154, %cst_189 {dimension_numbers = #tpu.dot_dimension_numbers<[1], [0], [0], [1], [0, 0, 1, 1], [], []>} : vector<64x96xf32>, vector<96x32xf32>, vector<64x32xf32> -> vector<64x32xf32>
    %158 = vector.broadcast %155 : vector<1x32xf32> to vector<64x32xf32>
    %159 = arith.addf %157, %158 : vector<64x32xf32>
    %160 = arith.addf %159, %91 : vector<64x32xf32>
    %cst_190 = arith.constant 0.000000e+00 : f32
    %161 = vector.broadcast %cst_190 : f32 to vector<64x32xf32>
    %162 = arith.maximumf %160, %161 : vector<64x32xf32>
    %163 = vector.extract_strided_slice %162 {offsets = [0, 0], sizes = [32, 32], strides = [1, 1]} : vector<64x32xf32> to vector<32x32xf32>
    %c0_191 = arith.constant 0 : index
    %c1_192 = arith.constant 1 : index
    %c0_193 = arith.constant 0 : index
    %164 = vector.load %arg14[%c0_191, %c1_192, %c0_193] : memref<2x34x32xf32, #tpu.memory_space<vmem>>, vector<1x32x32xf32>
    %165 = vector.shape_cast %164 : vector<1x32x32xf32> to vector<32x32xf32>
    %166 = vector.shape_cast %163 : vector<32x32xf32> to vector<1x32x32xf32>
    tpu.vector_store %arg14[%c0_191, %c1_192, %c0_193], %166 {strides = array<i32>} : memref<2x34x32xf32, #tpu.memory_space<vmem>>, vector<1x32x32xf32>,
    %167 = vector.extract_strided_slice %162 {offsets = [32, 0], sizes = [32, 32], strides = [1, 1]} : vector<64x32xf32> to vector<32x32xf32>
    %c1_194 = arith.constant 1 : index
    %c1_195 = arith.constant 1 : index
    %c0_196 = arith.constant 0 : index
    %168 = vector.load %arg14[%c1_194, %c1_195, %c0_196] : memref<2x34x32xf32, #tpu.memory_space<vmem>>, vector<1x32x32xf32>
    %169 = vector.shape_cast %168 : vector<1x32x32xf32> to vector<32x32xf32>
    %170 = vector.shape_cast %167 : vector<32x32xf32> to vector<1x32x32xf32>
    tpu.vector_store %arg14[%c1_194, %c1_195, %c0_196], %170 {strides = array<i32>} : memref<2x34x32xf32, #tpu.memory_space<vmem>>, vector<1x32x32xf32>,
    %c0_197 = arith.constant 0 : index
    %c0_198 = arith.constant 0 : index
    %c0_199 = arith.constant 0 : index
    %171 = vector.load %arg14[%c0_197, %c0_198, %c0_199] : memref<2x34x32xf32, #tpu.memory_space<vmem>>, vector<1x32x32xf32>
    %172 = vector.shape_cast %171 : vector<1x32x32xf32> to vector<32x32xf32>
    %c0_200 = arith.constant 0 : index
    %c0_201 = arith.constant 0 : index
    %173 = vector.load %arg15[%c0_200, %c0_201] : memref<64x96xf32, #tpu.memory_space<vmem>>, vector<32x32xf32>
    tpu.vector_store %arg15[%c0_200, %c0_201], %172 {strides = array<i32>} : memref<64x96xf32, #tpu.memory_space<vmem>>, vector<32x32xf32>,
    %c0_202 = arith.constant 0 : index
    %c1_203 = arith.constant 1 : index
    %c0_204 = arith.constant 0 : index
    %174 = vector.load %arg14[%c0_202, %c1_203, %c0_204] : memref<2x34x32xf32, #tpu.memory_space<vmem>>, vector<1x32x32xf32>
    %175 = vector.shape_cast %174 : vector<1x32x32xf32> to vector<32x32xf32>
    %c0_205 = arith.constant 0 : index
    %c32_206 = arith.constant 32 : index
    %176 = vector.load %arg15[%c0_205, %c32_206] : memref<64x96xf32, #tpu.memory_space<vmem>>, vector<32x32xf32>
    tpu.vector_store %arg15[%c0_205, %c32_206], %175 {strides = array<i32>} : memref<64x96xf32, #tpu.memory_space<vmem>>, vector<32x32xf32>,
    %c0_207 = arith.constant 0 : index
    %c2_208 = arith.constant 2 : index
    %c0_209 = arith.constant 0 : index
    %177 = vector.load %arg14[%c0_207, %c2_208, %c0_209] : memref<2x34x32xf32, #tpu.memory_space<vmem>>, vector<1x32x32xf32>
    %178 = vector.shape_cast %177 : vector<1x32x32xf32> to vector<32x32xf32>
    %c0_210 = arith.constant 0 : index
    %c64_211 = arith.constant 64 : index
    %179 = vector.load %arg15[%c0_210, %c64_211] : memref<64x96xf32, #tpu.memory_space<vmem>>, vector<32x32xf32>
    tpu.vector_store %arg15[%c0_210, %c64_211], %178 {strides = array<i32>} : memref<64x96xf32, #tpu.memory_space<vmem>>, vector<32x32xf32>,
    %c1_212 = arith.constant 1 : index
    %c0_213 = arith.constant 0 : index
    %c0_214 = arith.constant 0 : index
    %180 = vector.load %arg14[%c1_212, %c0_213, %c0_214] : memref<2x34x32xf32, #tpu.memory_space<vmem>>, vector<1x32x32xf32>
    %181 = vector.shape_cast %180 : vector<1x32x32xf32> to vector<32x32xf32>
    %c32_215 = arith.constant 32 : index
    %c0_216 = arith.constant 0 : index
    %182 = vector.load %arg15[%c32_215, %c0_216] : memref<64x96xf32, #tpu.memory_space<vmem>>, vector<32x32xf32>
    tpu.vector_store %arg15[%c32_215, %c0_216], %181 {strides = array<i32>} : memref<64x96xf32, #tpu.memory_space<vmem>>, vector<32x32xf32>,
    %c1_217 = arith.constant 1 : index
    %c1_218 = arith.constant 1 : index
    %c0_219 = arith.constant 0 : index
    %183 = vector.load %arg14[%c1_217, %c1_218, %c0_219] : memref<2x34x32xf32, #tpu.memory_space<vmem>>, vector<1x32x32xf32>
    %184 = vector.shape_cast %183 : vector<1x32x32xf32> to vector<32x32xf32>
    %c32_220 = arith.constant 32 : index
    %c32_221 = arith.constant 32 : index
    %185 = vector.load %arg15[%c32_220, %c32_221] : memref<64x96xf32, #tpu.memory_space<vmem>>, vector<32x32xf32>
    tpu.vector_store %arg15[%c32_220, %c32_221], %184 {strides = array<i32>} : memref<64x96xf32, #tpu.memory_space<vmem>>, vector<32x32xf32>,
    %c1_222 = arith.constant 1 : index
    %c2_223 = arith.constant 2 : index
    %c0_224 = arith.constant 0 : index
    %186 = vector.load %arg14[%c1_222, %c2_223, %c0_224] : memref<2x34x32xf32, #tpu.memory_space<vmem>>, vector<1x32x32xf32>
    %187 = vector.shape_cast %186 : vector<1x32x32xf32> to vector<32x32xf32>
    %c32_225 = arith.constant 32 : index
    %c64_226 = arith.constant 64 : index
    %188 = vector.load %arg15[%c32_225, %c64_226] : memref<64x96xf32, #tpu.memory_space<vmem>>, vector<32x32xf32>
    tpu.vector_store %arg15[%c32_225, %c64_226], %187 {strides = array<i32>} : memref<64x96xf32, #tpu.memory_space<vmem>>, vector<32x32xf32>,
    %c4 = arith.constant 4 : index
    %c0_227 = arith.constant 0 : index
    %c0_228 = arith.constant 0 : index
    %189 = vector.load %arg3[%c4, %c0_227, %c0_228] : memref<6x96x32xf32, #tpu.memory_space<vmem>>, vector<1x96x32xf32>
    %190 = vector.shape_cast %189 : vector<1x96x32xf32> to vector<96x32xf32>
    %c4_229 = arith.constant 4 : index
    %c0_230 = arith.constant 0 : index
    %191 = vector.load %arg4[%c4_229, %c0_230] : memref<6x32xf32, #tpu.memory_space<vmem>>, vector<1x32xf32>
    %c0_231 = arith.constant 0 : index
    %c0_232 = arith.constant 0 : index
    %192 = vector.load %arg15[%c0_231, %c0_232] : memref<64x96xf32, #tpu.memory_space<vmem>>, vector<64x96xf32>
    %cst_233 = arith.constant dense<0.000000e+00> : vector<64x32xf32>
    %193 = tpu.matmul %192, %190, %cst_233 {dimension_numbers = #tpu.dot_dimension_numbers<[1], [0], [0], [1], [0, 0, 1, 1], [], []>} : vector<64x96xf32>, vector<96x32xf32>, vector<64x32xf32> -> vector<64x32xf32>
    %194 = vector.broadcast %191 : vector<1x32xf32> to vector<64x32xf32>
    %195 = arith.addf %193, %194 : vector<64x32xf32>
    %cst_234 = arith.constant 0.000000e+00 : f32
    %196 = vector.broadcast %cst_234 : f32 to vector<64x32xf32>
    %197 = arith.maximumf %195, %196 : vector<64x32xf32>
    %198 = vector.extract_strided_slice %197 {offsets = [0, 0], sizes = [32, 32], strides = [1, 1]} : vector<64x32xf32> to vector<32x32xf32>
    %c0_235 = arith.constant 0 : index
    %c1_236 = arith.constant 1 : index
    %c0_237 = arith.constant 0 : index
    %199 = vector.load %arg14[%c0_235, %c1_236, %c0_237] : memref<2x34x32xf32, #tpu.memory_space<vmem>>, vector<1x32x32xf32>
    %200 = vector.shape_cast %199 : vector<1x32x32xf32> to vector<32x32xf32>
    %201 = vector.shape_cast %198 : vector<32x32xf32> to vector<1x32x32xf32>
    tpu.vector_store %arg14[%c0_235, %c1_236, %c0_237], %201 {strides = array<i32>} : memref<2x34x32xf32, #tpu.memory_space<vmem>>, vector<1x32x32xf32>,
    %202 = vector.extract_strided_slice %197 {offsets = [32, 0], sizes = [32, 32], strides = [1, 1]} : vector<64x32xf32> to vector<32x32xf32>
    %c1_238 = arith.constant 1 : index
    %c1_239 = arith.constant 1 : index
    %c0_240 = arith.constant 0 : index
    %203 = vector.load %arg14[%c1_238, %c1_239, %c0_240] : memref<2x34x32xf32, #tpu.memory_space<vmem>>, vector<1x32x32xf32>
    %204 = vector.shape_cast %203 : vector<1x32x32xf32> to vector<32x32xf32>
    %205 = vector.shape_cast %202 : vector<32x32xf32> to vector<1x32x32xf32>
    tpu.vector_store %arg14[%c1_238, %c1_239, %c0_240], %205 {strides = array<i32>} : memref<2x34x32xf32, #tpu.memory_space<vmem>>, vector<1x32x32xf32>,
    %c0_241 = arith.constant 0 : index
    %c0_242 = arith.constant 0 : index
    %c0_243 = arith.constant 0 : index
    %206 = vector.load %arg14[%c0_241, %c0_242, %c0_243] : memref<2x34x32xf32, #tpu.memory_space<vmem>>, vector<1x32x32xf32>
    %207 = vector.shape_cast %206 : vector<1x32x32xf32> to vector<32x32xf32>
    %c0_244 = arith.constant 0 : index
    %c0_245 = arith.constant 0 : index
    %208 = vector.load %arg15[%c0_244, %c0_245] : memref<64x96xf32, #tpu.memory_space<vmem>>, vector<32x32xf32>
    tpu.vector_store %arg15[%c0_244, %c0_245], %207 {strides = array<i32>} : memref<64x96xf32, #tpu.memory_space<vmem>>, vector<32x32xf32>,
    %c0_246 = arith.constant 0 : index
    %c1_247 = arith.constant 1 : index
    %c0_248 = arith.constant 0 : index
    %209 = vector.load %arg14[%c0_246, %c1_247, %c0_248] : memref<2x34x32xf32, #tpu.memory_space<vmem>>, vector<1x32x32xf32>
    %210 = vector.shape_cast %209 : vector<1x32x32xf32> to vector<32x32xf32>
    %c0_249 = arith.constant 0 : index
    %c32_250 = arith.constant 32 : index
    %211 = vector.load %arg15[%c0_249, %c32_250] : memref<64x96xf32, #tpu.memory_space<vmem>>, vector<32x32xf32>
    tpu.vector_store %arg15[%c0_249, %c32_250], %210 {strides = array<i32>} : memref<64x96xf32, #tpu.memory_space<vmem>>, vector<32x32xf32>,
    %c0_251 = arith.constant 0 : index
    %c2_252 = arith.constant 2 : index
    %c0_253 = arith.constant 0 : index
    %212 = vector.load %arg14[%c0_251, %c2_252, %c0_253] : memref<2x34x32xf32, #tpu.memory_space<vmem>>, vector<1x32x32xf32>
    %213 = vector.shape_cast %212 : vector<1x32x32xf32> to vector<32x32xf32>
    %c0_254 = arith.constant 0 : index
    %c64_255 = arith.constant 64 : index
    %214 = vector.load %arg15[%c0_254, %c64_255] : memref<64x96xf32, #tpu.memory_space<vmem>>, vector<32x32xf32>
    tpu.vector_store %arg15[%c0_254, %c64_255], %213 {strides = array<i32>} : memref<64x96xf32, #tpu.memory_space<vmem>>, vector<32x32xf32>,
    %c1_256 = arith.constant 1 : index
    %c0_257 = arith.constant 0 : index
    %c0_258 = arith.constant 0 : index
    %215 = vector.load %arg14[%c1_256, %c0_257, %c0_258] : memref<2x34x32xf32, #tpu.memory_space<vmem>>, vector<1x32x32xf32>
    %216 = vector.shape_cast %215 : vector<1x32x32xf32> to vector<32x32xf32>
    %c32_259 = arith.constant 32 : index
    %c0_260 = arith.constant 0 : index
    %217 = vector.load %arg15[%c32_259, %c0_260] : memref<64x96xf32, #tpu.memory_space<vmem>>, vector<32x32xf32>
    tpu.vector_store %arg15[%c32_259, %c0_260], %216 {strides = array<i32>} : memref<64x96xf32, #tpu.memory_space<vmem>>, vector<32x32xf32>,
    %c1_261 = arith.constant 1 : index
    %c1_262 = arith.constant 1 : index
    %c0_263 = arith.constant 0 : index
    %218 = vector.load %arg14[%c1_261, %c1_262, %c0_263] : memref<2x34x32xf32, #tpu.memory_space<vmem>>, vector<1x32x32xf32>
    %219 = vector.shape_cast %218 : vector<1x32x32xf32> to vector<32x32xf32>
    %c32_264 = arith.constant 32 : index
    %c32_265 = arith.constant 32 : index
    %220 = vector.load %arg15[%c32_264, %c32_265] : memref<64x96xf32, #tpu.memory_space<vmem>>, vector<32x32xf32>
    tpu.vector_store %arg15[%c32_264, %c32_265], %219 {strides = array<i32>} : memref<64x96xf32, #tpu.memory_space<vmem>>, vector<32x32xf32>,
    %c1_266 = arith.constant 1 : index
    %c2_267 = arith.constant 2 : index
    %c0_268 = arith.constant 0 : index
    %221 = vector.load %arg14[%c1_266, %c2_267, %c0_268] : memref<2x34x32xf32, #tpu.memory_space<vmem>>, vector<1x32x32xf32>
    %222 = vector.shape_cast %221 : vector<1x32x32xf32> to vector<32x32xf32>
    %c32_269 = arith.constant 32 : index
    %c64_270 = arith.constant 64 : index
    %223 = vector.load %arg15[%c32_269, %c64_270] : memref<64x96xf32, #tpu.memory_space<vmem>>, vector<32x32xf32>
    tpu.vector_store %arg15[%c32_269, %c64_270], %222 {strides = array<i32>} : memref<64x96xf32, #tpu.memory_space<vmem>>, vector<32x32xf32>,
    %c5 = arith.constant 5 : index
    %c0_271 = arith.constant 0 : index
    %c0_272 = arith.constant 0 : index
    %224 = vector.load %arg3[%c5, %c0_271, %c0_272] : memref<6x96x32xf32, #tpu.memory_space<vmem>>, vector<1x96x32xf32>
    %225 = vector.shape_cast %224 : vector<1x96x32xf32> to vector<96x32xf32>
    %c5_273 = arith.constant 5 : index
    %c0_274 = arith.constant 0 : index
    %226 = vector.load %arg4[%c5_273, %c0_274] : memref<6x32xf32, #tpu.memory_space<vmem>>, vector<1x32xf32>
    %c0_275 = arith.constant 0 : index
    %c0_276 = arith.constant 0 : index
    %227 = vector.load %arg15[%c0_275, %c0_276] : memref<64x96xf32, #tpu.memory_space<vmem>>, vector<64x96xf32>
    %cst_277 = arith.constant dense<0.000000e+00> : vector<64x32xf32>
    %228 = tpu.matmul %227, %225, %cst_277 {dimension_numbers = #tpu.dot_dimension_numbers<[1], [0], [0], [1], [0, 0, 1, 1], [], []>} : vector<64x96xf32>, vector<96x32xf32>, vector<64x32xf32> -> vector<64x32xf32>
    %229 = vector.broadcast %226 : vector<1x32xf32> to vector<64x32xf32>
    %230 = arith.addf %228, %229 : vector<64x32xf32>
    %231 = arith.addf %230, %162 : vector<64x32xf32>
    %cst_278 = arith.constant 0.000000e+00 : f32
    %232 = vector.broadcast %cst_278 : f32 to vector<64x32xf32>
    %233 = arith.maximumf %231, %232 : vector<64x32xf32>
    %234 = arith.addf %7, %233 : vector<64x32xf32>
    %cst_279 = arith.constant 0.000000e+00 : f32
    %235 = vector.broadcast %cst_279 : f32 to vector<64x32xf32>
    %236 = arith.maximumf %234, %235 : vector<64x32xf32>
    %c0_280 = arith.constant 0 : index
    %c0_281 = arith.constant 0 : index
    %237 = vector.load %arg5[%c0_280, %c0_281] : memref<16x32xf32, #tpu.memory_space<vmem>>, vector<16x32xf32>
    %238 = vector.extract_strided_slice %236 {offsets = [0, 0], sizes = [32, 32], strides = [1, 1]} : vector<64x32xf32> to vector<32x32xf32>
    %cst_282 = arith.constant dense<0.000000e+00> : vector<16x32xf32>
    %239 = tpu.matmul %237, %238, %cst_282 {dimension_numbers = #tpu.dot_dimension_numbers<[1], [0], [0], [1], [0, 0, 1, 1], [], []>} : vector<16x32xf32>, vector<32x32xf32>, vector<16x32xf32> -> vector<16x32xf32>
    %240 = vector.extract_strided_slice %239 {offsets = [0, 0], sizes = [1, 32], strides = [1, 1]} : vector<16x32xf32> to vector<1x32xf32>
    %c0_283 = arith.constant 0 : index
    %c0_284 = arith.constant 0 : index
    %241 = vector.load %arg16[%c0_283, %c0_284] : memref<2x512xf32, #tpu.memory_space<vmem>>, vector<1x32xf32>
    tpu.vector_store %arg16[%c0_283, %c0_284], %240 {strides = array<i32>} : memref<2x512xf32, #tpu.memory_space<vmem>>, vector<1x32xf32>,
    %242 = vector.extract_strided_slice %239 {offsets = [1, 0], sizes = [1, 32], strides = [1, 1]} : vector<16x32xf32> to vector<1x32xf32>
    %c0_285 = arith.constant 0 : index
    %c32_286 = arith.constant 32 : index
    %243 = vector.load %arg16[%c0_285, %c32_286] : memref<2x512xf32, #tpu.memory_space<vmem>>, vector<1x32xf32>
    tpu.vector_store %arg16[%c0_285, %c32_286], %242 {strides = array<i32>} : memref<2x512xf32, #tpu.memory_space<vmem>>, vector<1x32xf32>,
    %244 = vector.extract_strided_slice %239 {offsets = [2, 0], sizes = [1, 32], strides = [1, 1]} : vector<16x32xf32> to vector<1x32xf32>
    %c0_287 = arith.constant 0 : index
    %c64_288 = arith.constant 64 : index
    %245 = vector.load %arg16[%c0_287, %c64_288] : memref<2x512xf32, #tpu.memory_space<vmem>>, vector<1x32xf32>
    tpu.vector_store %arg16[%c0_287, %c64_288], %244 {strides = array<i32>} : memref<2x512xf32, #tpu.memory_space<vmem>>, vector<1x32xf32>,
    %246 = vector.extract_strided_slice %239 {offsets = [3, 0], sizes = [1, 32], strides = [1, 1]} : vector<16x32xf32> to vector<1x32xf32>
    %c0_289 = arith.constant 0 : index
    %c96 = arith.constant 96 : index
    %247 = vector.load %arg16[%c0_289, %c96] : memref<2x512xf32, #tpu.memory_space<vmem>>, vector<1x32xf32>
    tpu.vector_store %arg16[%c0_289, %c96], %246 {strides = array<i32>} : memref<2x512xf32, #tpu.memory_space<vmem>>, vector<1x32xf32>,
    %248 = vector.extract_strided_slice %239 {offsets = [4, 0], sizes = [1, 32], strides = [1, 1]} : vector<16x32xf32> to vector<1x32xf32>
    %c0_290 = arith.constant 0 : index
    %c128 = arith.constant 128 : index
    %249 = vector.load %arg16[%c0_290, %c128] : memref<2x512xf32, #tpu.memory_space<vmem>>, vector<1x32xf32>
    tpu.vector_store %arg16[%c0_290, %c128], %248 {strides = array<i32>} : memref<2x512xf32, #tpu.memory_space<vmem>>, vector<1x32xf32>,
    %250 = vector.extract_strided_slice %239 {offsets = [5, 0], sizes = [1, 32], strides = [1, 1]} : vector<16x32xf32> to vector<1x32xf32>
    %c0_291 = arith.constant 0 : index
    %c160 = arith.constant 160 : index
    %251 = vector.load %arg16[%c0_291, %c160] : memref<2x512xf32, #tpu.memory_space<vmem>>, vector<1x32xf32>
    tpu.vector_store %arg16[%c0_291, %c160], %250 {strides = array<i32>} : memref<2x512xf32, #tpu.memory_space<vmem>>, vector<1x32xf32>,
    %252 = vector.extract_strided_slice %239 {offsets = [6, 0], sizes = [1, 32], strides = [1, 1]} : vector<16x32xf32> to vector<1x32xf32>
    %c0_292 = arith.constant 0 : index
    %c192 = arith.constant 192 : index
    %253 = vector.load %arg16[%c0_292, %c192] : memref<2x512xf32, #tpu.memory_space<vmem>>, vector<1x32xf32>
    tpu.vector_store %arg16[%c0_292, %c192], %252 {strides = array<i32>} : memref<2x512xf32, #tpu.memory_space<vmem>>, vector<1x32xf32>,
    %254 = vector.extract_strided_slice %239 {offsets = [7, 0], sizes = [1, 32], strides = [1, 1]} : vector<16x32xf32> to vector<1x32xf32>
    %c0_293 = arith.constant 0 : index
    %c224 = arith.constant 224 : index
    %255 = vector.load %arg16[%c0_293, %c224] : memref<2x512xf32, #tpu.memory_space<vmem>>, vector<1x32xf32>
    tpu.vector_store %arg16[%c0_293, %c224], %254 {strides = array<i32>} : memref<2x512xf32, #tpu.memory_space<vmem>>, vector<1x32xf32>,
    %256 = vector.extract_strided_slice %239 {offsets = [8, 0], sizes = [1, 32], strides = [1, 1]} : vector<16x32xf32> to vector<1x32xf32>
    %c0_294 = arith.constant 0 : index
    %c256 = arith.constant 256 : index
    %257 = vector.load %arg16[%c0_294, %c256] : memref<2x512xf32, #tpu.memory_space<vmem>>, vector<1x32xf32>
    tpu.vector_store %arg16[%c0_294, %c256], %256 {strides = array<i32>} : memref<2x512xf32, #tpu.memory_space<vmem>>, vector<1x32xf32>,
    %258 = vector.extract_strided_slice %239 {offsets = [9, 0], sizes = [1, 32], strides = [1, 1]} : vector<16x32xf32> to vector<1x32xf32>
    %c0_295 = arith.constant 0 : index
    %c288 = arith.constant 288 : index
    %259 = vector.load %arg16[%c0_295, %c288] : memref<2x512xf32, #tpu.memory_space<vmem>>, vector<1x32xf32>
    tpu.vector_store %arg16[%c0_295, %c288], %258 {strides = array<i32>} : memref<2x512xf32, #tpu.memory_space<vmem>>, vector<1x32xf32>,
    %260 = vector.extract_strided_slice %239 {offsets = [10, 0], sizes = [1, 32], strides = [1, 1]} : vector<16x32xf32> to vector<1x32xf32>
    %c0_296 = arith.constant 0 : index
    %c320 = arith.constant 320 : index
    %261 = vector.load %arg16[%c0_296, %c320] : memref<2x512xf32, #tpu.memory_space<vmem>>, vector<1x32xf32>
    tpu.vector_store %arg16[%c0_296, %c320], %260 {strides = array<i32>} : memref<2x512xf32, #tpu.memory_space<vmem>>, vector<1x32xf32>,
    %262 = vector.extract_strided_slice %239 {offsets = [11, 0], sizes = [1, 32], strides = [1, 1]} : vector<16x32xf32> to vector<1x32xf32>
    %c0_297 = arith.constant 0 : index
    %c352 = arith.constant 352 : index
    %263 = vector.load %arg16[%c0_297, %c352] : memref<2x512xf32, #tpu.memory_space<vmem>>, vector<1x32xf32>
    tpu.vector_store %arg16[%c0_297, %c352], %262 {strides = array<i32>} : memref<2x512xf32, #tpu.memory_space<vmem>>, vector<1x32xf32>,
    %264 = vector.extract_strided_slice %239 {offsets = [12, 0], sizes = [1, 32], strides = [1, 1]} : vector<16x32xf32> to vector<1x32xf32>
    %c0_298 = arith.constant 0 : index
    %c384 = arith.constant 384 : index
    %265 = vector.load %arg16[%c0_298, %c384] : memref<2x512xf32, #tpu.memory_space<vmem>>, vector<1x32xf32>
    tpu.vector_store %arg16[%c0_298, %c384], %264 {strides = array<i32>} : memref<2x512xf32, #tpu.memory_space<vmem>>, vector<1x32xf32>,
    %266 = vector.extract_strided_slice %239 {offsets = [13, 0], sizes = [1, 32], strides = [1, 1]} : vector<16x32xf32> to vector<1x32xf32>
    %c0_299 = arith.constant 0 : index
    %c416 = arith.constant 416 : index
    %267 = vector.load %arg16[%c0_299, %c416] : memref<2x512xf32, #tpu.memory_space<vmem>>, vector<1x32xf32>
    tpu.vector_store %arg16[%c0_299, %c416], %266 {strides = array<i32>} : memref<2x512xf32, #tpu.memory_space<vmem>>, vector<1x32xf32>,
    %268 = vector.extract_strided_slice %239 {offsets = [14, 0], sizes = [1, 32], strides = [1, 1]} : vector<16x32xf32> to vector<1x32xf32>
    %c0_300 = arith.constant 0 : index
    %c448 = arith.constant 448 : index
    %269 = vector.load %arg16[%c0_300, %c448] : memref<2x512xf32, #tpu.memory_space<vmem>>, vector<1x32xf32>
    tpu.vector_store %arg16[%c0_300, %c448], %268 {strides = array<i32>} : memref<2x512xf32, #tpu.memory_space<vmem>>, vector<1x32xf32>,
    %270 = vector.extract_strided_slice %239 {offsets = [15, 0], sizes = [1, 32], strides = [1, 1]} : vector<16x32xf32> to vector<1x32xf32>
    %c0_301 = arith.constant 0 : index
    %c480 = arith.constant 480 : index
    %271 = vector.load %arg16[%c0_301, %c480] : memref<2x512xf32, #tpu.memory_space<vmem>>, vector<1x32xf32>
    tpu.vector_store %arg16[%c0_301, %c480], %270 {strides = array<i32>} : memref<2x512xf32, #tpu.memory_space<vmem>>, vector<1x32xf32>,
    %272 = vector.extract_strided_slice %236 {offsets = [32, 0], sizes = [32, 32], strides = [1, 1]} : vector<64x32xf32> to vector<32x32xf32>
    %cst_302 = arith.constant dense<0.000000e+00> : vector<16x32xf32>
    %273 = tpu.matmul %237, %272, %cst_302 {dimension_numbers = #tpu.dot_dimension_numbers<[1], [0], [0], [1], [0, 0, 1, 1], [], []>} : vector<16x32xf32>, vector<32x32xf32>, vector<16x32xf32> -> vector<16x32xf32>
    %274 = vector.extract_strided_slice %273 {offsets = [0, 0], sizes = [1, 32], strides = [1, 1]} : vector<16x32xf32> to vector<1x32xf32>
    %c1_303 = arith.constant 1 : index
    %c0_304 = arith.constant 0 : index
    %275 = vector.load %arg16[%c1_303, %c0_304] : memref<2x512xf32, #tpu.memory_space<vmem>>, vector<1x32xf32>
    tpu.vector_store %arg16[%c1_303, %c0_304], %274 {strides = array<i32>} : memref<2x512xf32, #tpu.memory_space<vmem>>, vector<1x32xf32>,
    %276 = vector.extract_strided_slice %273 {offsets = [1, 0], sizes = [1, 32], strides = [1, 1]} : vector<16x32xf32> to vector<1x32xf32>
    %c1_305 = arith.constant 1 : index
    %c32_306 = arith.constant 32 : index
    %277 = vector.load %arg16[%c1_305, %c32_306] : memref<2x512xf32, #tpu.memory_space<vmem>>, vector<1x32xf32>
    tpu.vector_store %arg16[%c1_305, %c32_306], %276 {strides = array<i32>} : memref<2x512xf32, #tpu.memory_space<vmem>>, vector<1x32xf32>,
    %278 = vector.extract_strided_slice %273 {offsets = [2, 0], sizes = [1, 32], strides = [1, 1]} : vector<16x32xf32> to vector<1x32xf32>
    %c1_307 = arith.constant 1 : index
    %c64_308 = arith.constant 64 : index
    %279 = vector.load %arg16[%c1_307, %c64_308] : memref<2x512xf32, #tpu.memory_space<vmem>>, vector<1x32xf32>
    tpu.vector_store %arg16[%c1_307, %c64_308], %278 {strides = array<i32>} : memref<2x512xf32, #tpu.memory_space<vmem>>, vector<1x32xf32>,
    %280 = vector.extract_strided_slice %273 {offsets = [3, 0], sizes = [1, 32], strides = [1, 1]} : vector<16x32xf32> to vector<1x32xf32>
    %c1_309 = arith.constant 1 : index
    %c96_310 = arith.constant 96 : index
    %281 = vector.load %arg16[%c1_309, %c96_310] : memref<2x512xf32, #tpu.memory_space<vmem>>, vector<1x32xf32>
    tpu.vector_store %arg16[%c1_309, %c96_310], %280 {strides = array<i32>} : memref<2x512xf32, #tpu.memory_space<vmem>>, vector<1x32xf32>,
    %282 = vector.extract_strided_slice %273 {offsets = [4, 0], sizes = [1, 32], strides = [1, 1]} : vector<16x32xf32> to vector<1x32xf32>
    %c1_311 = arith.constant 1 : index
    %c128_312 = arith.constant 128 : index
    %283 = vector.load %arg16[%c1_311, %c128_312] : memref<2x512xf32, #tpu.memory_space<vmem>>, vector<1x32xf32>
    tpu.vector_store %arg16[%c1_311, %c128_312], %282 {strides = array<i32>} : memref<2x512xf32, #tpu.memory_space<vmem>>, vector<1x32xf32>,
    %284 = vector.extract_strided_slice %273 {offsets = [5, 0], sizes = [1, 32], strides = [1, 1]} : vector<16x32xf32> to vector<1x32xf32>
    %c1_313 = arith.constant 1 : index
    %c160_314 = arith.constant 160 : index
    %285 = vector.load %arg16[%c1_313, %c160_314] : memref<2x512xf32, #tpu.memory_space<vmem>>, vector<1x32xf32>
    tpu.vector_store %arg16[%c1_313, %c160_314], %284 {strides = array<i32>} : memref<2x512xf32, #tpu.memory_space<vmem>>, vector<1x32xf32>,
    %286 = vector.extract_strided_slice %273 {offsets = [6, 0], sizes = [1, 32], strides = [1, 1]} : vector<16x32xf32> to vector<1x32xf32>
    %c1_315 = arith.constant 1 : index
    %c192_316 = arith.constant 192 : index
    %287 = vector.load %arg16[%c1_315, %c192_316] : memref<2x512xf32, #tpu.memory_space<vmem>>, vector<1x32xf32>
    tpu.vector_store %arg16[%c1_315, %c192_316], %286 {strides = array<i32>} : memref<2x512xf32, #tpu.memory_space<vmem>>, vector<1x32xf32>,
    %288 = vector.extract_strided_slice %273 {offsets = [7, 0], sizes = [1, 32], strides = [1, 1]} : vector<16x32xf32> to vector<1x32xf32>
    %c1_317 = arith.constant 1 : index
    %c224_318 = arith.constant 224 : index
    %289 = vector.load %arg16[%c1_317, %c224_318] : memref<2x512xf32, #tpu.memory_space<vmem>>, vector<1x32xf32>
    tpu.vector_store %arg16[%c1_317, %c224_318], %288 {strides = array<i32>} : memref<2x512xf32, #tpu.memory_space<vmem>>, vector<1x32xf32>,
    %290 = vector.extract_strided_slice %273 {offsets = [8, 0], sizes = [1, 32], strides = [1, 1]} : vector<16x32xf32> to vector<1x32xf32>
    %c1_319 = arith.constant 1 : index
    %c256_320 = arith.constant 256 : index
    %291 = vector.load %arg16[%c1_319, %c256_320] : memref<2x512xf32, #tpu.memory_space<vmem>>, vector<1x32xf32>
    tpu.vector_store %arg16[%c1_319, %c256_320], %290 {strides = array<i32>} : memref<2x512xf32, #tpu.memory_space<vmem>>, vector<1x32xf32>,
    %292 = vector.extract_strided_slice %273 {offsets = [9, 0], sizes = [1, 32], strides = [1, 1]} : vector<16x32xf32> to vector<1x32xf32>
    %c1_321 = arith.constant 1 : index
    %c288_322 = arith.constant 288 : index
    %293 = vector.load %arg16[%c1_321, %c288_322] : memref<2x512xf32, #tpu.memory_space<vmem>>, vector<1x32xf32>
    tpu.vector_store %arg16[%c1_321, %c288_322], %292 {strides = array<i32>} : memref<2x512xf32, #tpu.memory_space<vmem>>, vector<1x32xf32>,
    %294 = vector.extract_strided_slice %273 {offsets = [10, 0], sizes = [1, 32], strides = [1, 1]} : vector<16x32xf32> to vector<1x32xf32>
    %c1_323 = arith.constant 1 : index
    %c320_324 = arith.constant 320 : index
    %295 = vector.load %arg16[%c1_323, %c320_324] : memref<2x512xf32, #tpu.memory_space<vmem>>, vector<1x32xf32>
    tpu.vector_store %arg16[%c1_323, %c320_324], %294 {strides = array<i32>} : memref<2x512xf32, #tpu.memory_space<vmem>>, vector<1x32xf32>,
    %296 = vector.extract_strided_slice %273 {offsets = [11, 0], sizes = [1, 32], strides = [1, 1]} : vector<16x32xf32> to vector<1x32xf32>
    %c1_325 = arith.constant 1 : index
    %c352_326 = arith.constant 352 : index
    %297 = vector.load %arg16[%c1_325, %c352_326] : memref<2x512xf32, #tpu.memory_space<vmem>>, vector<1x32xf32>
    tpu.vector_store %arg16[%c1_325, %c352_326], %296 {strides = array<i32>} : memref<2x512xf32, #tpu.memory_space<vmem>>, vector<1x32xf32>,
    %298 = vector.extract_strided_slice %273 {offsets = [12, 0], sizes = [1, 32], strides = [1, 1]} : vector<16x32xf32> to vector<1x32xf32>
    %c1_327 = arith.constant 1 : index
    %c384_328 = arith.constant 384 : index
    %299 = vector.load %arg16[%c1_327, %c384_328] : memref<2x512xf32, #tpu.memory_space<vmem>>, vector<1x32xf32>
    tpu.vector_store %arg16[%c1_327, %c384_328], %298 {strides = array<i32>} : memref<2x512xf32, #tpu.memory_space<vmem>>, vector<1x32xf32>,
    %300 = vector.extract_strided_slice %273 {offsets = [13, 0], sizes = [1, 32], strides = [1, 1]} : vector<16x32xf32> to vector<1x32xf32>
    %c1_329 = arith.constant 1 : index
    %c416_330 = arith.constant 416 : index
    %301 = vector.load %arg16[%c1_329, %c416_330] : memref<2x512xf32, #tpu.memory_space<vmem>>, vector<1x32xf32>
    tpu.vector_store %arg16[%c1_329, %c416_330], %300 {strides = array<i32>} : memref<2x512xf32, #tpu.memory_space<vmem>>, vector<1x32xf32>,
    %302 = vector.extract_strided_slice %273 {offsets = [14, 0], sizes = [1, 32], strides = [1, 1]} : vector<16x32xf32> to vector<1x32xf32>
    %c1_331 = arith.constant 1 : index
    %c448_332 = arith.constant 448 : index
    %303 = vector.load %arg16[%c1_331, %c448_332] : memref<2x512xf32, #tpu.memory_space<vmem>>, vector<1x32xf32>
    tpu.vector_store %arg16[%c1_331, %c448_332], %302 {strides = array<i32>} : memref<2x512xf32, #tpu.memory_space<vmem>>, vector<1x32xf32>,
    %304 = vector.extract_strided_slice %273 {offsets = [15, 0], sizes = [1, 32], strides = [1, 1]} : vector<16x32xf32> to vector<1x32xf32>
    %c1_333 = arith.constant 1 : index
    %c480_334 = arith.constant 480 : index
    %305 = vector.load %arg16[%c1_333, %c480_334] : memref<2x512xf32, #tpu.memory_space<vmem>>, vector<1x32xf32>
    tpu.vector_store %arg16[%c1_333, %c480_334], %304 {strides = array<i32>} : memref<2x512xf32, #tpu.memory_space<vmem>>, vector<1x32xf32>,
    %c0_335 = arith.constant 0 : index
    %c0_336 = arith.constant 0 : index
    %306 = vector.load %arg16[%c0_335, %c0_336] : memref<2x512xf32, #tpu.memory_space<vmem>>, vector<2x512xf32>
    %cst_337 = arith.constant 0.000000e+00 : f32
    %307 = vector.broadcast %cst_337 : f32 to vector<2x512xf32>
    %308 = arith.maximumf %306, %307 : vector<2x512xf32>
    %cst_338 = arith.constant 0.000000e+00 : f32
    %309 = vector.broadcast %cst_338 : f32 to vector<2x512xf32>
    %310 = arith.minimumf %306, %309 : vector<2x512xf32>
    %311 = math.exp %310 : vector<2x512xf32>
    %312 = arith.addf %308, %311 : vector<2x512xf32>
    %cst_339 = arith.constant 1.000000e+00 : f32
    %313 = vector.broadcast %cst_339 : f32 to vector<2x512xf32>
    %314 = arith.subf %312, %313 : vector<2x512xf32>
    %c0_340 = arith.constant 0 : index
    %c0_341 = arith.constant 0 : index
    %315 = vector.load %arg6[%c0_340, %c0_341] : memref<512x64xf32, #tpu.memory_space<vmem>>, vector<512x64xf32>
    %cst_342 = arith.constant dense<0.000000e+00> : vector<2x64xf32>
    %316 = tpu.matmul %314, %315, %cst_342 {dimension_numbers = #tpu.dot_dimension_numbers<[1], [0], [0], [1], [0, 0, 1, 1], [], []>} : vector<2x512xf32>, vector<512x64xf32>, vector<2x64xf32> -> vector<2x64xf32>
    %c0_343 = arith.constant 0 : index
    %c0_344 = arith.constant 0 : index
    %317 = vector.load %arg7[%c0_343, %c0_344] : memref<1x64xf32, #tpu.memory_space<vmem>>, vector<1x64xf32>
    %318 = vector.broadcast %317 : vector<1x64xf32> to vector<2x64xf32>
    %319 = arith.addf %316, %318 : vector<2x64xf32>
    %cst_345 = arith.constant 0.000000e+00 : f32
    %320 = vector.broadcast %cst_345 : f32 to vector<2x64xf32>
    %321 = arith.maximumf %319, %320 : vector<2x64xf32>
    %cst_346 = arith.constant 0.000000e+00 : f32
    %322 = vector.broadcast %cst_346 : f32 to vector<2x64xf32>
    %323 = arith.minimumf %319, %322 : vector<2x64xf32>
    %324 = math.exp %323 : vector<2x64xf32>
    %325 = arith.addf %321, %324 : vector<2x64xf32>
    %cst_347 = arith.constant 1.000000e+00 : f32
    %326 = vector.broadcast %cst_347 : f32 to vector<2x64xf32>
    %327 = arith.subf %325, %326 : vector<2x64xf32>
    %c0_348 = arith.constant 0 : index
    %c0_349 = arith.constant 0 : index
    %328 = vector.load %arg8[%c0_348, %c0_349] : memref<64x16xf32, #tpu.memory_space<vmem>>, vector<64x16xf32>
    %cst_350 = arith.constant dense<0.000000e+00> : vector<2x16xf32>
    %329 = tpu.matmul %327, %328, %cst_350 {dimension_numbers = #tpu.dot_dimension_numbers<[1], [0], [0], [1], [0, 0, 1, 1], [], []>} : vector<2x64xf32>, vector<64x16xf32>, vector<2x16xf32> -> vector<2x16xf32>
    %c0_351 = arith.constant 0 : index
    %c0_352 = arith.constant 0 : index
    %330 = vector.load %arg9[%c0_351, %c0_352] : memref<1x16xf32, #tpu.memory_space<vmem>>, vector<1x16xf32>
    %331 = vector.broadcast %330 : vector<1x16xf32> to vector<2x16xf32>
    %332 = arith.addf %329, %331 : vector<2x16xf32>
    %cst_353 = arith.constant 0.000000e+00 : f32
    %333 = vector.broadcast %cst_353 : f32 to vector<2x16xf32>
    %334 = arith.maximumf %332, %333 : vector<2x16xf32>
    %cst_354 = arith.constant 0.000000e+00 : f32
    %335 = vector.broadcast %cst_354 : f32 to vector<2x16xf32>
    %336 = arith.minimumf %332, %335 : vector<2x16xf32>
    %337 = math.exp %336 : vector<2x16xf32>
    %338 = arith.addf %334, %337 : vector<2x16xf32>
    %cst_355 = arith.constant 1.000000e+00 : f32
    %339 = vector.broadcast %cst_355 : f32 to vector<2x16xf32>
    %340 = arith.subf %338, %339 : vector<2x16xf32>
    %c0_356 = arith.constant 0 : index
    %c0_357 = arith.constant 0 : index
    %341 = vector.load %arg10[%c0_356, %c0_357] : memref<10x16xf32, #tpu.memory_space<vmem>>, vector<10x16xf32>
    %342 = vector.extract_strided_slice %341 {offsets = [0, 0], sizes = [1, 16], strides = [1, 1]} : vector<10x16xf32> to vector<1x16xf32>
    %343 = vector.broadcast %342 : vector<1x16xf32> to vector<2x16xf32>
    %344 = arith.cmpf oge, %340, %343 : vector<2x16xf32>
    %345 = vector.extract_strided_slice %341 {offsets = [1, 0], sizes = [1, 16], strides = [1, 1]} : vector<10x16xf32> to vector<1x16xf32>
    %346 = vector.broadcast %345 : vector<1x16xf32> to vector<2x16xf32>
    %347 = arith.cmpf olt, %340, %346 : vector<2x16xf32>
    %348 = arith.andi %344, %347 : vector<2x16xi1>
    %349 = arith.extui %348 : vector<2x16xi1> to vector<2x16xi32>
    %350 = arith.sitofp %349 : vector<2x16xi32> to vector<2x16xf32>
    %351 = vector.extract_strided_slice %341 {offsets = [1, 0], sizes = [1, 16], strides = [1, 1]} : vector<10x16xf32> to vector<1x16xf32>
    %352 = vector.broadcast %351 : vector<1x16xf32> to vector<2x16xf32>
    %353 = arith.cmpf oge, %340, %352 : vector<2x16xf32>
    %354 = vector.extract_strided_slice %341 {offsets = [2, 0], sizes = [1, 16], strides = [1, 1]} : vector<10x16xf32> to vector<1x16xf32>
    %355 = vector.broadcast %354 : vector<1x16xf32> to vector<2x16xf32>
    %356 = arith.cmpf olt, %340, %355 : vector<2x16xf32>
    %357 = arith.andi %353, %356 : vector<2x16xi1>
    %358 = arith.extui %357 : vector<2x16xi1> to vector<2x16xi32>
    %359 = arith.sitofp %358 : vector<2x16xi32> to vector<2x16xf32>
    %360 = vector.extract_strided_slice %341 {offsets = [2, 0], sizes = [1, 16], strides = [1, 1]} : vector<10x16xf32> to vector<1x16xf32>
    %361 = vector.broadcast %360 : vector<1x16xf32> to vector<2x16xf32>
    %362 = arith.cmpf oge, %340, %361 : vector<2x16xf32>
    %363 = vector.extract_strided_slice %341 {offsets = [3, 0], sizes = [1, 16], strides = [1, 1]} : vector<10x16xf32> to vector<1x16xf32>
    %364 = vector.broadcast %363 : vector<1x16xf32> to vector<2x16xf32>
    %365 = arith.cmpf olt, %340, %364 : vector<2x16xf32>
    %366 = arith.andi %362, %365 : vector<2x16xi1>
    %367 = arith.extui %366 : vector<2x16xi1> to vector<2x16xi32>
    %368 = arith.sitofp %367 : vector<2x16xi32> to vector<2x16xf32>
    %369 = vector.extract_strided_slice %341 {offsets = [3, 0], sizes = [1, 16], strides = [1, 1]} : vector<10x16xf32> to vector<1x16xf32>
    %370 = vector.broadcast %369 : vector<1x16xf32> to vector<2x16xf32>
    %371 = arith.cmpf oge, %340, %370 : vector<2x16xf32>
    %372 = vector.extract_strided_slice %341 {offsets = [4, 0], sizes = [1, 16], strides = [1, 1]} : vector<10x16xf32> to vector<1x16xf32>
    %373 = vector.broadcast %372 : vector<1x16xf32> to vector<2x16xf32>
    %374 = arith.cmpf olt, %340, %373 : vector<2x16xf32>
    %375 = arith.andi %371, %374 : vector<2x16xi1>
    %376 = arith.extui %375 : vector<2x16xi1> to vector<2x16xi32>
    %377 = arith.sitofp %376 : vector<2x16xi32> to vector<2x16xf32>
    %378 = vector.extract_strided_slice %341 {offsets = [4, 0], sizes = [1, 16], strides = [1, 1]} : vector<10x16xf32> to vector<1x16xf32>
    %379 = vector.broadcast %378 : vector<1x16xf32> to vector<2x16xf32>
    %380 = arith.cmpf oge, %340, %379 : vector<2x16xf32>
    %381 = vector.extract_strided_slice %341 {offsets = [5, 0], sizes = [1, 16], strides = [1, 1]} : vector<10x16xf32> to vector<1x16xf32>
    %382 = vector.broadcast %381 : vector<1x16xf32> to vector<2x16xf32>
    %383 = arith.cmpf olt, %340, %382 : vector<2x16xf32>
    %384 = arith.andi %380, %383 : vector<2x16xi1>
    %385 = arith.extui %384 : vector<2x16xi1> to vector<2x16xi32>
    %386 = arith.sitofp %385 : vector<2x16xi32> to vector<2x16xf32>
    %387 = vector.extract_strided_slice %341 {offsets = [5, 0], sizes = [1, 16], strides = [1, 1]} : vector<10x16xf32> to vector<1x16xf32>
    %388 = vector.broadcast %387 : vector<1x16xf32> to vector<2x16xf32>
    %389 = arith.cmpf oge, %340, %388 : vector<2x16xf32>
    %390 = vector.extract_strided_slice %341 {offsets = [6, 0], sizes = [1, 16], strides = [1, 1]} : vector<10x16xf32> to vector<1x16xf32>
    %391 = vector.broadcast %390 : vector<1x16xf32> to vector<2x16xf32>
    %392 = arith.cmpf olt, %340, %391 : vector<2x16xf32>
    %393 = arith.andi %389, %392 : vector<2x16xi1>
    %394 = arith.extui %393 : vector<2x16xi1> to vector<2x16xi32>
    %395 = arith.sitofp %394 : vector<2x16xi32> to vector<2x16xf32>
    %396 = vector.extract_strided_slice %341 {offsets = [6, 0], sizes = [1, 16], strides = [1, 1]} : vector<10x16xf32> to vector<1x16xf32>
    %397 = vector.broadcast %396 : vector<1x16xf32> to vector<2x16xf32>
    %398 = arith.cmpf oge, %340, %397 : vector<2x16xf32>
    %399 = vector.extract_strided_slice %341 {offsets = [7, 0], sizes = [1, 16], strides = [1, 1]} : vector<10x16xf32> to vector<1x16xf32>
    %400 = vector.broadcast %399 : vector<1x16xf32> to vector<2x16xf32>
    %401 = arith.cmpf olt, %340, %400 : vector<2x16xf32>
    %402 = arith.andi %398, %401 : vector<2x16xi1>
    %403 = arith.extui %402 : vector<2x16xi1> to vector<2x16xi32>
    %404 = arith.sitofp %403 : vector<2x16xi32> to vector<2x16xf32>
    %405 = vector.extract_strided_slice %341 {offsets = [7, 0], sizes = [1, 16], strides = [1, 1]} : vector<10x16xf32> to vector<1x16xf32>
    %406 = vector.broadcast %405 : vector<1x16xf32> to vector<2x16xf32>
    %407 = arith.cmpf oge, %340, %406 : vector<2x16xf32>
    %408 = vector.extract_strided_slice %341 {offsets = [8, 0], sizes = [1, 16], strides = [1, 1]} : vector<10x16xf32> to vector<1x16xf32>
    %409 = vector.broadcast %408 : vector<1x16xf32> to vector<2x16xf32>
    %410 = arith.cmpf olt, %340, %409 : vector<2x16xf32>
    %411 = arith.andi %407, %410 : vector<2x16xi1>
    %412 = arith.extui %411 : vector<2x16xi1> to vector<2x16xi32>
    %413 = arith.sitofp %412 : vector<2x16xi32> to vector<2x16xf32>
    %414 = vector.extract_strided_slice %341 {offsets = [8, 0], sizes = [1, 16], strides = [1, 1]} : vector<10x16xf32> to vector<1x16xf32>
    %415 = vector.broadcast %414 : vector<1x16xf32> to vector<2x16xf32>
    %416 = arith.cmpf oge, %340, %415 : vector<2x16xf32>
    %417 = vector.extract_strided_slice %341 {offsets = [9, 0], sizes = [1, 16], strides = [1, 1]} : vector<10x16xf32> to vector<1x16xf32>
    %418 = vector.broadcast %417 : vector<1x16xf32> to vector<2x16xf32>
    %419 = arith.cmpf olt, %340, %418 : vector<2x16xf32>
    %420 = arith.andi %416, %419 : vector<2x16xi1>
    %421 = arith.extui %420 : vector<2x16xi1> to vector<2x16xi32>
    %422 = arith.sitofp %421 : vector<2x16xi32> to vector<2x16xf32>
    %423 = vector.extract_strided_slice %341 {offsets = [0, 0], sizes = [1, 16], strides = [1, 1]} : vector<10x16xf32> to vector<1x16xf32>
    %424 = vector.broadcast %423 : vector<1x16xf32> to vector<2x16xf32>
    %425 = arith.subf %340, %424 : vector<2x16xf32>
    %426 = vector.extract_strided_slice %341 {offsets = [1, 0], sizes = [1, 16], strides = [1, 1]} : vector<10x16xf32> to vector<1x16xf32>
    %427 = vector.extract_strided_slice %341 {offsets = [0, 0], sizes = [1, 16], strides = [1, 1]} : vector<10x16xf32> to vector<1x16xf32>
    %428 = arith.subf %426, %427 : vector<1x16xf32>
    %429 = vector.broadcast %428 : vector<1x16xf32> to vector<2x16xf32>
    %430 = arith.divf %425, %429 : vector<2x16xf32>
    %431 = vector.extract_strided_slice %341 {offsets = [2, 0], sizes = [1, 16], strides = [1, 1]} : vector<10x16xf32> to vector<1x16xf32>
    %432 = vector.broadcast %431 : vector<1x16xf32> to vector<2x16xf32>
    %433 = arith.subf %432, %340 : vector<2x16xf32>
    %434 = vector.extract_strided_slice %341 {offsets = [2, 0], sizes = [1, 16], strides = [1, 1]} : vector<10x16xf32> to vector<1x16xf32>
    %435 = vector.extract_strided_slice %341 {offsets = [1, 0], sizes = [1, 16], strides = [1, 1]} : vector<10x16xf32> to vector<1x16xf32>
    %436 = arith.subf %434, %435 : vector<1x16xf32>
    %437 = vector.broadcast %436 : vector<1x16xf32> to vector<2x16xf32>
    %438 = arith.divf %433, %437 : vector<2x16xf32>
    %439 = arith.mulf %430, %350 : vector<2x16xf32>
    %440 = arith.mulf %438, %359 : vector<2x16xf32>
    %441 = arith.addf %439, %440 : vector<2x16xf32>
    %442 = vector.extract_strided_slice %341 {offsets = [1, 0], sizes = [1, 16], strides = [1, 1]} : vector<10x16xf32> to vector<1x16xf32>
    %443 = vector.broadcast %442 : vector<1x16xf32> to vector<2x16xf32>
    %444 = arith.subf %340, %443 : vector<2x16xf32>
    %445 = vector.extract_strided_slice %341 {offsets = [2, 0], sizes = [1, 16], strides = [1, 1]} : vector<10x16xf32> to vector<1x16xf32>
    %446 = vector.extract_strided_slice %341 {offsets = [1, 0], sizes = [1, 16], strides = [1, 1]} : vector<10x16xf32> to vector<1x16xf32>
    %447 = arith.subf %445, %446 : vector<1x16xf32>
    %448 = vector.broadcast %447 : vector<1x16xf32> to vector<2x16xf32>
    %449 = arith.divf %444, %448 : vector<2x16xf32>
    %450 = vector.extract_strided_slice %341 {offsets = [3, 0], sizes = [1, 16], strides = [1, 1]} : vector<10x16xf32> to vector<1x16xf32>
    %451 = vector.broadcast %450 : vector<1x16xf32> to vector<2x16xf32>
    %452 = arith.subf %451, %340 : vector<2x16xf32>
    %453 = vector.extract_strided_slice %341 {offsets = [3, 0], sizes = [1, 16], strides = [1, 1]} : vector<10x16xf32> to vector<1x16xf32>
    %454 = vector.extract_strided_slice %341 {offsets = [2, 0], sizes = [1, 16], strides = [1, 1]} : vector<10x16xf32> to vector<1x16xf32>
    %455 = arith.subf %453, %454 : vector<1x16xf32>
    %456 = vector.broadcast %455 : vector<1x16xf32> to vector<2x16xf32>
    %457 = arith.divf %452, %456 : vector<2x16xf32>
    %458 = arith.mulf %449, %359 : vector<2x16xf32>
    %459 = arith.mulf %457, %368 : vector<2x16xf32>
    %460 = arith.addf %458, %459 : vector<2x16xf32>
    %461 = vector.extract_strided_slice %341 {offsets = [2, 0], sizes = [1, 16], strides = [1, 1]} : vector<10x16xf32> to vector<1x16xf32>
    %462 = vector.broadcast %461 : vector<1x16xf32> to vector<2x16xf32>
    %463 = arith.subf %340, %462 : vector<2x16xf32>
    %464 = vector.extract_strided_slice %341 {offsets = [3, 0], sizes = [1, 16], strides = [1, 1]} : vector<10x16xf32> to vector<1x16xf32>
    %465 = vector.extract_strided_slice %341 {offsets = [2, 0], sizes = [1, 16], strides = [1, 1]} : vector<10x16xf32> to vector<1x16xf32>
    %466 = arith.subf %464, %465 : vector<1x16xf32>
    %467 = vector.broadcast %466 : vector<1x16xf32> to vector<2x16xf32>
    %468 = arith.divf %463, %467 : vector<2x16xf32>
    %469 = vector.extract_strided_slice %341 {offsets = [4, 0], sizes = [1, 16], strides = [1, 1]} : vector<10x16xf32> to vector<1x16xf32>
    %470 = vector.broadcast %469 : vector<1x16xf32> to vector<2x16xf32>
    %471 = arith.subf %470, %340 : vector<2x16xf32>
    %472 = vector.extract_strided_slice %341 {offsets = [4, 0], sizes = [1, 16], strides = [1, 1]} : vector<10x16xf32> to vector<1x16xf32>
    %473 = vector.extract_strided_slice %341 {offsets = [3, 0], sizes = [1, 16], strides = [1, 1]} : vector<10x16xf32> to vector<1x16xf32>
    %474 = arith.subf %472, %473 : vector<1x16xf32>
    %475 = vector.broadcast %474 : vector<1x16xf32> to vector<2x16xf32>
    %476 = arith.divf %471, %475 : vector<2x16xf32>
    %477 = arith.mulf %468, %368 : vector<2x16xf32>
    %478 = arith.mulf %476, %377 : vector<2x16xf32>
    %479 = arith.addf %477, %478 : vector<2x16xf32>
    %480 = vector.extract_strided_slice %341 {offsets = [3, 0], sizes = [1, 16], strides = [1, 1]} : vector<10x16xf32> to vector<1x16xf32>
    %481 = vector.broadcast %480 : vector<1x16xf32> to vector<2x16xf32>
    %482 = arith.subf %340, %481 : vector<2x16xf32>
    %483 = vector.extract_strided_slice %341 {offsets = [4, 0], sizes = [1, 16], strides = [1, 1]} : vector<10x16xf32> to vector<1x16xf32>
    %484 = vector.extract_strided_slice %341 {offsets = [3, 0], sizes = [1, 16], strides = [1, 1]} : vector<10x16xf32> to vector<1x16xf32>
    %485 = arith.subf %483, %484 : vector<1x16xf32>
    %486 = vector.broadcast %485 : vector<1x16xf32> to vector<2x16xf32>
    %487 = arith.divf %482, %486 : vector<2x16xf32>
    %488 = vector.extract_strided_slice %341 {offsets = [5, 0], sizes = [1, 16], strides = [1, 1]} : vector<10x16xf32> to vector<1x16xf32>
    %489 = vector.broadcast %488 : vector<1x16xf32> to vector<2x16xf32>
    %490 = arith.subf %489, %340 : vector<2x16xf32>
    %491 = vector.extract_strided_slice %341 {offsets = [5, 0], sizes = [1, 16], strides = [1, 1]} : vector<10x16xf32> to vector<1x16xf32>
    %492 = vector.extract_strided_slice %341 {offsets = [4, 0], sizes = [1, 16], strides = [1, 1]} : vector<10x16xf32> to vector<1x16xf32>
    %493 = arith.subf %491, %492 : vector<1x16xf32>
    %494 = vector.broadcast %493 : vector<1x16xf32> to vector<2x16xf32>
    %495 = arith.divf %490, %494 : vector<2x16xf32>
    %496 = arith.mulf %487, %377 : vector<2x16xf32>
    %497 = arith.mulf %495, %386 : vector<2x16xf32>
    %498 = arith.addf %496, %497 : vector<2x16xf32>
    %499 = vector.extract_strided_slice %341 {offsets = [4, 0], sizes = [1, 16], strides = [1, 1]} : vector<10x16xf32> to vector<1x16xf32>
    %500 = vector.broadcast %499 : vector<1x16xf32> to vector<2x16xf32>
    %501 = arith.subf %340, %500 : vector<2x16xf32>
    %502 = vector.extract_strided_slice %341 {offsets = [5, 0], sizes = [1, 16], strides = [1, 1]} : vector<10x16xf32> to vector<1x16xf32>
    %503 = vector.extract_strided_slice %341 {offsets = [4, 0], sizes = [1, 16], strides = [1, 1]} : vector<10x16xf32> to vector<1x16xf32>
    %504 = arith.subf %502, %503 : vector<1x16xf32>
    %505 = vector.broadcast %504 : vector<1x16xf32> to vector<2x16xf32>
    %506 = arith.divf %501, %505 : vector<2x16xf32>
    %507 = vector.extract_strided_slice %341 {offsets = [6, 0], sizes = [1, 16], strides = [1, 1]} : vector<10x16xf32> to vector<1x16xf32>
    %508 = vector.broadcast %507 : vector<1x16xf32> to vector<2x16xf32>
    %509 = arith.subf %508, %340 : vector<2x16xf32>
    %510 = vector.extract_strided_slice %341 {offsets = [6, 0], sizes = [1, 16], strides = [1, 1]} : vector<10x16xf32> to vector<1x16xf32>
    %511 = vector.extract_strided_slice %341 {offsets = [5, 0], sizes = [1, 16], strides = [1, 1]} : vector<10x16xf32> to vector<1x16xf32>
    %512 = arith.subf %510, %511 : vector<1x16xf32>
    %513 = vector.broadcast %512 : vector<1x16xf32> to vector<2x16xf32>
    %514 = arith.divf %509, %513 : vector<2x16xf32>
    %515 = arith.mulf %506, %386 : vector<2x16xf32>
    %516 = arith.mulf %514, %395 : vector<2x16xf32>
    %517 = arith.addf %515, %516 : vector<2x16xf32>
    %518 = vector.extract_strided_slice %341 {offsets = [5, 0], sizes = [1, 16], strides = [1, 1]} : vector<10x16xf32> to vector<1x16xf32>
    %519 = vector.broadcast %518 : vector<1x16xf32> to vector<2x16xf32>
    %520 = arith.subf %340, %519 : vector<2x16xf32>
    %521 = vector.extract_strided_slice %341 {offsets = [6, 0], sizes = [1, 16], strides = [1, 1]} : vector<10x16xf32> to vector<1x16xf32>
    %522 = vector.extract_strided_slice %341 {offsets = [5, 0], sizes = [1, 16], strides = [1, 1]} : vector<10x16xf32> to vector<1x16xf32>
    %523 = arith.subf %521, %522 : vector<1x16xf32>
    %524 = vector.broadcast %523 : vector<1x16xf32> to vector<2x16xf32>
    %525 = arith.divf %520, %524 : vector<2x16xf32>
    %526 = vector.extract_strided_slice %341 {offsets = [7, 0], sizes = [1, 16], strides = [1, 1]} : vector<10x16xf32> to vector<1x16xf32>
    %527 = vector.broadcast %526 : vector<1x16xf32> to vector<2x16xf32>
    %528 = arith.subf %527, %340 : vector<2x16xf32>
    %529 = vector.extract_strided_slice %341 {offsets = [7, 0], sizes = [1, 16], strides = [1, 1]} : vector<10x16xf32> to vector<1x16xf32>
    %530 = vector.extract_strided_slice %341 {offsets = [6, 0], sizes = [1, 16], strides = [1, 1]} : vector<10x16xf32> to vector<1x16xf32>
    %531 = arith.subf %529, %530 : vector<1x16xf32>
    %532 = vector.broadcast %531 : vector<1x16xf32> to vector<2x16xf32>
    %533 = arith.divf %528, %532 : vector<2x16xf32>
    %534 = arith.mulf %525, %395 : vector<2x16xf32>
    %535 = arith.mulf %533, %404 : vector<2x16xf32>
    %536 = arith.addf %534, %535 : vector<2x16xf32>
    %537 = vector.extract_strided_slice %341 {offsets = [6, 0], sizes = [1, 16], strides = [1, 1]} : vector<10x16xf32> to vector<1x16xf32>
    %538 = vector.broadcast %537 : vector<1x16xf32> to vector<2x16xf32>
    %539 = arith.subf %340, %538 : vector<2x16xf32>
    %540 = vector.extract_strided_slice %341 {offsets = [7, 0], sizes = [1, 16], strides = [1, 1]} : vector<10x16xf32> to vector<1x16xf32>
    %541 = vector.extract_strided_slice %341 {offsets = [6, 0], sizes = [1, 16], strides = [1, 1]} : vector<10x16xf32> to vector<1x16xf32>
    %542 = arith.subf %540, %541 : vector<1x16xf32>
    %543 = vector.broadcast %542 : vector<1x16xf32> to vector<2x16xf32>
    %544 = arith.divf %539, %543 : vector<2x16xf32>
    %545 = vector.extract_strided_slice %341 {offsets = [8, 0], sizes = [1, 16], strides = [1, 1]} : vector<10x16xf32> to vector<1x16xf32>
    %546 = vector.broadcast %545 : vector<1x16xf32> to vector<2x16xf32>
    %547 = arith.subf %546, %340 : vector<2x16xf32>
    %548 = vector.extract_strided_slice %341 {offsets = [8, 0], sizes = [1, 16], strides = [1, 1]} : vector<10x16xf32> to vector<1x16xf32>
    %549 = vector.extract_strided_slice %341 {offsets = [7, 0], sizes = [1, 16], strides = [1, 1]} : vector<10x16xf32> to vector<1x16xf32>
    %550 = arith.subf %548, %549 : vector<1x16xf32>
    %551 = vector.broadcast %550 : vector<1x16xf32> to vector<2x16xf32>
    %552 = arith.divf %547, %551 : vector<2x16xf32>
    %553 = arith.mulf %544, %404 : vector<2x16xf32>
    %554 = arith.mulf %552, %413 : vector<2x16xf32>
    %555 = arith.addf %553, %554 : vector<2x16xf32>
    %556 = vector.extract_strided_slice %341 {offsets = [7, 0], sizes = [1, 16], strides = [1, 1]} : vector<10x16xf32> to vector<1x16xf32>
    %557 = vector.broadcast %556 : vector<1x16xf32> to vector<2x16xf32>
    %558 = arith.subf %340, %557 : vector<2x16xf32>
    %559 = vector.extract_strided_slice %341 {offsets = [8, 0], sizes = [1, 16], strides = [1, 1]} : vector<10x16xf32> to vector<1x16xf32>
    %560 = vector.extract_strided_slice %341 {offsets = [7, 0], sizes = [1, 16], strides = [1, 1]} : vector<10x16xf32> to vector<1x16xf32>
    %561 = arith.subf %559, %560 : vector<1x16xf32>
    %562 = vector.broadcast %561 : vector<1x16xf32> to vector<2x16xf32>
    %563 = arith.divf %558, %562 : vector<2x16xf32>
    %564 = vector.extract_strided_slice %341 {offsets = [9, 0], sizes = [1, 16], strides = [1, 1]} : vector<10x16xf32> to vector<1x16xf32>
    %565 = vector.broadcast %564 : vector<1x16xf32> to vector<2x16xf32>
    %566 = arith.subf %565, %340 : vector<2x16xf32>
    %567 = vector.extract_strided_slice %341 {offsets = [9, 0], sizes = [1, 16], strides = [1, 1]} : vector<10x16xf32> to vector<1x16xf32>
    %568 = vector.extract_strided_slice %341 {offsets = [8, 0], sizes = [1, 16], strides = [1, 1]} : vector<10x16xf32> to vector<1x16xf32>
    %569 = arith.subf %567, %568 : vector<1x16xf32>
    %570 = vector.broadcast %569 : vector<1x16xf32> to vector<2x16xf32>
    %571 = arith.divf %566, %570 : vector<2x16xf32>
    %572 = arith.mulf %563, %413 : vector<2x16xf32>
    %573 = arith.mulf %571, %422 : vector<2x16xf32>
    %574 = arith.addf %572, %573 : vector<2x16xf32>
    %575 = vector.extract_strided_slice %341 {offsets = [0, 0], sizes = [1, 16], strides = [1, 1]} : vector<10x16xf32> to vector<1x16xf32>
    %576 = vector.broadcast %575 : vector<1x16xf32> to vector<2x16xf32>
    %577 = arith.subf %340, %576 : vector<2x16xf32>
    %578 = vector.extract_strided_slice %341 {offsets = [2, 0], sizes = [1, 16], strides = [1, 1]} : vector<10x16xf32> to vector<1x16xf32>
    %579 = vector.extract_strided_slice %341 {offsets = [0, 0], sizes = [1, 16], strides = [1, 1]} : vector<10x16xf32> to vector<1x16xf32>
    %580 = arith.subf %578, %579 : vector<1x16xf32>
    %581 = vector.broadcast %580 : vector<1x16xf32> to vector<2x16xf32>
    %582 = arith.divf %577, %581 : vector<2x16xf32>
    %583 = vector.extract_strided_slice %341 {offsets = [3, 0], sizes = [1, 16], strides = [1, 1]} : vector<10x16xf32> to vector<1x16xf32>
    %584 = vector.broadcast %583 : vector<1x16xf32> to vector<2x16xf32>
    %585 = arith.subf %584, %340 : vector<2x16xf32>
    %586 = vector.extract_strided_slice %341 {offsets = [3, 0], sizes = [1, 16], strides = [1, 1]} : vector<10x16xf32> to vector<1x16xf32>
    %587 = vector.extract_strided_slice %341 {offsets = [1, 0], sizes = [1, 16], strides = [1, 1]} : vector<10x16xf32> to vector<1x16xf32>
    %588 = arith.subf %586, %587 : vector<1x16xf32>
    %589 = vector.broadcast %588 : vector<1x16xf32> to vector<2x16xf32>
    %590 = arith.divf %585, %589 : vector<2x16xf32>
    %591 = arith.mulf %582, %441 : vector<2x16xf32>
    %592 = arith.mulf %590, %460 : vector<2x16xf32>
    %593 = arith.addf %591, %592 : vector<2x16xf32>
    %594 = vector.extract_strided_slice %341 {offsets = [1, 0], sizes = [1, 16], strides = [1, 1]} : vector<10x16xf32> to vector<1x16xf32>
    %595 = vector.broadcast %594 : vector<1x16xf32> to vector<2x16xf32>
    %596 = arith.subf %340, %595 : vector<2x16xf32>
    %597 = vector.extract_strided_slice %341 {offsets = [3, 0], sizes = [1, 16], strides = [1, 1]} : vector<10x16xf32> to vector<1x16xf32>
    %598 = vector.extract_strided_slice %341 {offsets = [1, 0], sizes = [1, 16], strides = [1, 1]} : vector<10x16xf32> to vector<1x16xf32>
    %599 = arith.subf %597, %598 : vector<1x16xf32>
    %600 = vector.broadcast %599 : vector<1x16xf32> to vector<2x16xf32>
    %601 = arith.divf %596, %600 : vector<2x16xf32>
    %602 = vector.extract_strided_slice %341 {offsets = [4, 0], sizes = [1, 16], strides = [1, 1]} : vector<10x16xf32> to vector<1x16xf32>
    %603 = vector.broadcast %602 : vector<1x16xf32> to vector<2x16xf32>
    %604 = arith.subf %603, %340 : vector<2x16xf32>
    %605 = vector.extract_strided_slice %341 {offsets = [4, 0], sizes = [1, 16], strides = [1, 1]} : vector<10x16xf32> to vector<1x16xf32>
    %606 = vector.extract_strided_slice %341 {offsets = [2, 0], sizes = [1, 16], strides = [1, 1]} : vector<10x16xf32> to vector<1x16xf32>
    %607 = arith.subf %605, %606 : vector<1x16xf32>
    %608 = vector.broadcast %607 : vector<1x16xf32> to vector<2x16xf32>
    %609 = arith.divf %604, %608 : vector<2x16xf32>
    %610 = arith.mulf %601, %460 : vector<2x16xf32>
    %611 = arith.mulf %609, %479 : vector<2x16xf32>
    %612 = arith.addf %610, %611 : vector<2x16xf32>
    %613 = vector.extract_strided_slice %341 {offsets = [2, 0], sizes = [1, 16], strides = [1, 1]} : vector<10x16xf32> to vector<1x16xf32>
    %614 = vector.broadcast %613 : vector<1x16xf32> to vector<2x16xf32>
    %615 = arith.subf %340, %614 : vector<2x16xf32>
    %616 = vector.extract_strided_slice %341 {offsets = [4, 0], sizes = [1, 16], strides = [1, 1]} : vector<10x16xf32> to vector<1x16xf32>
    %617 = vector.extract_strided_slice %341 {offsets = [2, 0], sizes = [1, 16], strides = [1, 1]} : vector<10x16xf32> to vector<1x16xf32>
    %618 = arith.subf %616, %617 : vector<1x16xf32>
    %619 = vector.broadcast %618 : vector<1x16xf32> to vector<2x16xf32>
    %620 = arith.divf %615, %619 : vector<2x16xf32>
    %621 = vector.extract_strided_slice %341 {offsets = [5, 0], sizes = [1, 16], strides = [1, 1]} : vector<10x16xf32> to vector<1x16xf32>
    %622 = vector.broadcast %621 : vector<1x16xf32> to vector<2x16xf32>
    %623 = arith.subf %622, %340 : vector<2x16xf32>
    %624 = vector.extract_strided_slice %341 {offsets = [5, 0], sizes = [1, 16], strides = [1, 1]} : vector<10x16xf32> to vector<1x16xf32>
    %625 = vector.extract_strided_slice %341 {offsets = [3, 0], sizes = [1, 16], strides = [1, 1]} : vector<10x16xf32> to vector<1x16xf32>
    %626 = arith.subf %624, %625 : vector<1x16xf32>
    %627 = vector.broadcast %626 : vector<1x16xf32> to vector<2x16xf32>
    %628 = arith.divf %623, %627 : vector<2x16xf32>
    %629 = arith.mulf %620, %479 : vector<2x16xf32>
    %630 = arith.mulf %628, %498 : vector<2x16xf32>
    %631 = arith.addf %629, %630 : vector<2x16xf32>
    %632 = vector.extract_strided_slice %341 {offsets = [3, 0], sizes = [1, 16], strides = [1, 1]} : vector<10x16xf32> to vector<1x16xf32>
    %633 = vector.broadcast %632 : vector<1x16xf32> to vector<2x16xf32>
    %634 = arith.subf %340, %633 : vector<2x16xf32>
    %635 = vector.extract_strided_slice %341 {offsets = [5, 0], sizes = [1, 16], strides = [1, 1]} : vector<10x16xf32> to vector<1x16xf32>
    %636 = vector.extract_strided_slice %341 {offsets = [3, 0], sizes = [1, 16], strides = [1, 1]} : vector<10x16xf32> to vector<1x16xf32>
    %637 = arith.subf %635, %636 : vector<1x16xf32>
    %638 = vector.broadcast %637 : vector<1x16xf32> to vector<2x16xf32>
    %639 = arith.divf %634, %638 : vector<2x16xf32>
    %640 = vector.extract_strided_slice %341 {offsets = [6, 0], sizes = [1, 16], strides = [1, 1]} : vector<10x16xf32> to vector<1x16xf32>
    %641 = vector.broadcast %640 : vector<1x16xf32> to vector<2x16xf32>
    %642 = arith.subf %641, %340 : vector<2x16xf32>
    %643 = vector.extract_strided_slice %341 {offsets = [6, 0], sizes = [1, 16], strides = [1, 1]} : vector<10x16xf32> to vector<1x16xf32>
    %644 = vector.extract_strided_slice %341 {offsets = [4, 0], sizes = [1, 16], strides = [1, 1]} : vector<10x16xf32> to vector<1x16xf32>
    %645 = arith.subf %643, %644 : vector<1x16xf32>
    %646 = vector.broadcast %645 : vector<1x16xf32> to vector<2x16xf32>
    %647 = arith.divf %642, %646 : vector<2x16xf32>
    %648 = arith.mulf %639, %498 : vector<2x16xf32>
    %649 = arith.mulf %647, %517 : vector<2x16xf32>
    %650 = arith.addf %648, %649 : vector<2x16xf32>
    %651 = vector.extract_strided_slice %341 {offsets = [4, 0], sizes = [1, 16], strides = [1, 1]} : vector<10x16xf32> to vector<1x16xf32>
    %652 = vector.broadcast %651 : vector<1x16xf32> to vector<2x16xf32>
    %653 = arith.subf %340, %652 : vector<2x16xf32>
    %654 = vector.extract_strided_slice %341 {offsets = [6, 0], sizes = [1, 16], strides = [1, 1]} : vector<10x16xf32> to vector<1x16xf32>
    %655 = vector.extract_strided_slice %341 {offsets = [4, 0], sizes = [1, 16], strides = [1, 1]} : vector<10x16xf32> to vector<1x16xf32>
    %656 = arith.subf %654, %655 : vector<1x16xf32>
    %657 = vector.broadcast %656 : vector<1x16xf32> to vector<2x16xf32>
    %658 = arith.divf %653, %657 : vector<2x16xf32>
    %659 = vector.extract_strided_slice %341 {offsets = [7, 0], sizes = [1, 16], strides = [1, 1]} : vector<10x16xf32> to vector<1x16xf32>
    %660 = vector.broadcast %659 : vector<1x16xf32> to vector<2x16xf32>
    %661 = arith.subf %660, %340 : vector<2x16xf32>
    %662 = vector.extract_strided_slice %341 {offsets = [7, 0], sizes = [1, 16], strides = [1, 1]} : vector<10x16xf32> to vector<1x16xf32>
    %663 = vector.extract_strided_slice %341 {offsets = [5, 0], sizes = [1, 16], strides = [1, 1]} : vector<10x16xf32> to vector<1x16xf32>
    %664 = arith.subf %662, %663 : vector<1x16xf32>
    %665 = vector.broadcast %664 : vector<1x16xf32> to vector<2x16xf32>
    %666 = arith.divf %661, %665 : vector<2x16xf32>
    %667 = arith.mulf %658, %517 : vector<2x16xf32>
    %668 = arith.mulf %666, %536 : vector<2x16xf32>
    %669 = arith.addf %667, %668 : vector<2x16xf32>
    %670 = vector.extract_strided_slice %341 {offsets = [5, 0], sizes = [1, 16], strides = [1, 1]} : vector<10x16xf32> to vector<1x16xf32>
    %671 = vector.broadcast %670 : vector<1x16xf32> to vector<2x16xf32>
    %672 = arith.subf %340, %671 : vector<2x16xf32>
    %673 = vector.extract_strided_slice %341 {offsets = [7, 0], sizes = [1, 16], strides = [1, 1]} : vector<10x16xf32> to vector<1x16xf32>
    %674 = vector.extract_strided_slice %341 {offsets = [5, 0], sizes = [1, 16], strides = [1, 1]} : vector<10x16xf32> to vector<1x16xf32>
    %675 = arith.subf %673, %674 : vector<1x16xf32>
    %676 = vector.broadcast %675 : vector<1x16xf32> to vector<2x16xf32>
    %677 = arith.divf %672, %676 : vector<2x16xf32>
    %678 = vector.extract_strided_slice %341 {offsets = [8, 0], sizes = [1, 16], strides = [1, 1]} : vector<10x16xf32> to vector<1x16xf32>
    %679 = vector.broadcast %678 : vector<1x16xf32> to vector<2x16xf32>
    %680 = arith.subf %679, %340 : vector<2x16xf32>
    %681 = vector.extract_strided_slice %341 {offsets = [8, 0], sizes = [1, 16], strides = [1, 1]} : vector<10x16xf32> to vector<1x16xf32>
    %682 = vector.extract_strided_slice %341 {offsets = [6, 0], sizes = [1, 16], strides = [1, 1]} : vector<10x16xf32> to vector<1x16xf32>
    %683 = arith.subf %681, %682 : vector<1x16xf32>
    %684 = vector.broadcast %683 : vector<1x16xf32> to vector<2x16xf32>
    %685 = arith.divf %680, %684 : vector<2x16xf32>
    %686 = arith.mulf %677, %536 : vector<2x16xf32>
    %687 = arith.mulf %685, %555 : vector<2x16xf32>
    %688 = arith.addf %686, %687 : vector<2x16xf32>
    %689 = vector.extract_strided_slice %341 {offsets = [6, 0], sizes = [1, 16], strides = [1, 1]} : vector<10x16xf32> to vector<1x16xf32>
    %690 = vector.broadcast %689 : vector<1x16xf32> to vector<2x16xf32>
    %691 = arith.subf %340, %690 : vector<2x16xf32>
    %692 = vector.extract_strided_slice %341 {offsets = [8, 0], sizes = [1, 16], strides = [1, 1]} : vector<10x16xf32> to vector<1x16xf32>
    %693 = vector.extract_strided_slice %341 {offsets = [6, 0], sizes = [1, 16], strides = [1, 1]} : vector<10x16xf32> to vector<1x16xf32>
    %694 = arith.subf %692, %693 : vector<1x16xf32>
    %695 = vector.broadcast %694 : vector<1x16xf32> to vector<2x16xf32>
    %696 = arith.divf %691, %695 : vector<2x16xf32>
    %697 = vector.extract_strided_slice %341 {offsets = [9, 0], sizes = [1, 16], strides = [1, 1]} : vector<10x16xf32> to vector<1x16xf32>
    %698 = vector.broadcast %697 : vector<1x16xf32> to vector<2x16xf32>
    %699 = arith.subf %698, %340 : vector<2x16xf32>
    %700 = vector.extract_strided_slice %341 {offsets = [9, 0], sizes = [1, 16], strides = [1, 1]} : vector<10x16xf32> to vector<1x16xf32>
    %701 = vector.extract_strided_slice %341 {offsets = [7, 0], sizes = [1, 16], strides = [1, 1]} : vector<10x16xf32> to vector<1x16xf32>
    %702 = arith.subf %700, %701 : vector<1x16xf32>
    %703 = vector.broadcast %702 : vector<1x16xf32> to vector<2x16xf32>
    %704 = arith.divf %699, %703 : vector<2x16xf32>
    %705 = arith.mulf %696, %555 : vector<2x16xf32>
    %706 = arith.mulf %704, %574 : vector<2x16xf32>
    %707 = arith.addf %705, %706 : vector<2x16xf32>
    %708 = vector.extract_strided_slice %341 {offsets = [0, 0], sizes = [1, 16], strides = [1, 1]} : vector<10x16xf32> to vector<1x16xf32>
    %709 = vector.broadcast %708 : vector<1x16xf32> to vector<2x16xf32>
    %710 = arith.subf %340, %709 : vector<2x16xf32>
    %711 = vector.extract_strided_slice %341 {offsets = [3, 0], sizes = [1, 16], strides = [1, 1]} : vector<10x16xf32> to vector<1x16xf32>
    %712 = vector.extract_strided_slice %341 {offsets = [0, 0], sizes = [1, 16], strides = [1, 1]} : vector<10x16xf32> to vector<1x16xf32>
    %713 = arith.subf %711, %712 : vector<1x16xf32>
    %714 = vector.broadcast %713 : vector<1x16xf32> to vector<2x16xf32>
    %715 = arith.divf %710, %714 : vector<2x16xf32>
    %716 = vector.extract_strided_slice %341 {offsets = [4, 0], sizes = [1, 16], strides = [1, 1]} : vector<10x16xf32> to vector<1x16xf32>
    %717 = vector.broadcast %716 : vector<1x16xf32> to vector<2x16xf32>
    %718 = arith.subf %717, %340 : vector<2x16xf32>
    %719 = vector.extract_strided_slice %341 {offsets = [4, 0], sizes = [1, 16], strides = [1, 1]} : vector<10x16xf32> to vector<1x16xf32>
    %720 = vector.extract_strided_slice %341 {offsets = [1, 0], sizes = [1, 16], strides = [1, 1]} : vector<10x16xf32> to vector<1x16xf32>
    %721 = arith.subf %719, %720 : vector<1x16xf32>
    %722 = vector.broadcast %721 : vector<1x16xf32> to vector<2x16xf32>
    %723 = arith.divf %718, %722 : vector<2x16xf32>
    %724 = arith.mulf %715, %593 : vector<2x16xf32>
    %725 = arith.mulf %723, %612 : vector<2x16xf32>
    %726 = arith.addf %724, %725 : vector<2x16xf32>
    %727 = vector.extract_strided_slice %341 {offsets = [1, 0], sizes = [1, 16], strides = [1, 1]} : vector<10x16xf32> to vector<1x16xf32>
    %728 = vector.broadcast %727 : vector<1x16xf32> to vector<2x16xf32>
    %729 = arith.subf %340, %728 : vector<2x16xf32>
    %730 = vector.extract_strided_slice %341 {offsets = [4, 0], sizes = [1, 16], strides = [1, 1]} : vector<10x16xf32> to vector<1x16xf32>
    %731 = vector.extract_strided_slice %341 {offsets = [1, 0], sizes = [1, 16], strides = [1, 1]} : vector<10x16xf32> to vector<1x16xf32>
    %732 = arith.subf %730, %731 : vector<1x16xf32>
    %733 = vector.broadcast %732 : vector<1x16xf32> to vector<2x16xf32>
    %734 = arith.divf %729, %733 : vector<2x16xf32>
    %735 = vector.extract_strided_slice %341 {offsets = [5, 0], sizes = [1, 16], strides = [1, 1]} : vector<10x16xf32> to vector<1x16xf32>
    %736 = vector.broadcast %735 : vector<1x16xf32> to vector<2x16xf32>
    %737 = arith.subf %736, %340 : vector<2x16xf32>
    %738 = vector.extract_strided_slice %341 {offsets = [5, 0], sizes = [1, 16], strides = [1, 1]} : vector<10x16xf32> to vector<1x16xf32>
    %739 = vector.extract_strided_slice %341 {offsets = [2, 0], sizes = [1, 16], strides = [1, 1]} : vector<10x16xf32> to vector<1x16xf32>
    %740 = arith.subf %738, %739 : vector<1x16xf32>
    %741 = vector.broadcast %740 : vector<1x16xf32> to vector<2x16xf32>
    %742 = arith.divf %737, %741 : vector<2x16xf32>
    %743 = arith.mulf %734, %612 : vector<2x16xf32>
    %744 = arith.mulf %742, %631 : vector<2x16xf32>
    %745 = arith.addf %743, %744 : vector<2x16xf32>
    %746 = vector.extract_strided_slice %341 {offsets = [2, 0], sizes = [1, 16], strides = [1, 1]} : vector<10x16xf32> to vector<1x16xf32>
    %747 = vector.broadcast %746 : vector<1x16xf32> to vector<2x16xf32>
    %748 = arith.subf %340, %747 : vector<2x16xf32>
    %749 = vector.extract_strided_slice %341 {offsets = [5, 0], sizes = [1, 16], strides = [1, 1]} : vector<10x16xf32> to vector<1x16xf32>
    %750 = vector.extract_strided_slice %341 {offsets = [2, 0], sizes = [1, 16], strides = [1, 1]} : vector<10x16xf32> to vector<1x16xf32>
    %751 = arith.subf %749, %750 : vector<1x16xf32>
    %752 = vector.broadcast %751 : vector<1x16xf32> to vector<2x16xf32>
    %753 = arith.divf %748, %752 : vector<2x16xf32>
    %754 = vector.extract_strided_slice %341 {offsets = [6, 0], sizes = [1, 16], strides = [1, 1]} : vector<10x16xf32> to vector<1x16xf32>
    %755 = vector.broadcast %754 : vector<1x16xf32> to vector<2x16xf32>
    %756 = arith.subf %755, %340 : vector<2x16xf32>
    %757 = vector.extract_strided_slice %341 {offsets = [6, 0], sizes = [1, 16], strides = [1, 1]} : vector<10x16xf32> to vector<1x16xf32>
    %758 = vector.extract_strided_slice %341 {offsets = [3, 0], sizes = [1, 16], strides = [1, 1]} : vector<10x16xf32> to vector<1x16xf32>
    %759 = arith.subf %757, %758 : vector<1x16xf32>
    %760 = vector.broadcast %759 : vector<1x16xf32> to vector<2x16xf32>
    %761 = arith.divf %756, %760 : vector<2x16xf32>
    %762 = arith.mulf %753, %631 : vector<2x16xf32>
    %763 = arith.mulf %761, %650 : vector<2x16xf32>
    %764 = arith.addf %762, %763 : vector<2x16xf32>
    %765 = vector.extract_strided_slice %341 {offsets = [3, 0], sizes = [1, 16], strides = [1, 1]} : vector<10x16xf32> to vector<1x16xf32>
    %766 = vector.broadcast %765 : vector<1x16xf32> to vector<2x16xf32>
    %767 = arith.subf %340, %766 : vector<2x16xf32>
    %768 = vector.extract_strided_slice %341 {offsets = [6, 0], sizes = [1, 16], strides = [1, 1]} : vector<10x16xf32> to vector<1x16xf32>
    %769 = vector.extract_strided_slice %341 {offsets = [3, 0], sizes = [1, 16], strides = [1, 1]} : vector<10x16xf32> to vector<1x16xf32>
    %770 = arith.subf %768, %769 : vector<1x16xf32>
    %771 = vector.broadcast %770 : vector<1x16xf32> to vector<2x16xf32>
    %772 = arith.divf %767, %771 : vector<2x16xf32>
    %773 = vector.extract_strided_slice %341 {offsets = [7, 0], sizes = [1, 16], strides = [1, 1]} : vector<10x16xf32> to vector<1x16xf32>
    %774 = vector.broadcast %773 : vector<1x16xf32> to vector<2x16xf32>
    %775 = arith.subf %774, %340 : vector<2x16xf32>
    %776 = vector.extract_strided_slice %341 {offsets = [7, 0], sizes = [1, 16], strides = [1, 1]} : vector<10x16xf32> to vector<1x16xf32>
    %777 = vector.extract_strided_slice %341 {offsets = [4, 0], sizes = [1, 16], strides = [1, 1]} : vector<10x16xf32> to vector<1x16xf32>
    %778 = arith.subf %776, %777 : vector<1x16xf32>
    %779 = vector.broadcast %778 : vector<1x16xf32> to vector<2x16xf32>
    %780 = arith.divf %775, %779 : vector<2x16xf32>
    %781 = arith.mulf %772, %650 : vector<2x16xf32>
    %782 = arith.mulf %780, %669 : vector<2x16xf32>
    %783 = arith.addf %781, %782 : vector<2x16xf32>
    %784 = vector.extract_strided_slice %341 {offsets = [4, 0], sizes = [1, 16], strides = [1, 1]} : vector<10x16xf32> to vector<1x16xf32>
    %785 = vector.broadcast %784 : vector<1x16xf32> to vector<2x16xf32>
    %786 = arith.subf %340, %785 : vector<2x16xf32>
    %787 = vector.extract_strided_slice %341 {offsets = [7, 0], sizes = [1, 16], strides = [1, 1]} : vector<10x16xf32> to vector<1x16xf32>
    %788 = vector.extract_strided_slice %341 {offsets = [4, 0], sizes = [1, 16], strides = [1, 1]} : vector<10x16xf32> to vector<1x16xf32>
    %789 = arith.subf %787, %788 : vector<1x16xf32>
    %790 = vector.broadcast %789 : vector<1x16xf32> to vector<2x16xf32>
    %791 = arith.divf %786, %790 : vector<2x16xf32>
    %792 = vector.extract_strided_slice %341 {offsets = [8, 0], sizes = [1, 16], strides = [1, 1]} : vector<10x16xf32> to vector<1x16xf32>
    %793 = vector.broadcast %792 : vector<1x16xf32> to vector<2x16xf32>
    %794 = arith.subf %793, %340 : vector<2x16xf32>
    %795 = vector.extract_strided_slice %341 {offsets = [8, 0], sizes = [1, 16], strides = [1, 1]} : vector<10x16xf32> to vector<1x16xf32>
    %796 = vector.extract_strided_slice %341 {offsets = [5, 0], sizes = [1, 16], strides = [1, 1]} : vector<10x16xf32> to vector<1x16xf32>
    %797 = arith.subf %795, %796 : vector<1x16xf32>
    %798 = vector.broadcast %797 : vector<1x16xf32> to vector<2x16xf32>
    %799 = arith.divf %794, %798 : vector<2x16xf32>
    %800 = arith.mulf %791, %669 : vector<2x16xf32>
    %801 = arith.mulf %799, %688 : vector<2x16xf32>
    %802 = arith.addf %800, %801 : vector<2x16xf32>
    %803 = vector.extract_strided_slice %341 {offsets = [5, 0], sizes = [1, 16], strides = [1, 1]} : vector<10x16xf32> to vector<1x16xf32>
    %804 = vector.broadcast %803 : vector<1x16xf32> to vector<2x16xf32>
    %805 = arith.subf %340, %804 : vector<2x16xf32>
    %806 = vector.extract_strided_slice %341 {offsets = [8, 0], sizes = [1, 16], strides = [1, 1]} : vector<10x16xf32> to vector<1x16xf32>
    %807 = vector.extract_strided_slice %341 {offsets = [5, 0], sizes = [1, 16], strides = [1, 1]} : vector<10x16xf32> to vector<1x16xf32>
    %808 = arith.subf %806, %807 : vector<1x16xf32>
    %809 = vector.broadcast %808 : vector<1x16xf32> to vector<2x16xf32>
    %810 = arith.divf %805, %809 : vector<2x16xf32>
    %811 = vector.extract_strided_slice %341 {offsets = [9, 0], sizes = [1, 16], strides = [1, 1]} : vector<10x16xf32> to vector<1x16xf32>
    %812 = vector.broadcast %811 : vector<1x16xf32> to vector<2x16xf32>
    %813 = arith.subf %812, %340 : vector<2x16xf32>
    %814 = vector.extract_strided_slice %341 {offsets = [9, 0], sizes = [1, 16], strides = [1, 1]} : vector<10x16xf32> to vector<1x16xf32>
    %815 = vector.extract_strided_slice %341 {offsets = [6, 0], sizes = [1, 16], strides = [1, 1]} : vector<10x16xf32> to vector<1x16xf32>
    %816 = arith.subf %814, %815 : vector<1x16xf32>
    %817 = vector.broadcast %816 : vector<1x16xf32> to vector<2x16xf32>
    %818 = arith.divf %813, %817 : vector<2x16xf32>
    %819 = arith.mulf %810, %688 : vector<2x16xf32>
    %820 = arith.mulf %818, %707 : vector<2x16xf32>
    %821 = arith.addf %819, %820 : vector<2x16xf32>
    %cst_358 = arith.constant 0.000000e+00 : f32
    %822 = vector.broadcast %cst_358 : f32 to vector<2x16xf32>
    %823 = arith.subf %822, %340 : vector<2x16xf32>
    %824 = math.exp %823 : vector<2x16xf32>
    %cst_359 = arith.constant 1.000000e+00 : f32
    %825 = vector.broadcast %cst_359 : f32 to vector<2x16xf32>
    %826 = arith.addf %825, %824 : vector<2x16xf32>
    %cst_360 = arith.constant 1.000000e+00 : f32
    %827 = vector.broadcast %cst_360 : f32 to vector<2x16xf32>
    %828 = arith.divf %827, %826 : vector<2x16xf32>
    %829 = arith.mulf %340, %828 : vector<2x16xf32>
    %c0_361 = arith.constant 0 : index
    %c0_362 = arith.constant 0 : index
    %830 = vector.load %arg11[%c0_361, %c0_362] : memref<1x16xf32, #tpu.memory_space<vmem>>, vector<1x16xf32>
    %831 = vector.broadcast %830 : vector<1x16xf32> to vector<2x16xf32>
    %832 = arith.mulf %829, %831 : vector<2x16xf32>
    %c0_363 = arith.constant 0 : index
    %c0_364 = arith.constant 0 : index
    %833 = vector.load %arg12[%c0_363, %c0_364] : memref<6x16xf32, #tpu.memory_space<vmem>>, vector<1x16xf32>
    %834 = vector.broadcast %833 : vector<1x16xf32> to vector<2x16xf32>
    %835 = arith.mulf %726, %834 : vector<2x16xf32>
    %836 = arith.addf %832, %835 : vector<2x16xf32>
    %c1_365 = arith.constant 1 : index
    %c0_366 = arith.constant 0 : index
    %837 = vector.load %arg12[%c1_365, %c0_366] : memref<6x16xf32, #tpu.memory_space<vmem>>, vector<1x16xf32>
    %838 = vector.broadcast %837 : vector<1x16xf32> to vector<2x16xf32>
    %839 = arith.mulf %745, %838 : vector<2x16xf32>
    %840 = arith.addf %836, %839 : vector<2x16xf32>
    %c2_367 = arith.constant 2 : index
    %c0_368 = arith.constant 0 : index
    %841 = vector.load %arg12[%c2_367, %c0_368] : memref<6x16xf32, #tpu.memory_space<vmem>>, vector<1x16xf32>
    %842 = vector.broadcast %841 : vector<1x16xf32> to vector<2x16xf32>
    %843 = arith.mulf %764, %842 : vector<2x16xf32>
    %844 = arith.addf %840, %843 : vector<2x16xf32>
    %c3_369 = arith.constant 3 : index
    %c0_370 = arith.constant 0 : index
    %845 = vector.load %arg12[%c3_369, %c0_370] : memref<6x16xf32, #tpu.memory_space<vmem>>, vector<1x16xf32>
    %846 = vector.broadcast %845 : vector<1x16xf32> to vector<2x16xf32>
    %847 = arith.mulf %783, %846 : vector<2x16xf32>
    %848 = arith.addf %844, %847 : vector<2x16xf32>
    %c4_371 = arith.constant 4 : index
    %c0_372 = arith.constant 0 : index
    %849 = vector.load %arg12[%c4_371, %c0_372] : memref<6x16xf32, #tpu.memory_space<vmem>>, vector<1x16xf32>
    %850 = vector.broadcast %849 : vector<1x16xf32> to vector<2x16xf32>
    %851 = arith.mulf %802, %850 : vector<2x16xf32>
    %852 = arith.addf %848, %851 : vector<2x16xf32>
    %c5_373 = arith.constant 5 : index
    %c0_374 = arith.constant 0 : index
    %853 = vector.load %arg12[%c5_373, %c0_374] : memref<6x16xf32, #tpu.memory_space<vmem>>, vector<1x16xf32>
    %854 = vector.broadcast %853 : vector<1x16xf32> to vector<2x16xf32>
    %855 = arith.mulf %821, %854 : vector<2x16xf32>
    %856 = arith.addf %852, %855 : vector<2x16xf32>
    %cst_375 = arith.constant dense<0.000000e+00> : vector<2xf32>
    %857 = vector.multi_reduction <add>, %856, %cst_375 [1] : vector<2x16xf32> to vector<2xf32>
    %858 = vector.shape_cast %857 : vector<2xf32> to vector<2x1xf32>
    %c0_376 = arith.constant 0 : index
    %c0_377 = arith.constant 0 : index
    %859 = vector.load %arg13[%c0_376, %c0_377] : memref<2x1xf32, #tpu.memory_space<vmem>>, vector<2x1xf32>
    tpu.vector_store %arg13[%c0_376, %c0_377], %858 {strides = array<i32>} : memref<2x1xf32, #tpu.memory_space<vmem>>, vector<2x1xf32>,
    return
  }
}

</mosaic_0001>

<llo_original>
// kernel: kanreg_forward.1
$region0: #{kanreg_forward.1}
  #allocation0 [shape = 'u32[]', space=smem, size = 0x4, offset = 0x4, fixed_abs, tag = 'smem constant byte address 0x4 - core index']
  #allocation1 [shape = 'u32[144,128]{1,0:T(1,128)}', space=vmem, size = 0x12000, scoped, tag = 'internal scratch']
  #allocation2 [shape = 'f32[2,34,32]{2,1,0:T(8,128)}', space=vmem, size = 0xa000, scoped, tag = 'scratch operand']
  #allocation3 [shape = 'f32[64,96]{1,0:T(8,128)}', space=vmem, size = 0x8000, scoped, tag = 'scratch operand']
  #allocation4 [shape = 'f32[2,512]{1,0:T(2,128)}', space=vmem, size = 0x1000, scoped, tag = 'scratch operand']
  %s0 = inlined_call_operand.vmem [shape: f32[64,1], index: 0, kind: input, shape index: {}]
  %s1 = inlined_call_operand.vmem [shape: f32[1,32], index: 1, kind: input, shape index: {}]
  %s2 = inlined_call_operand.vmem [shape: f32[1,32], index: 2, kind: input, shape index: {}]
  %s3 = inlined_call_operand.vmem [shape: f32[6,96,32], index: 3, kind: input, shape index: {}]
  %s4 = inlined_call_operand.vmem [shape: f32[6,32], index: 4, kind: input, shape index: {}]
  %s5 = inlined_call_operand.vmem [shape: f32[16,32], index: 5, kind: input, shape index: {}]
  %s6 = inlined_call_operand.vmem [shape: f32[512,64], index: 6, kind: input, shape index: {}]
  %s7 = inlined_call_operand.vmem [shape: f32[1,64], index: 7, kind: input, shape index: {}]
  %s8 = inlined_call_operand.vmem [shape: f32[64,16], index: 8, kind: input, shape index: {}]
  %s9 = inlined_call_operand.vmem [shape: f32[1,16], index: 9, kind: input, shape index: {}]
  %s10 = inlined_call_operand.vmem [shape: f32[10,16], index: 10, kind: input, shape index: {}]
  %s11 = inlined_call_operand.vmem [shape: f32[1,16], index: 11, kind: input, shape index: {}]
  %s12 = inlined_call_operand.vmem [shape: f32[6,16], index: 12, kind: input, shape index: {}]
  %s13 = inlined_call_operand.vmem [shape: f32[2,1], index: 13, kind: output, shape index: {}]
  %s14 = sld [smem:[#allocation0]]
  $region62: #{kanreg_forward.1} parent=0
    _
  %s16 = ssub.s32 1, %s14
  %s17 = scalar_select 0, %s16, %s14
  // Predicated region
  $region2: #{kanreg_forward.1} parent=0 // pred_check
    _
  $region3: #{kanreg_forward.1} parent=0 // pred_check_branch
    %19 = sbr.rel (0) target = $region5
  $region4: #{kanreg_forward.1} parent=0 // pred_region
    _
  $region5: #{kanreg_forward.1} parent=0 // pred_fallthru
    _
  // Predicated region
  $region6: #{kanreg_forward.1} parent=0 // pred_check
    _
  $region7: #{kanreg_forward.1} parent=0 // pred_check_branch
    %21 = sbr.rel (0) target = $region9
  $region8: #{kanreg_forward.1} parent=0 // pred_region
    _
  $region9: #{kanreg_forward.1} parent=0 // pred_fallthru
    _
  // Predicated region
  $region10: #{kanreg_forward.1} parent=0 // pred_check
    _
  $region11: #{kanreg_forward.1} parent=0 // pred_check_branch
    %23 = sbr.rel (0) target = $region13
  $region12: #{kanreg_forward.1} parent=0 // pred_region
    _
  $region13: #{kanreg_forward.1} parent=0 // pred_fallthru
    _
  // Predicated region
  $region14: #{kanreg_forward.1} parent=0 // pred_check
    _
  $region15: #{kanreg_forward.1} parent=0 // pred_check_branch
    %25 = sbr.rel (0) target = $region17
  $region16: #{kanreg_forward.1} parent=0 // pred_region
    _
  $region17: #{kanreg_forward.1} parent=0 // pred_fallthru
    _
  // Predicated region
  $region18: #{kanreg_forward.1} parent=0 // pred_check
    _
  $region19: #{kanreg_forward.1} parent=0 // pred_check_branch
    %27 = sbr.rel (0) target = $region21
  $region20: #{kanreg_forward.1} parent=0 // pred_region
    _
  $region21: #{kanreg_forward.1} parent=0 // pred_fallthru
    _
  // Predicated region
  $region22: #{kanreg_forward.1} parent=0 // pred_check
    _
  $region23: #{kanreg_forward.1} parent=0 // pred_check_branch
    %29 = sbr.rel (0) target = $region25
  $region24: #{kanreg_forward.1} parent=0 // pred_region
    _
  $region25: #{kanreg_forward.1} parent=0 // pred_fallthru
    _
  // Predicated region
  $region26: #{kanreg_forward.1} parent=0 // pred_check
    _
  $region27: #{kanreg_forward.1} parent=0 // pred_check_branch
    %31 = sbr.rel (0) target = $region29
  $region28: #{kanreg_forward.1} parent=0 // pred_region
    _
  $region29: #{kanreg_forward.1} parent=0 // pred_fallthru
    _
  // Predicated region
  $region30: #{kanreg_forward.1} parent=0 // pred_check
    _
  $region31: #{kanreg_forward.1} parent=0 // pred_check_branch
    %33 = sbr.rel (0) target = $region33
  $region32: #{kanreg_forward.1} parent=0 // pred_region
    _
  $region33: #{kanreg_forward.1} parent=0 // pred_fallthru
    _
  // Predicated region
  $region34: #{kanreg_forward.1} parent=0 // pred_check
    _
  $region35: #{kanreg_forward.1} parent=0 // pred_check_branch
    %35 = sbr.rel (0) target = $region37
  $region36: #{kanreg_forward.1} parent=0 // pred_region
    _
  $region37: #{kanreg_forward.1} parent=0 // pred_fallthru
    _
  // Predicated region
  $region38: #{kanreg_forward.1} parent=0 // pred_check
    _
  $region39: #{kanreg_forward.1} parent=0 // pred_check_branch
    %37 = sbr.rel (0) target = $region41
  $region40: #{kanreg_forward.1} parent=0 // pred_region
    _
  $region41: #{kanreg_forward.1} parent=0 // pred_fallthru
    _
  // Predicated region
  $region42: #{kanreg_forward.1} parent=0 // pred_check
    _
  $region43: #{kanreg_forward.1} parent=0 // pred_check_branch
    %39 = sbr.rel (0) target = $region45
  $region44: #{kanreg_forward.1} parent=0 // pred_region
    _
  $region45: #{kanreg_forward.1} parent=0 // pred_fallthru
    _
  // Predicated region
  $region46: #{kanreg_forward.1} parent=0 // pred_check
    _
  $region47: #{kanreg_forward.1} parent=0 // pred_check_branch
    %41 = sbr.rel (0) target = $region49
  $region48: #{kanreg_forward.1} parent=0 // pred_region
    _
  $region49: #{kanreg_forward.1} parent=0 // pred_fallthru
    _
  // Predicated region
  $region50: #{kanreg_forward.1} parent=0 // pred_check
    _
  $region51: #{kanreg_forward.1} parent=0 // pred_check_branch
    %43 = sbr.rel (0) target = $region53
  $region52: #{kanreg_forward.1} parent=0 // pred_region
    _
  $region53: #{kanreg_forward.1} parent=0 // pred_fallthru
    _
  %v44 = vld [vmem:[%s0] sm:$0xff]
  %v45 = vld [vmem:[%s0 + $0x8] sm:$0xff]
  %v46 = vld [vmem:[%s0 + $0x10] sm:$0xff]
  %v47 = vld [vmem:[%s0 + $0x18] sm:$0xff]
  %v48 = vld [vmem:[%s0 + $0x20] sm:$0xff]
  %v49 = vld [vmem:[%s0 + $0x28] sm:$0xff]
  %v50 = vld [vmem:[%s0 + $0x30] sm:$0xff]
  %v51 = vld [vmem:[%s0 + $0x38] sm:$0xff]
  %v52 = vld [vmem:[%s1] sm:$0x1]
  %54 = vset.pattern.permute.xlu0 0
  %55 = vperm.xlu0 %54, %v44
  %v56 = vpop.permute.xlu0 %55
  %59 = vset.pattern.permute.xlu0 0
  %60 = vperm.xlu0 %59, %v45
  %v61 = vpop.permute.xlu0 %60
  %64 = vset.pattern.permute.xlu0 0
  %65 = vperm.xlu0 %64, %v46
  %v66 = vpop.permute.xlu0 %65
  %69 = vset.pattern.permute.xlu0 0
  %70 = vperm.xlu0 %69, %v47
  %v71 = vpop.permute.xlu0 %70
  %74 = vset.pattern.permute.xlu0 0
  %75 = vperm.xlu0 %74, %v48
  %v76 = vpop.permute.xlu0 %75
  %79 = vset.pattern.permute.xlu0 0
  %80 = vperm.xlu0 %79, %v49
  %v81 = vpop.permute.xlu0 %80
  %84 = vset.pattern.permute.xlu0 0
  %85 = vperm.xlu0 %84, %v50
  %v86 = vpop.permute.xlu0 %85
  %89 = vset.pattern.permute.xlu0 0
  %90 = vperm.xlu0 %89, %v51
  %v91 = vpop.permute.xlu0 %90
  %v94 = vlaneseq
  %v95 = vshrl.u32 %v94, 7
  %v96 = vsub.s32 0, %v95
  %v97 = vrot.slane %v52, %v96
  %v99 = vmul.f32 %v56, %v97
  %v100 = vmul.f32 %v61, %v97
  %v101 = vmul.f32 %v66, %v97
  %v102 = vmul.f32 %v71, %v97
  %v103 = vmul.f32 %v76, %v97
  %v104 = vmul.f32 %v81, %v97
  %v105 = vmul.f32 %v86, %v97
  %v106 = vmul.f32 %v91, %v97
  %v107 = vld [vmem:[%s2] sm:$0x1]
  %v109 = vlaneseq
  %v110 = vshrl.u32 %v109, 7
  %v111 = vsub.s32 0, %v110
  %v112 = vrot.slane %v107, %v111
  %v114 = vadd.f32 %v99, %v112
  %v115 = vadd.f32 %v100, %v112
  %v116 = vadd.f32 %v101, %v112
  %v117 = vadd.f32 %v102, %v112
  %v118 = vadd.f32 %v103, %v112
  %v119 = vadd.f32 %v104, %v112
  %v120 = vadd.f32 %v105, %v112
  %v121 = vadd.f32 %v106, %v112
  %vm122 = vcmask 253952
  %123 = vst.msk [vmem:[#allocation2] sm:$0x1] %vm122, 0.0
  %124 = vst.msk [vmem:[#allocation2 + $0x21] sm:$0x1] %vm122, 0.0
  %s125 = scalar_lea.vmem [#allocation2], 40
  %126 = vst.msk [vmem:[%s125] sm:$0x1] %vm122, 0.0
  %127 = vst.msk [vmem:[%s125 + $0x21] sm:$0x1] %vm122, 0.0
  %vm128 = vcmask 261120
  %129 = vst.msk [vmem:[#allocation2 + $0x1] sm:$0xff] %vm128, %v114
  %130 = vst.msk [vmem:[#allocation2 + $0x9] sm:$0xff] %vm128, %v115
  %131 = vst.msk [vmem:[#allocation2 + $0x11] sm:$0xff] %vm128, %v116
  %132 = vst.msk [vmem:[#allocation2 + $0x19] sm:$0xff] %vm128, %v117
  %133 = vst.msk [vmem:[%s125 + $0x1] sm:$0xff] %vm128, %v118
  %134 = vst.msk [vmem:[%s125 + $0x9] sm:$0xff] %vm128, %v119
  %135 = vst.msk [vmem:[%s125 + $0x11] sm:$0xff] %vm128, %v120
  %136 = vst.msk [vmem:[%s125 + $0x19] sm:$0xff] %vm128, %v121
  %v137 = vld [vmem:[#allocation2] sm:$0xff]
  %v138 = vld [vmem:[#allocation2 + $0x8] sm:$0xff]
  %v139 = vld [vmem:[#allocation2 + $0x10] sm:$0xff]
  %v140 = vld [vmem:[#allocation2 + $0x18] sm:$0xff]
  %141 = vst.msk [vmem:[#allocation3] sm:$0xff] %vm128, %v137
  %142 = vst.msk [vmem:[#allocation3 + $0x8] sm:$0xff] %vm128, %v138
  %143 = vst.msk [vmem:[#allocation3 + $0x10] sm:$0xff] %vm128, %v139
  %144 = vst.msk [vmem:[#allocation3 + $0x18] sm:$0xff] %vm128, %v140
  %v145 = vld [vmem:[#allocation2 + $0x1] sm:$0xff]
  %v146 = vld [vmem:[#allocation2 + $0x9] sm:$0xff]
  %v147 = vld [vmem:[#allocation2 + $0x11] sm:$0xff]
  %v148 = vld [vmem:[#allocation2 + $0x19] sm:$0xff]
  %153 = vrot.lane.b32.xlu0 %v145, 32
  %v154 = vpop.permute.xlu0 %153
  %155 = vrot.lane.b32.xlu0 %v146, 32
  %v156 = vpop.permute.xlu0 %155
  %157 = vrot.lane.b32.xlu0 %v147, 32
  %v158 = vpop.permute.xlu0 %157
  %159 = vrot.lane.b32.xlu0 %v148, 32
  %v160 = vpop.permute.xlu0 %159
  %vm165 = vcmask 523520
  %166 = vst.msk [vmem:[#allocation3] sm:$0xff] %vm165, %v154
  %167 = vst.msk [vmem:[#allocation3 + $0x8] sm:$0xff] %vm165, %v156
  %168 = vst.msk [vmem:[#allocation3 + $0x10] sm:$0xff] %vm165, %v158
  %169 = vst.msk [vmem:[#allocation3 + $0x18] sm:$0xff] %vm165, %v160
  %v170 = vld [vmem:[#allocation2 + $0x2] sm:$0xff]
  %v171 = vld [vmem:[#allocation2 + $0xa] sm:$0xff]
  %v172 = vld [vmem:[#allocation2 + $0x12] sm:$0xff]
  %v173 = vld [vmem:[#allocation2 + $0x1a] sm:$0xff]
  %178 = vrot.lane.b32.xlu0 %v170, 64
  %v179 = vpop.permute.xlu0 %178
  %180 = vrot.lane.b32.xlu0 %v171, 64
  %v181 = vpop.permute.xlu0 %180
  %182 = vrot.lane.b32.xlu0 %v172, 64
  %v183 = vpop.permute.xlu0 %182
  %184 = vrot.lane.b32.xlu0 %v173, 64
  %v185 = vpop.permute.xlu0 %184
  %vm190 = vcmask 785920
  %191 = vst.msk [vmem:[#allocation3] sm:$0xff] %vm190, %v179
  %192 = vst.msk [vmem:[#allocation3 + $0x8] sm:$0xff] %vm190, %v181
  %193 = vst.msk [vmem:[#allocation3 + $0x10] sm:$0xff] %vm190, %v183
  %194 = vst.msk [vmem:[#allocation3 + $0x18] sm:$0xff] %vm190, %v185
  %v195 = vld [vmem:[%s125] sm:$0xff]
  %v196 = vld [vmem:[%s125 + $0x8] sm:$0xff]
  %v197 = vld [vmem:[%s125 + $0x10] sm:$0xff]
  %v198 = vld [vmem:[%s125 + $0x18] sm:$0xff]
  %199 = vst.msk [vmem:[#allocation3 + $0x20] sm:$0xff] %vm128, %v195
  %200 = vst.msk [vmem:[#allocation3 + $0x28] sm:$0xff] %vm128, %v196
  %201 = vst.msk [vmem:[#allocation3 + $0x30] sm:$0xff] %vm128, %v197
  %202 = vst.msk [vmem:[#allocation3 + $0x38] sm:$0xff] %vm128, %v198
  %v203 = vld [vmem:[%s125 + $0x1] sm:$0xff]
  %v204 = vld [vmem:[%s125 + $0x9] sm:$0xff]
  %v205 = vld [vmem:[%s125 + $0x11] sm:$0xff]
  %v206 = vld [vmem:[%s125 + $0x19] sm:$0xff]
  %211 = vrot.lane.b32.xlu0 %v203, 32
  %v212 = vpop.permute.xlu0 %211
  %213 = vrot.lane.b32.xlu0 %v204, 32
  %v214 = vpop.permute.xlu0 %213
  %215 = vrot.lane.b32.xlu0 %v205, 32
  %v216 = vpop.permute.xlu0 %215
  %217 = vrot.lane.b32.xlu0 %v206, 32
  %v218 = vpop.permute.xlu0 %217
  %223 = vst.msk [vmem:[#allocation3 + $0x20] sm:$0xff] %vm165, %v212
  %224 = vst.msk [vmem:[#allocation3 + $0x28] sm:$0xff] %vm165, %v214
  %225 = vst.msk [vmem:[#allocation3 + $0x30] sm:$0xff] %vm165, %v216
  %226 = vst.msk [vmem:[#allocation3 + $0x38] sm:$0xff] %vm165, %v218
  %v227 = vld [vmem:[%s125 + $0x2] sm:$0xff]
  %v228 = vld [vmem:[%s125 + $0xa] sm:$0xff]
  %v229 = vld [vmem:[%s125 + $0x12] sm:$0xff]
  %v230 = vld [vmem:[%s125 + $0x1a] sm:$0xff]
  %235 = vrot.lane.b32.xlu0 %v227, 64
  %v236 = vpop.permute.xlu0 %235
  %237 = vrot.lane.b32.xlu0 %v228, 64
  %v238 = vpop.permute.xlu0 %237
  %239 = vrot.lane.b32.xlu0 %v229, 64
  %v240 = vpop.permute.xlu0 %239
  %241 = vrot.lane.b32.xlu0 %v230, 64
  %v242 = vpop.permute.xlu0 %241
  %247 = vst.msk [vmem:[#allocation3 + $0x20] sm:$0xff] %vm190, %v236
  %248 = vst.msk [vmem:[#allocation3 + $0x28] sm:$0xff] %vm190, %v238
  %249 = vst.msk [vmem:[#allocation3 + $0x30] sm:$0xff] %vm190, %v240
  %250 = vst.msk [vmem:[#allocation3 + $0x38] sm:$0xff] %vm190, %v242
  %v251 = vld [vmem:[%s3] sm:$0xff]
  %v252 = vld [vmem:[%s3 + $0x8] sm:$0xff]
  %v253 = vld [vmem:[%s3 + $0x10] sm:$0xff]
  %v254 = vld [vmem:[%s3 + $0x18] sm:$0xff]
  %v255 = vld [vmem:[%s3 + $0x20] sm:$0xff]
  %v256 = vld [vmem:[%s3 + $0x28] sm:$0xff]
  %v257 = vld [vmem:[%s3 + $0x30] sm:$0xff]
  %v258 = vld [vmem:[%s3 + $0x38] sm:$0xff]
  %v259 = vld [vmem:[%s3 + $0x40] sm:$0xff]
  %v260 = vld [vmem:[%s3 + $0x48] sm:$0xff]
  %v261 = vld [vmem:[%s3 + $0x50] sm:$0xff]
  %v262 = vld [vmem:[%s3 + $0x58] sm:$0xff]
  %v263 = vld [vmem:[%s4] sm:$0x1]
  %v264 = vld [vmem:[#allocation3] sm:$0xff]
  %v265 = vld [vmem:[#allocation3 + $0x8] sm:$0xff]
  %v266 = vld [vmem:[#allocation3 + $0x10] sm:$0xff]
  %v267 = vld [vmem:[#allocation3 + $0x18] sm:$0xff]
  %v268 = vld [vmem:[#allocation3 + $0x20] sm:$0xff]
  %v269 = vld [vmem:[#allocation3 + $0x28] sm:$0xff]
  %v270 = vld [vmem:[#allocation3 + $0x30] sm:$0xff]
  %v271 = vld [vmem:[#allocation3 + $0x38] sm:$0xff]
  %v272 = vlaneseq
  %v273 = vshrl.u32 %v272, 7
  %v274 = vsub.s32 0, %v273
  %v275 = vrot.slane %v263, %v274
  %vm276 = vcmask 785408
  %v278 = vsel %vm276, %v264, 0
  %v281 = vsel %vm276, %v265, 0
  %v284 = vsel %vm276, %v266, 0
  %v287 = vsel %vm276, %v267, 0
  %v290 = vsel %vm276, %v268, 0
  %v293 = vsel %vm276, %v269, 0
  %v296 = vsel %vm276, %v270, 0
  %v299 = vsel %vm276, %v271, 0
  %301 = vmatprep.subr.mxu0 0.0
  %302 = vmatpush1.msra.mxu0 %v251
  %303 = vmatprep.subr.mxu0 0.0
  %304 = vmatpush1.msra.mxu0 %v252
  %305 = vmatprep.subr.mxu0 0.0
  %306 = vmatpush1.msra.mxu0 %v253
  %307 = vmatprep.subr.mxu0 0.0
  %308 = vmatpush1.msra.mxu0 %v254
  %309 = vmatprep.subr.mxu0 0.0
  %310 = vmatpush1.msra.mxu0 %v255
  %311 = vmatprep.subr.mxu0 0.0
  %312 = vmatpush1.msra.mxu0 %v256
  %313 = vmatprep.subr.mxu0 0.0
  %314 = vmatpush1.msra.mxu0 %v257
  %315 = vmatprep.subr.mxu0 0.0
  %316 = vmatpush1.msra.mxu0 %v258
  %317 = vmatprep.subr.mxu0 0.0
  %318 = vmatpush1.msra.mxu0 %v259
  %319 = vmatprep.subr.mxu0 0.0
  %320 = vmatpush1.msra.mxu0 %v260
  %321 = vmatprep.subr.mxu0 0.0
  %322 = vmatpush1.msra.mxu0 %v261
  %323 = vmatprep.subr.mxu0 0.0
  %324 = vmatpush1.msra.mxu0 %v262
  %325 = vmatprep.subr.mxu0 0.0
  %326 = vmatpush1.msra.mxu0 0.0
  %327 = vmatprep.subr.mxu0 0.0
  %328 = vmatpush1.msra.mxu0 0.0
  %329 = vmatprep.subr.mxu0 0.0
  %330 = vmatpush1.msra.mxu0 0.0
  %331 = vmatprep.subr.mxu0 0.0
  %332 = vmatpush1.msra.mxu0 0.0
  %333 = vmatprep.subr.mxu0 0.0
  %334 = vmatpush1.msra.mxu0 0.0
  %335 = vmatprep.subr.mxu0 0.0
  %336 = vmatpush1.msra.mxu0 0.0
  %337 = vmatprep.subr.mxu0 0.0
  %338 = vmatpush1.msra.mxu0 0.0
  %339 = vmatprep.subr.mxu0 0.0
  %340 = vmatpush1.msra.mxu0 0.0
  %341 = vmatprep.subr.mxu0 0.0
  %342 = vmatpush1.msra.mxu0 0.0
  %343 = vmatprep.subr.mxu0 0.0
  %344 = vmatpush1.msra.mxu0 0.0
  %345 = vmatprep.subr.mxu0 0.0
  %346 = vmatpush1.msra.mxu0 0.0
  %347 = vmatprep.subr.mxu0 0.0
  %348 = vmatpush1.msra.mxu0 0.0
  %349 = vmatprep.subr.mxu0 0.0
  %350 = vmatpush1.msra.mxu0 0.0
  %351 = vmatprep.subr.mxu0 0.0
  %352 = vmatpush1.msra.mxu0 0.0
  %353 = vmatprep.subr.mxu0 0.0
  %354 = vmatpush1.msra.mxu0 0.0
  %355 = vmatprep.subr.mxu0 0.0
  %356 = vmatpush1.msra.mxu0 0.0
  %357 = vmatprep.subr.mxu0 0.0
  %358 = vmatpush1.msra.mxu0 0.0
  %359 = vmatprep.subr.mxu0 0.0
  %360 = vmatpush1.msra.mxu0 0.0
  %361 = vmatprep.subr.mxu0 0.0
  %362 = vmatpush1.msra.mxu0 0.0
  %363 = vmatprep.subr.mxu0 0.0
  %364 = vmatpush1.msra.mxu0 0.0
  %365 = vmatprep.mubr.f32.mxu0 0.0
  %366 = vmatmul.mubr.f32.gmra.mrb[0].mxu0 %v278
  %v367 = vpop.f32.mrb[0].mxu0
  %v368 = vadd.f32 %v275, %v367
  %v369 = vpop.f32.mrb[0].mxu0
  %370 = vmatprep.mubr.f32.mxu0 0.0
  %371 = vmatmul.mubr.f32.gmra.mrb[0].mxu0 %v281
  %v372 = vpop.f32.mrb[0].mxu0
  %v373 = vadd.f32 %v275, %v372
  %v374 = vpop.f32.mrb[0].mxu0
  %375 = vmatprep.mubr.f32.mxu0 0.0
  %376 = vmatmul.mubr.f32.gmra.mrb[0].mxu0 %v284
  %v377 = vpop.f32.mrb[0].mxu0
  %v378 = vadd.f32 %v275, %v377
  %v379 = vpop.f32.mrb[0].mxu0
  %380 = vmatprep.mubr.f32.mxu0 0.0
  %381 = vmatmul.mubr.f32.gmra.mrb[0].mxu0 %v287
  %v382 = vpop.f32.mrb[0].mxu0
  %v383 = vadd.f32 %v275, %v382
  %v384 = vpop.f32.mrb[0].mxu0
  %385 = vmatprep.mubr.f32.mxu0 0.0
  %386 = vmatmul.mubr.f32.gmra.mrb[0].mxu0 %v290
  %v387 = vpop.f32.mrb[0].mxu0
  %v388 = vadd.f32 %v275, %v387
  %v389 = vpop.f32.mrb[0].mxu0
  %390 = vmatprep.mubr.f32.mxu0 0.0
  %391 = vmatmul.mubr.f32.gmra.mrb[0].mxu0 %v293
  %v392 = vpop.f32.mrb[0].mxu0
  %v393 = vadd.f32 %v275, %v392
  %v394 = vpop.f32.mrb[0].mxu0
  %395 = vmatprep.mubr.f32.mxu0 0.0
  %396 = vmatmul.mubr.f32.gmra.mrb[0].mxu0 %v296
  %v397 = vpop.f32.mrb[0].mxu0
  %v398 = vadd.f32 %v275, %v397
  %v399 = vpop.f32.mrb[0].mxu0
  %400 = vmatprep.mubr.f32.mxu0 0.0
  %401 = vmatmul.mubr.f32.gmra.mrb[0].mxu0 %v299
  %v402 = vpop.f32.mrb[0].mxu0
  %v403 = vadd.f32 %v275, %v402
  %v404 = vpop.f32.mrb[0].mxu0
  %405 = vdwg.mxu0
  %v406 = vmax.f32 %v368, 0.0
  %v407 = vmax.f32 %v373, 0.0
  %v408 = vmax.f32 %v378, 0.0
  %v409 = vmax.f32 %v383, 0.0
  %v410 = vmax.f32 %v388, 0.0
  %v411 = vmax.f32 %v393, 0.0
  %v412 = vmax.f32 %v398, 0.0
  %v413 = vmax.f32 %v403, 0.0
  %414 = vst.msk [vmem:[#allocation2 + $0x1] sm:$0xff] %vm128, %v406
  %415 = vst.msk [vmem:[#allocation2 + $0x9] sm:$0xff] %vm128, %v407
  %416 = vst.msk [vmem:[#allocation2 + $0x11] sm:$0xff] %vm128, %v408
  %417 = vst.msk [vmem:[#allocation2 + $0x19] sm:$0xff] %vm128, %v409
  %418 = vst.msk [vmem:[%s125 + $0x1] sm:$0xff] %vm128, %v410
  %419 = vst.msk [vmem:[%s125 + $0x9] sm:$0xff] %vm128, %v411
  %420 = vst.msk [vmem:[%s125 + $0x11] sm:$0xff] %vm128, %v412
  %421 = vst.msk [vmem:[%s125 + $0x19] sm:$0xff] %vm128, %v413
  %v422 = vld [vmem:[#allocation2] sm:$0xff]
  %v423 = vld [vmem:[#allocation2 + $0x8] sm:$0xff]
  %v424 = vld [vmem:[#allocation2 + $0x10] sm:$0xff]
  %v425 = vld [vmem:[#allocation2 + $0x18] sm:$0xff]
  %426 = vst.msk [vmem:[#allocation3] sm:$0xff] %vm128, %v422
  %427 = vst.msk [vmem:[#allocation3 + $0x8] sm:$0xff] %vm128, %v423
  %428 = vst.msk [vmem:[#allocation3 + $0x10] sm:$0xff] %vm128, %v424
  %429 = vst.msk [vmem:[#allocation3 + $0x18] sm:$0xff] %vm128, %v425
  %v430 = vld [vmem:[#allocation2 + $0x1] sm:$0xff]
  %v431 = vld [vmem:[#allocation2 + $0x9] sm:$0xff]
  %v432 = vld [vmem:[#allocation2 + $0x11] sm:$0xff]
  %v433 = vld [vmem:[#allocation2 + $0x19] sm:$0xff]
  %438 = vrot.lane.b32.xlu0 %v430, 32
  %v439 = vpop.permute.xlu0 %438
  %440 = vrot.lane.b32.xlu0 %v431, 32
  %v441 = vpop.permute.xlu0 %440
  %442 = vrot.lane.b32.xlu0 %v432, 32
  %v443 = vpop.permute.xlu0 %442
  %444 = vrot.lane.b32.xlu0 %v433, 32
  %v445 = vpop.permute.xlu0 %444
  %450 = vst.msk [vmem:[#allocation3] sm:$0xff] %vm165, %v439
  %451 = vst.msk [vmem:[#allocation3 + $0x8] sm:$0xff] %vm165, %v441
  %452 = vst.msk [vmem:[#allocation3 + $0x10] sm:$0xff] %vm165, %v443
  %453 = vst.msk [vmem:[#allocation3 + $0x18] sm:$0xff] %vm165, %v445
  %v454 = vld [vmem:[#allocation2 + $0x2] sm:$0xff]
  %v455 = vld [vmem:[#allocation2 + $0xa] sm:$0xff]
  %v456 = vld [vmem:[#allocation2 + $0x12] sm:$0xff]
  %v457 = vld [vmem:[#allocation2 + $0x1a] sm:$0xff]
  %462 = vrot.lane.b32.xlu0 %v454, 64
  %v463 = vpop.permute.xlu0 %462
  %464 = vrot.lane.b32.xlu0 %v455, 64
  %v465 = vpop.permute.xlu0 %464
  %466 = vrot.lane.b32.xlu0 %v456, 64
  %v467 = vpop.permute.xlu0 %466
  %468 = vrot.lane.b32.xlu0 %v457, 64
  %v469 = vpop.permute.xlu0 %468
  %474 = vst.msk [vmem:[#allocation3] sm:$0xff] %vm190, %v463
  %475 = vst.msk [vmem:[#allocation3 + $0x8] sm:$0xff] %vm190, %v465
  %476 = vst.msk [vmem:[#allocation3 + $0x10] sm:$0xff] %vm190, %v467
  %477 = vst.msk [vmem:[#allocation3 + $0x18] sm:$0xff] %vm190, %v469
  %v478 = vld [vmem:[%s125] sm:$0xff]
  %v479 = vld [vmem:[%s125 + $0x8] sm:$0xff]
  %v480 = vld [vmem:[%s125 + $0x10] sm:$0xff]
  %v481 = vld [vmem:[%s125 + $0x18] sm:$0xff]
  %482 = vst.msk [vmem:[#allocation3 + $0x20] sm:$0xff] %vm128, %v478
  %483 = vst.msk [vmem:[#allocation3 + $0x28] sm:$0xff] %vm128, %v479
  %484 = vst.msk [vmem:[#allocation3 + $0x30] sm:$0xff] %vm128, %v480
  %485 = vst.msk [vmem:[#allocation3 + $0x38] sm:$0xff] %vm128, %v481
  %v486 = vld [vmem:[%s125 + $0x1] sm:$0xff]
  %v487 = vld [vmem:[%s125 + $0x9] sm:$0xff]
  %v488 = vld [vmem:[%s125 + $0x11] sm:$0xff]
  %v489 = vld [vmem:[%s125 + $0x19] sm:$0xff]
  %494 = vrot.lane.b32.xlu0 %v486, 32
  %v495 = vpop.permute.xlu0 %494
  %496 = vrot.lane.b32.xlu0 %v487, 32
  %v497 = vpop.permute.xlu0 %496
  %498 = vrot.lane.b32.xlu0 %v488, 32
  %v499 = vpop.permute.xlu0 %498
  %500 = vrot.lane.b32.xlu0 %v489, 32
  %v501 = vpop.permute.xlu0 %500
  %506 = vst.msk [vmem:[#allocation3 + $0x20] sm:$0xff] %vm165, %v495
  %507 = vst.msk [vmem:[#allocation3 + $0x28] sm:$0xff] %vm165, %v497
  %508 = vst.msk [vmem:[#allocation3 + $0x30] sm:$0xff] %vm165, %v499
  %509 = vst.msk [vmem:[#allocation3 + $0x38] sm:$0xff] %vm165, %v501
  %v510 = vld [vmem:[%s125 + $0x2] sm:$0xff]
  %v511 = vld [vmem:[%s125 + $0xa] sm:$0xff]
  %v512 = vld [vmem:[%s125 + $0x12] sm:$0xff]
  %v513 = vld [vmem:[%s125 + $0x1a] sm:$0xff]
  %518 = vrot.lane.b32.xlu0 %v510, 64
  %v519 = vpop.permute.xlu0 %518
  %520 = vrot.lane.b32.xlu0 %v511, 64
  %v521 = vpop.permute.xlu0 %520
  %522 = vrot.lane.b32.xlu0 %v512, 64
  %v523 = vpop.permute.xlu0 %522
  %524 = vrot.lane.b32.xlu0 %v513, 64
  %v525 = vpop.permute.xlu0 %524
  %530 = vst.msk [vmem:[#allocation3 + $0x20] sm:$0xff] %vm190, %v519
  %531 = vst.msk [vmem:[#allocation3 + $0x28] sm:$0xff] %vm190, %v521
  %532 = vst.msk [vmem:[#allocation3 + $0x30] sm:$0xff] %vm190, %v523
  %533 = vst.msk [vmem:[#allocation3 + $0x38] sm:$0xff] %vm190, %v525
  %s534 = scalar_lea.vmem %s3, 96
  %v535 = vld [vmem:[%s534] sm:$0xff]
  %v536 = vld [vmem:[%s534 + $0x8] sm:$0xff]
  %v537 = vld [vmem:[%s534 + $0x10] sm:$0xff]
  %v538 = vld [vmem:[%s534 + $0x18] sm:$0xff]
  %v539 = vld [vmem:[%s534 + $0x20] sm:$0xff]
  %v540 = vld [vmem:[%s534 + $0x28] sm:$0xff]
  %v541 = vld [vmem:[%s534 + $0x30] sm:$0xff]
  %v542 = vld [vmem:[%s534 + $0x38] sm:$0xff]
  %v543 = vld [vmem:[%s534 + $0x40] sm:$0xff]
  %v544 = vld [vmem:[%s534 + $0x48] sm:$0xff]
  %v545 = vld [vmem:[%s534 + $0x50] sm:$0xff]
  %v546 = vld [vmem:[%s534 + $0x58] sm:$0xff]
  %v547 = vld [vmem:[%s4 + $0x1] sm:$0x1]
  %v548 = vld [vmem:[#allocation3] sm:$0xff]
  %v549 = vld [vmem:[#allocation3 + $0x8] sm:$0xff]
  %v550 = vld [vmem:[#allocation3 + $0x10] sm:$0xff]
  %v551 = vld [vmem:[#allocation3 + $0x18] sm:$0xff]
  %v552 = vld [vmem:[#allocation3 + $0x20] sm:$0xff]
  %v553 = vld [vmem:[#allocation3 + $0x28] sm:$0xff]
  %v554 = vld [vmem:[#allocation3 + $0x30] sm:$0xff]
  %v555 = vld [vmem:[#allocation3 + $0x38] sm:$0xff]
  %v556 = vlaneseq
  %v557 = vshrl.u32 %v556, 7
  %v558 = vsub.s32 0, %v557
  %v559 = vrot.slane %v547, %v558
  %v561 = vsel %vm276, %v548, 0
  %v564 = vsel %vm276, %v549, 0
  %v567 = vsel %vm276, %v550, 0
  %v570 = vsel %vm276, %v551, 0
  %v573 = vsel %vm276, %v552, 0
  %v576 = vsel %vm276, %v553, 0
  %v579 = vsel %vm276, %v554, 0
  %v582 = vsel %vm276, %v555, 0
  %584 = vmatprep.subr.mxu0 0.0
  %585 = vmatpush1.msra.mxu0 %v535
  %586 = vmatprep.subr.mxu0 0.0
  %587 = vmatpush1.msra.mxu0 %v536
  %588 = vmatprep.subr.mxu0 0.0
  %589 = vmatpush1.msra.mxu0 %v537
  %590 = vmatprep.subr.mxu0 0.0
  %591 = vmatpush1.msra.mxu0 %v538
  %592 = vmatprep.subr.mxu0 0.0
  %593 = vmatpush1.msra.mxu0 %v539
  %594 = vmatprep.subr.mxu0 0.0
  %595 = vmatpush1.msra.mxu0 %v540
  %596 = vmatprep.subr.mxu0 0.0
  %597 = vmatpush1.msra.mxu0 %v541
  %598 = vmatprep.subr.mxu0 0.0
  %599 = vmatpush1.msra.mxu0 %v542
  %600 = vmatprep.subr.mxu0 0.0
  %601 = vmatpush1.msra.mxu0 %v543
  %602 = vmatprep.subr.mxu0 0.0
  %603 = vmatpush1.msra.mxu0 %v544
  %604 = vmatprep.subr.mxu0 0.0
  %605 = vmatpush1.msra.mxu0 %v545
  %606 = vmatprep.subr.mxu0 0.0
  %607 = vmatpush1.msra.mxu0 %v546
  %608 = vmatprep.subr.mxu0 0.0
  %609 = vmatpush1.msra.mxu0 0.0
  %610 = vmatprep.subr.mxu0 0.0
  %611 = vmatpush1.msra.mxu0 0.0
  %612 = vmatprep.subr.mxu0 0.0
  %613 = vmatpush1.msra.mxu0 0.0
  %614 = vmatprep.subr.mxu0 0.0
  %615 = vmatpush1.msra.mxu0 0.0
  %616 = vmatprep.subr.mxu0 0.0
  %617 = vmatpush1.msra.mxu0 0.0
  %618 = vmatprep.subr.mxu0 0.0
  %619 = vmatpush1.msra.mxu0 0.0
  %620 = vmatprep.subr.mxu0 0.0
  %621 = vmatpush1.msra.mxu0 0.0
  %622 = vmatprep.subr.mxu0 0.0
  %623 = vmatpush1.msra.mxu0 0.0
  %624 = vmatprep.subr.mxu0 0.0
  %625 = vmatpush1.msra.mxu0 0.0
  %626 = vmatprep.subr.mxu0 0.0
  %627 = vmatpush1.msra.mxu0 0.0
  %628 = vmatprep.subr.mxu0 0.0
  %629 = vmatpush1.msra.mxu0 0.0
  %630 = vmatprep.subr.mxu0 0.0
  %631 = vmatpush1.msra.mxu0 0.0
  %632 = vmatprep.subr.mxu0 0.0
  %633 = vmatpush1.msra.mxu0 0.0
  %634 = vmatprep.subr.mxu0 0.0
  %635 = vmatpush1.msra.mxu0 0.0
  %636 = vmatprep.subr.mxu0 0.0
  %637 = vmatpush1.msra.mxu0 0.0
  %638 = vmatprep.subr.mxu0 0.0
  %639 = vmatpush1.msra.mxu0 0.0
  %640 = vmatprep.subr.mxu0 0.0
  %641 = vmatpush1.msra.mxu0 0.0
  %642 = vmatprep.subr.mxu0 0.0
  %643 = vmatpush1.msra.mxu0 0.0
  %644 = vmatprep.subr.mxu0 0.0
  %645 = vmatpush1.msra.mxu0 0.0
  %646 = vmatprep.subr.mxu0 0.0
  %647 = vmatpush1.msra.mxu0 0.0
  %648 = vmatprep.mubr.f32.mxu0 0.0
  %649 = vmatmul.mubr.f32.gmra.mrb[0].mxu0 %v561
  %v650 = vpop.f32.mrb[0].mxu0
  %v651 = vadd.f32 %v559, %v650
  %v652 = vpop.f32.mrb[0].mxu0
  %653 = vmatprep.mubr.f32.mxu0 0.0
  %654 = vmatmul.mubr.f32.gmra.mrb[0].mxu0 %v564
  %v655 = vpop.f32.mrb[0].mxu0
  %v656 = vadd.f32 %v559, %v655
  %v657 = vpop.f32.mrb[0].mxu0
  %658 = vmatprep.mubr.f32.mxu0 0.0
  %659 = vmatmul.mubr.f32.gmra.mrb[0].mxu0 %v567
  %v660 = vpop.f32.mrb[0].mxu0
  %v661 = vadd.f32 %v559, %v660
  %v662 = vpop.f32.mrb[0].mxu0
  %663 = vmatprep.mubr.f32.mxu0 0.0
  %664 = vmatmul.mubr.f32.gmra.mrb[0].mxu0 %v570
  %v665 = vpop.f32.mrb[0].mxu0
  %v666 = vadd.f32 %v559, %v665
  %v667 = vpop.f32.mrb[0].mxu0
  %668 = vmatprep.mubr.f32.mxu0 0.0
  %669 = vmatmul.mubr.f32.gmra.mrb[0].mxu0 %v573
  %v670 = vpop.f32.mrb[0].mxu0
  %v671 = vadd.f32 %v559, %v670
  %v672 = vpop.f32.mrb[0].mxu0
  %673 = vmatprep.mubr.f32.mxu0 0.0
  %674 = vmatmul.mubr.f32.gmra.mrb[0].mxu0 %v576
  %v675 = vpop.f32.mrb[0].mxu0
  %v676 = vadd.f32 %v559, %v675
  %v677 = vpop.f32.mrb[0].mxu0
  %678 = vmatprep.mubr.f32.mxu0 0.0
  %679 = vmatmul.mubr.f32.gmra.mrb[0].mxu0 %v579
  %v680 = vpop.f32.mrb[0].mxu0
  %v681 = vadd.f32 %v559, %v680
  %v682 = vpop.f32.mrb[0].mxu0
  %683 = vmatprep.mubr.f32.mxu0 0.0
  %684 = vmatmul.mubr.f32.gmra.mrb[0].mxu0 %v582
  %v685 = vpop.f32.mrb[0].mxu0
  %v686 = vadd.f32 %v559, %v685
  %v687 = vpop.f32.mrb[0].mxu0
  %688 = vdwg.mxu0
  %v689 = vadd.f32 %v651, %v114
  %v690 = vadd.f32 %v656, %v115
  %v691 = vadd.f32 %v661, %v116
  %v692 = vadd.f32 %v666, %v117
  %v693 = vadd.f32 %v671, %v118
  %v694 = vadd.f32 %v676, %v119
  %v695 = vadd.f32 %v681, %v120
  %v696 = vadd.f32 %v686, %v121
  %v697 = vmax.f32 %v689, 0.0
  %v698 = vmax.f32 %v690, 0.0
  %v699 = vmax.f32 %v691, 0.0
  %v700 = vmax.f32 %v692, 0.0
  %v701 = vmax.f32 %v693, 0.0
  %v702 = vmax.f32 %v694, 0.0
  %v703 = vmax.f32 %v695, 0.0
  %v704 = vmax.f32 %v696, 0.0
  %705 = vst.msk [vmem:[#allocation2 + $0x1] sm:$0xff] %vm128, %v697
  %706 = vst.msk [vmem:[#allocation2 + $0x9] sm:$0xff] %vm128, %v698
  %707 = vst.msk [vmem:[#allocation2 + $0x11] sm:$0xff] %vm128, %v699
  %708 = vst.msk [vmem:[#allocation2 + $0x19] sm:$0xff] %vm128, %v700
  %709 = vst.msk [vmem:[%s125 + $0x1] sm:$0xff] %vm128, %v701
  %710 = vst.msk [vmem:[%s125 + $0x9] sm:$0xff] %vm128, %v702
  %711 = vst.msk [vmem:[%s125 + $0x11] sm:$0xff] %vm128, %v703
  %712 = vst.msk [vmem:[%s125 + $0x19] sm:$0xff] %vm128, %v704
  %v713 = vld [vmem:[#allocation2] sm:$0xff]
  %v714 = vld [vmem:[#allocation2 + $0x8] sm:$0xff]
  %v715 = vld [vmem:[#allocation2 + $0x10] sm:$0xff]
  %v716 = vld [vmem:[#allocation2 + $0x18] sm:$0xff]
  %717 = vst.msk [vmem:[#allocation3] sm:$0xff] %vm128, %v713
  %718 = vst.msk [vmem:[#allocation3 + $0x8] sm:$0xff] %vm128, %v714
  %719 = vst.msk [vmem:[#allocation3 + $0x10] sm:$0xff] %vm128, %v715
  %720 = vst.msk [vmem:[#allocation3 + $0x18] sm:$0xff] %vm128, %v716
  %v721 = vld [vmem:[#allocation2 + $0x1] sm:$0xff]
  %v722 = vld [vmem:[#allocation2 + $0x9] sm:$0xff]
  %v723 = vld [vmem:[#allocation2 + $0x11] sm:$0xff]
  %v724 = vld [vmem:[#allocation2 + $0x19] sm:$0xff]
  %729 = vrot.lane.b32.xlu0 %v721, 32
  %v730 = vpop.permute.xlu0 %729
  %731 = vrot.lane.b32.xlu0 %v722, 32
  %v732 = vpop.permute.xlu0 %731
  %733 = vrot.lane.b32.xlu0 %v723, 32
  %v734 = vpop.permute.xlu0 %733
  %735 = vrot.lane.b32.xlu0 %v724, 32
  %v736 = vpop.permute.xlu0 %735
  %741 = vst.msk [vmem:[#allocation3] sm:$0xff] %vm165, %v730
  %742 = vst.msk [vmem:[#allocation3 + $0x8] sm:$0xff] %vm165, %v732
  %743 = vst.msk [vmem:[#allocation3 + $0x10] sm:$0xff] %vm165, %v734
  %744 = vst.msk [vmem:[#allocation3 + $0x18] sm:$0xff] %vm165, %v736
  %v745 = vld [vmem:[#allocation2 + $0x2] sm:$0xff]
  %v746 = vld [vmem:[#allocation2 + $0xa] sm:$0xff]
  %v747 = vld [vmem:[#allocation2 + $0x12] sm:$0xff]
  %v748 = vld [vmem:[#allocation2 + $0x1a] sm:$0xff]
  %753 = vrot.lane.b32.xlu0 %v745, 64
  %v754 = vpop.permute.xlu0 %753
  %755 = vrot.lane.b32.xlu0 %v746, 64
  %v756 = vpop.permute.xlu0 %755
  %757 = vrot.lane.b32.xlu0 %v747, 64
  %v758 = vpop.permute.xlu0 %757
  %759 = vrot.lane.b32.xlu0 %v748, 64
  %v760 = vpop.permute.xlu0 %759
  %765 = vst.msk [vmem:[#allocation3] sm:$0xff] %vm190, %v754
  %766 = vst.msk [vmem:[#allocation3 + $0x8] sm:$0xff] %vm190, %v756
  %767 = vst.msk [vmem:[#allocation3 + $0x10] sm:$0xff] %vm190, %v758
  %768 = vst.msk [vmem:[#allocation3 + $0x18] sm:$0xff] %vm190, %v760
  %v769 = vld [vmem:[%s125] sm:$0xff]
  %v770 = vld [vmem:[%s125 + $0x8] sm:$0xff]
  %v771 = vld [vmem:[%s125 + $0x10] sm:$0xff]
  %v772 = vld [vmem:[%s125 + $0x18] sm:$0xff]
  %773 = vst.msk [vmem:[#allocation3 + $0x20] sm:$0xff] %vm128, %v769
  %774 = vst.msk [vmem:[#allocation3 + $0x28] sm:$0xff] %vm128, %v770
  %775 = vst.msk [vmem:[#allocation3 + $0x30] sm:$0xff] %vm128, %v771
  %776 = vst.msk [vmem:[#allocation3 + $0x38] sm:$0xff] %vm128, %v772
  %v777 = vld [vmem:[%s125 + $0x1] sm:$0xff]
  %v778 = vld [vmem:[%s125 + $0x9] sm:$0xff]
  %v779 = vld [vmem:[%s125 + $0x11] sm:$0xff]
  %v780 = vld [vmem:[%s125 + $0x19] sm:$0xff]
  %785 = vrot.lane.b32.xlu0 %v777, 32
  %v786 = vpop.permute.xlu0 %785
  %787 = vrot.lane.b32.xlu0 %v778, 32
  %v788 = vpop.permute.xlu0 %787
  %789 = vrot.lane.b32.xlu0 %v779, 32
  %v790 = vpop.permute.xlu0 %789
  %791 = vrot.lane.b32.xlu0 %v780, 32
  %v792 = vpop.permute.xlu0 %791
  %797 = vst.msk [vmem:[#allocation3 + $0x20] sm:$0xff] %vm165, %v786
  %798 = vst.msk [vmem:[#allocation3 + $0x28] sm:$0xff] %vm165, %v788
  %799 = vst.msk [vmem:[#allocation3 + $0x30] sm:$0xff] %vm165, %v790
  %800 = vst.msk [vmem:[#allocation3 + $0x38] sm:$0xff] %vm165, %v792
  %v801 = vld [vmem:[%s125 + $0x2] sm:$0xff]
  %v802 = vld [vmem:[%s125 + $0xa] sm:$0xff]
  %v803 = vld [vmem:[%s125 + $0x12] sm:$0xff]
  %v804 = vld [vmem:[%s125 + $0x1a] sm:$0xff]
  %809 = vrot.lane.b32.xlu0 %v801, 64
  %v810 = vpop.permute.xlu0 %809
  %811 = vrot.lane.b32.xlu0 %v802, 64
  %v812 = vpop.permute.xlu0 %811
  %813 = vrot.lane.b32.xlu0 %v803, 64
  %v814 = vpop.permute.xlu0 %813
  %815 = vrot.lane.b32.xlu0 %v804, 64
  %v816 = vpop.permute.xlu0 %815
  %821 = vst.msk [vmem:[#allocation3 + $0x20] sm:$0xff] %vm190, %v810
  %822 = vst.msk [vmem:[#allocation3 + $0x28] sm:$0xff] %vm190, %v812
  %823 = vst.msk [vmem:[#allocation3 + $0x30] sm:$0xff] %vm190, %v814
  %824 = vst.msk [vmem:[#allocation3 + $0x38] sm:$0xff] %vm190, %v816
  %s825 = scalar_lea.vmem %s3, 192
  %v826 = vld [vmem:[%s825] sm:$0xff]
  %v827 = vld [vmem:[%s825 + $0x8] sm:$0xff]
  %v828 = vld [vmem:[%s825 + $0x10] sm:$0xff]
  %v829 = vld [vmem:[%s825 + $0x18] sm:$0xff]
  %v830 = vld [vmem:[%s825 + $0x20] sm:$0xff]
  %v831 = vld [vmem:[%s825 + $0x28] sm:$0xff]
  %v832 = vld [vmem:[%s825 + $0x30] sm:$0xff]
  %v833 = vld [vmem:[%s825 + $0x38] sm:$0xff]
  %v834 = vld [vmem:[%s825 + $0x40] sm:$0xff]
  %v835 = vld [vmem:[%s825 + $0x48] sm:$0xff]
  %v836 = vld [vmem:[%s825 + $0x50] sm:$0xff]
  %v837 = vld [vmem:[%s825 + $0x58] sm:$0xff]
  %v838 = vld [vmem:[%s4 + $0x2] sm:$0x1]
  %v839 = vld [vmem:[#allocation3] sm:$0xff]
  %v840 = vld [vmem:[#allocation3 + $0x8] sm:$0xff]
  %v841 = vld [vmem:[#allocation3 + $0x10] sm:$0xff]
  %v842 = vld [vmem:[#allocation3 + $0x18] sm:$0xff]
  %v843 = vld [vmem:[#allocation3 + $0x20] sm:$0xff]
  %v844 = vld [vmem:[#allocation3 + $0x28] sm:$0xff]
  %v845 = vld [vmem:[#allocation3 + $0x30] sm:$0xff]
  %v846 = vld [vmem:[#allocation3 + $0x38] sm:$0xff]
  %v847 = vlaneseq
  %v848 = vshrl.u32 %v847, 7
  %v849 = vsub.s32 0, %v848
  %v850 = vrot.slane %v838, %v849
  %v852 = vsel %vm276, %v839, 0
  %v855 = vsel %vm276, %v840, 0
  %v858 = vsel %vm276, %v841, 0
  %v861 = vsel %vm276, %v842, 0
  %v864 = vsel %vm276, %v843, 0
  %v867 = vsel %vm276, %v844, 0
  %v870 = vsel %vm276, %v845, 0
  %v873 = vsel %vm276, %v846, 0
  %875 = vmatprep.subr.mxu0 0.0
  %876 = vmatpush1.msra.mxu0 %v826
  %877 = vmatprep.subr.mxu0 0.0
  %878 = vmatpush1.msra.mxu0 %v827
  %879 = vmatprep.subr.mxu0 0.0
  %880 = vmatpush1.msra.mxu0 %v828
  %881 = vmatprep.subr.mxu0 0.0
  %882 = vmatpush1.msra.mxu0 %v829
  %883 = vmatprep.subr.mxu0 0.0
  %884 = vmatpush1.msra.mxu0 %v830
  %885 = vmatprep.subr.mxu0 0.0
  %886 = vmatpush1.msra.mxu0 %v831
  %887 = vmatprep.subr.mxu0 0.0
  %888 = vmatpush1.msra.mxu0 %v832
  %889 = vmatprep.subr.mxu0 0.0
  %890 = vmatpush1.msra.mxu0 %v833
  %891 = vmatprep.subr.mxu0 0.0
  %892 = vmatpush1.msra.mxu0 %v834
  %893 = vmatprep.subr.mxu0 0.0
  %894 = vmatpush1.msra.mxu0 %v835
  %895 = vmatprep.subr.mxu0 0.0
  %896 = vmatpush1.msra.mxu0 %v836
  %897 = vmatprep.subr.mxu0 0.0
  %898 = vmatpush1.msra.mxu0 %v837
  %899 = vmatprep.subr.mxu0 0.0
  %900 = vmatpush1.msra.mxu0 0.0
  %901 = vmatprep.subr.mxu0 0.0
  %902 = vmatpush1.msra.mxu0 0.0
  %903 = vmatprep.subr.mxu0 0.0
  %904 = vmatpush1.msra.mxu0 0.0
  %905 = vmatprep.subr.mxu0 0.0
  %906 = vmatpush1.msra.mxu0 0.0
  %907 = vmatprep.subr.mxu0 0.0
  %908 = vmatpush1.msra.mxu0 0.0
  %909 = vmatprep.subr.mxu0 0.0
  %910 = vmatpush1.msra.mxu0 0.0
  %911 = vmatprep.subr.mxu0 0.0
  %912 = vmatpush1.msra.mxu0 0.0
  %913 = vmatprep.subr.mxu0 0.0
  %914 = vmatpush1.msra.mxu0 0.0
  %915 = vmatprep.subr.mxu0 0.0
  %916 = vmatpush1.msra.mxu0 0.0
  %917 = vmatprep.subr.mxu0 0.0
  %918 = vmatpush1.msra.mxu0 0.0
  %919 = vmatprep.subr.mxu0 0.0
  %920 = vmatpush1.msra.mxu0 0.0
  %921 = vmatprep.subr.mxu0 0.0
  %922 = vmatpush1.msra.mxu0 0.0
  %923 = vmatprep.subr.mxu0 0.0
  %924 = vmatpush1.msra.mxu0 0.0
  %925 = vmatprep.subr.mxu0 0.0
  %926 = vmatpush1.msra.mxu0 0.0
  %927 = vmatprep.subr.mxu0 0.0
  %928 = vmatpush1.msra.mxu0 0.0
  %929 = vmatprep.subr.mxu0 0.0
  %930 = vmatpush1.msra.mxu0 0.0
  %931 = vmatprep.subr.mxu0 0.0
  %932 = vmatpush1.msra.mxu0 0.0
  %933 = vmatprep.subr.mxu0 0.0
  %934 = vmatpush1.msra.mxu0 0.0
  %935 = vmatprep.subr.mxu0 0.0
  %936 = vmatpush1.msra.mxu0 0.0
  %937 = vmatprep.subr.mxu0 0.0
  %938 = vmatpush1.msra.mxu0 0.0
  %939 = vmatprep.mubr.f32.mxu0 0.0
  %940 = vmatmul.mubr.f32.gmra.mrb[0].mxu0 %v852
  %v941 = vpop.f32.mrb[0].mxu0
  %v942 = vadd.f32 %v850, %v941
  %v943 = vpop.f32.mrb[0].mxu0
  %944 = vmatprep.mubr.f32.mxu0 0.0
  %945 = vmatmul.mubr.f32.gmra.mrb[0].mxu0 %v855
  %v946 = vpop.f32.mrb[0].mxu0
  %v947 = vadd.f32 %v850, %v946
  %v948 = vpop.f32.mrb[0].mxu0
  %949 = vmatprep.mubr.f32.mxu0 0.0
  %950 = vmatmul.mubr.f32.gmra.mrb[0].mxu0 %v858
  %v951 = vpop.f32.mrb[0].mxu0
  %v952 = vadd.f32 %v850, %v951
  %v953 = vpop.f32.mrb[0].mxu0
  %954 = vmatprep.mubr.f32.mxu0 0.0
  %955 = vmatmul.mubr.f32.gmra.mrb[0].mxu0 %v861
  %v956 = vpop.f32.mrb[0].mxu0
  %v957 = vadd.f32 %v850, %v956
  %v958 = vpop.f32.mrb[0].mxu0
  %959 = vmatprep.mubr.f32.mxu0 0.0
  %960 = vmatmul.mubr.f32.gmra.mrb[0].mxu0 %v864
  %v961 = vpop.f32.mrb[0].mxu0
  %v962 = vadd.f32 %v850, %v961
  %v963 = vpop.f32.mrb[0].mxu0
  %964 = vmatprep.mubr.f32.mxu0 0.0
  %965 = vmatmul.mubr.f32.gmra.mrb[0].mxu0 %v867
  %v966 = vpop.f32.mrb[0].mxu0
  %v967 = vadd.f32 %v850, %v966
  %v968 = vpop.f32.mrb[0].mxu0
  %969 = vmatprep.mubr.f32.mxu0 0.0
  %970 = vmatmul.mubr.f32.gmra.mrb[0].mxu0 %v870
  %v971 = vpop.f32.mrb[0].mxu0
  %v972 = vadd.f32 %v850, %v971
  %v973 = vpop.f32.mrb[0].mxu0
  %974 = vmatprep.mubr.f32.mxu0 0.0
  %975 = vmatmul.mubr.f32.gmra.mrb[0].mxu0 %v873
  %v976 = vpop.f32.mrb[0].mxu0
  %v977 = vadd.f32 %v850, %v976
  %v978 = vpop.f32.mrb[0].mxu0
  %979 = vdwg.mxu0
  %v980 = vmax.f32 %v942, 0.0
  %v981 = vmax.f32 %v947, 0.0
  %v982 = vmax.f32 %v952, 0.0
  %v983 = vmax.f32 %v957, 0.0
  %v984 = vmax.f32 %v962, 0.0
  %v985 = vmax.f32 %v967, 0.0
  %v986 = vmax.f32 %v972, 0.0
  %v987 = vmax.f32 %v977, 0.0
  %988 = vst.msk [vmem:[#allocation2 + $0x1] sm:$0xff] %vm128, %v980
  %989 = vst.msk [vmem:[#allocation2 + $0x9] sm:$0xff] %vm128, %v981
  %990 = vst.msk [vmem:[#allocation2 + $0x11] sm:$0xff] %vm128, %v982
  %991 = vst.msk [vmem:[#allocation2 + $0x19] sm:$0xff] %vm128, %v983
  %992 = vst.msk [vmem:[%s125 + $0x1] sm:$0xff] %vm128, %v984
  %993 = vst.msk [vmem:[%s125 + $0x9] sm:$0xff] %vm128, %v985
  %994 = vst.msk [vmem:[%s125 + $0x11] sm:$0xff] %vm128, %v986
  %995 = vst.msk [vmem:[%s125 + $0x19] sm:$0xff] %vm128, %v987
  %v996 = vld [vmem:[#allocation2] sm:$0xff]
  %v997 = vld [vmem:[#allocation2 + $0x8] sm:$0xff]
  %v998 = vld [vmem:[#allocation2 + $0x10] sm:$0xff]
  %v999 = vld [vmem:[#allocation2 + $0x18] sm:$0xff]
  %1000 = vst.msk [vmem:[#allocation3] sm:$0xff] %vm128, %v996
  %1001 = vst.msk [vmem:[#allocation3 + $0x8] sm:$0xff] %vm128, %v997
  %1002 = vst.msk [vmem:[#allocation3 + $0x10] sm:$0xff] %vm128, %v998
  %1003 = vst.msk [vmem:[#allocation3 + $0x18] sm:$0xff] %vm128, %v999
  %v1004 = vld [vmem:[#allocation2 + $0x1] sm:$0xff]
  %v1005 = vld [vmem:[#allocation2 + $0x9] sm:$0xff]
  %v1006 = vld [vmem:[#allocation2 + $0x11] sm:$0xff]
  %v1007 = vld [vmem:[#allocation2 + $0x19] sm:$0xff]
  %1012 = vrot.lane.b32.xlu0 %v1004, 32
  %v1013 = vpop.permute.xlu0 %1012
  %1014 = vrot.lane.b32.xlu0 %v1005, 32
  %v1015 = vpop.permute.xlu0 %1014
  %1016 = vrot.lane.b32.xlu0 %v1006, 32
  %v1017 = vpop.permute.xlu0 %1016
  %1018 = vrot.lane.b32.xlu0 %v1007, 32
  %v1019 = vpop.permute.xlu0 %1018
  %1024 = vst.msk [vmem:[#allocation3] sm:$0xff] %vm165, %v1013
  %1025 = vst.msk [vmem:[#allocation3 + $0x8] sm:$0xff] %vm165, %v1015
  %1026 = vst.msk [vmem:[#allocation3 + $0x10] sm:$0xff] %vm165, %v1017
  %1027 = vst.msk [vmem:[#allocation3 + $0x18] sm:$0xff] %vm165, %v1019
  %v1028 = vld [vmem:[#allocation2 + $0x2] sm:$0xff]
  %v1029 = vld [vmem:[#allocation2 + $0xa] sm:$0xff]
  %v1030 = vld [vmem:[#allocation2 + $0x12] sm:$0xff]
  %v1031 = vld [vmem:[#allocation2 + $0x1a] sm:$0xff]
  %1036 = vrot.lane.b32.xlu0 %v1028, 64
  %v1037 = vpop.permute.xlu0 %1036
  %1038 = vrot.lane.b32.xlu0 %v1029, 64
  %v1039 = vpop.permute.xlu0 %1038
  %1040 = vrot.lane.b32.xlu0 %v1030, 64
  %v1041 = vpop.permute.xlu0 %1040
  %1042 = vrot.lane.b32.xlu0 %v1031, 64
  %v1043 = vpop.permute.xlu0 %1042
  %1048 = vst.msk [vmem:[#allocation3] sm:$0xff] %vm190, %v1037
  %1049 = vst.msk [vmem:[#allocation3 + $0x8] sm:$0xff] %vm190, %v1039
  %1050 = vst.msk [vmem:[#allocation3 + $0x10] sm:$0xff] %vm190, %v1041
  %1051 = vst.msk [vmem:[#allocation3 + $0x18] sm:$0xff] %vm190, %v1043
  %v1052 = vld [vmem:[%s125] sm:$0xff]
  %v1053 = vld [vmem:[%s125 + $0x8] sm:$0xff]
  %v1054 = vld [vmem:[%s125 + $0x10] sm:$0xff]
  %v1055 = vld [vmem:[%s125 + $0x18] sm:$0xff]
  %1056 = vst.msk [vmem:[#allocation3 + $0x20] sm:$0xff] %vm128, %v1052
  %1057 = vst.msk [vmem:[#allocation3 + $0x28] sm:$0xff] %vm128, %v1053
  %1058 = vst.msk [vmem:[#allocation3 + $0x30] sm:$0xff] %vm128, %v1054
  %1059 = vst.msk [vmem:[#allocation3 + $0x38] sm:$0xff] %vm128, %v1055
  %v1060 = vld [vmem:[%s125 + $0x1] sm:$0xff]
  %v1061 = vld [vmem:[%s125 + $0x9] sm:$0xff]
  %v1062 = vld [vmem:[%s125 + $0x11] sm:$0xff]
  %v1063 = vld [vmem:[%s125 + $0x19] sm:$0xff]
  %1068 = vrot.lane.b32.xlu0 %v1060, 32
  %v1069 = vpop.permute.xlu0 %1068
  %1070 = vrot.lane.b32.xlu0 %v1061, 32
  %v1071 = vpop.permute.xlu0 %1070
  %1072 = vrot.lane.b32.xlu0 %v1062, 32
  %v1073 = vpop.permute.xlu0 %1072
  %1074 = vrot.lane.b32.xlu0 %v1063, 32
  %v1075 = vpop.permute.xlu0 %1074
  %1080 = vst.msk [vmem:[#allocation3 + $0x20] sm:$0xff] %vm165, %v1069
  %1081 = vst.msk [vmem:[#allocation3 + $0x28] sm:$0xff] %vm165, %v1071
  %1082 = vst.msk [vmem:[#allocation3 + $0x30] sm:$0xff] %vm165, %v1073
  %1083 = vst.msk [vmem:[#allocation3 + $0x38] sm:$0xff] %vm165, %v1075
  %v1084 = vld [vmem:[%s125 + $0x2] sm:$0xff]
  %v1085 = vld [vmem:[%s125 + $0xa] sm:$0xff]
  %v1086 = vld [vmem:[%s125 + $0x12] sm:$0xff]
  %v1087 = vld [vmem:[%s125 + $0x1a] sm:$0xff]
  %1092 = vrot.lane.b32.xlu0 %v1084, 64
  %v1093 = vpop.permute.xlu0 %1092
  %1094 = vrot.lane.b32.xlu0 %v1085, 64
  %v1095 = vpop.permute.xlu0 %1094
  %1096 = vrot.lane.b32.xlu0 %v1086, 64
  %v1097 = vpop.permute.xlu0 %1096
  %1098 = vrot.lane.b32.xlu0 %v1087, 64
  %v1099 = vpop.permute.xlu0 %1098
  %1104 = vst.msk [vmem:[#allocation3 + $0x20] sm:$0xff] %vm190, %v1093
  %1105 = vst.msk [vmem:[#allocation3 + $0x28] sm:$0xff] %vm190, %v1095
  %1106 = vst.msk [vmem:[#allocation3 + $0x30] sm:$0xff] %vm190, %v1097
  %1107 = vst.msk [vmem:[#allocation3 + $0x38] sm:$0xff] %vm190, %v1099
  %s1108 = scalar_lea.vmem %s3, 288
  %v1109 = vld [vmem:[%s1108] sm:$0xff]
  %v1110 = vld [vmem:[%s1108 + $0x8] sm:$0xff]
  %v1111 = vld [vmem:[%s1108 + $0x10] sm:$0xff]
  %v1112 = vld [vmem:[%s1108 + $0x18] sm:$0xff]
  %v1113 = vld [vmem:[%s1108 + $0x20] sm:$0xff]
  %v1114 = vld [vmem:[%s1108 + $0x28] sm:$0xff]
  %v1115 = vld [vmem:[%s1108 + $0x30] sm:$0xff]
  %v1116 = vld [vmem:[%s1108 + $0x38] sm:$0xff]
  %v1117 = vld [vmem:[%s1108 + $0x40] sm:$0xff]
  %v1118 = vld [vmem:[%s1108 + $0x48] sm:$0xff]
  %v1119 = vld [vmem:[%s1108 + $0x50] sm:$0xff]
  %v1120 = vld [vmem:[%s1108 + $0x58] sm:$0xff]
  %v1121 = vld [vmem:[%s4 + $0x3] sm:$0x1]
  %v1122 = vld [vmem:[#allocation3] sm:$0xff]
  %v1123 = vld [vmem:[#allocation3 + $0x8] sm:$0xff]
  %v1124 = vld [vmem:[#allocation3 + $0x10] sm:$0xff]
  %v1125 = vld [vmem:[#allocation3 + $0x18] sm:$0xff]
  %v1126 = vld [vmem:[#allocation3 + $0x20] sm:$0xff]
  %v1127 = vld [vmem:[#allocation3 + $0x28] sm:$0xff]
  %v1128 = vld [vmem:[#allocation3 + $0x30] sm:$0xff]
  %v1129 = vld [vmem:[#allocation3 + $0x38] sm:$0xff]
  %v1130 = vlaneseq
  %v1131 = vshrl.u32 %v1130, 7
  %v1132 = vsub.s32 0, %v1131
  %v1133 = vrot.slane %v1121, %v1132
  %v1135 = vsel %vm276, %v1122, 0
  %v1138 = vsel %vm276, %v1123, 0
  %v1141 = vsel %vm276, %v1124, 0
  %v1144 = vsel %vm276, %v1125, 0
  %v1147 = vsel %vm276, %v1126, 0
  %v1150 = vsel %vm276, %v1127, 0
  %v1153 = vsel %vm276, %v1128, 0
  %v1156 = vsel %vm276, %v1129, 0
  %1158 = vmatprep.subr.mxu0 0.0
  %1159 = vmatpush1.msra.mxu0 %v1109
  %1160 = vmatprep.subr.mxu0 0.0
  %1161 = vmatpush1.msra.mxu0 %v1110
  %1162 = vmatprep.subr.mxu0 0.0
  %1163 = vmatpush1.msra.mxu0 %v1111
  %1164 = vmatprep.subr.mxu0 0.0
  %1165 = vmatpush1.msra.mxu0 %v1112
  %1166 = vmatprep.subr.mxu0 0.0
  %1167 = vmatpush1.msra.mxu0 %v1113
  %1168 = vmatprep.subr.mxu0 0.0
  %1169 = vmatpush1.msra.mxu0 %v1114
  %1170 = vmatprep.subr.mxu0 0.0
  %1171 = vmatpush1.msra.mxu0 %v1115
  %1172 = vmatprep.subr.mxu0 0.0
  %1173 = vmatpush1.msra.mxu0 %v1116
  %1174 = vmatprep.subr.mxu0 0.0
  %1175 = vmatpush1.msra.mxu0 %v1117
  %1176 = vmatprep.subr.mxu0 0.0
  %1177 = vmatpush1.msra.mxu0 %v1118
  %1178 = vmatprep.subr.mxu0 0.0
  %1179 = vmatpush1.msra.mxu0 %v1119
  %1180 = vmatprep.subr.mxu0 0.0
  %1181 = vmatpush1.msra.mxu0 %v1120
  %1182 = vmatprep.subr.mxu0 0.0
  %1183 = vmatpush1.msra.mxu0 0.0
  %1184 = vmatprep.subr.mxu0 0.0
  %1185 = vmatpush1.msra.mxu0 0.0
  %1186 = vmatprep.subr.mxu0 0.0
  %1187 = vmatpush1.msra.mxu0 0.0
  %1188 = vmatprep.subr.mxu0 0.0
  %1189 = vmatpush1.msra.mxu0 0.0
  %1190 = vmatprep.subr.mxu0 0.0
  %1191 = vmatpush1.msra.mxu0 0.0
  %1192 = vmatprep.subr.mxu0 0.0
  %1193 = vmatpush1.msra.mxu0 0.0
  %1194 = vmatprep.subr.mxu0 0.0
  %1195 = vmatpush1.msra.mxu0 0.0
  %1196 = vmatprep.subr.mxu0 0.0
  %1197 = vmatpush1.msra.mxu0 0.0
  %1198 = vmatprep.subr.mxu0 0.0
  %1199 = vmatpush1.msra.mxu0 0.0
  %1200 = vmatprep.subr.mxu0 0.0
  %1201 = vmatpush1.msra.mxu0 0.0
  %1202 = vmatprep.subr.mxu0 0.0
  %1203 = vmatpush1.msra.mxu0 0.0
  %1204 = vmatprep.subr.mxu0 0.0
  %1205 = vmatpush1.msra.mxu0 0.0
  %1206 = vmatprep.subr.mxu0 0.0
  %1207 = vmatpush1.msra.mxu0 0.0
  %1208 = vmatprep.subr.mxu0 0.0
  %1209 = vmatpush1.msra.mxu0 0.0
  %1210 = vmatprep.subr.mxu0 0.0
  %1211 = vmatpush1.msra.mxu0 0.0
  %1212 = vmatprep.subr.mxu0 0.0
  %1213 = vmatpush1.msra.mxu0 0.0
  %1214 = vmatprep.subr.mxu0 0.0
  %1215 = vmatpush1.msra.mxu0 0.0
  %1216 = vmatprep.subr.mxu0 0.0
  %1217 = vmatpush1.msra.mxu0 0.0
  %1218 = vmatprep.subr.mxu0 0.0
  %1219 = vmatpush1.msra.mxu0 0.0
  %1220 = vmatprep.subr.mxu0 0.0
  %1221 = vmatpush1.msra.mxu0 0.0
  %1222 = vmatprep.mubr.f32.mxu0 0.0
  %1223 = vmatmul.mubr.f32.gmra.mrb[0].mxu0 %v1135
  %v1224 = vpop.f32.mrb[0].mxu0
  %v1225 = vadd.f32 %v1133, %v1224
  %v1226 = vpop.f32.mrb[0].mxu0
  %1227 = vmatprep.mubr.f32.mxu0 0.0
  %1228 = vmatmul.mubr.f32.gmra.mrb[0].mxu0 %v1138
  %v1229 = vpop.f32.mrb[0].mxu0
  %v1230 = vadd.f32 %v1133, %v1229
  %v1231 = vpop.f32.mrb[0].mxu0
  %1232 = vmatprep.mubr.f32.mxu0 0.0
  %1233 = vmatmul.mubr.f32.gmra.mrb[0].mxu0 %v1141
  %v1234 = vpop.f32.mrb[0].mxu0
  %v1235 = vadd.f32 %v1133, %v1234
  %v1236 = vpop.f32.mrb[0].mxu0
  %1237 = vmatprep.mubr.f32.mxu0 0.0
  %1238 = vmatmul.mubr.f32.gmra.mrb[0].mxu0 %v1144
  %v1239 = vpop.f32.mrb[0].mxu0
  %v1240 = vadd.f32 %v1133, %v1239
  %v1241 = vpop.f32.mrb[0].mxu0
  %1242 = vmatprep.mubr.f32.mxu0 0.0
  %1243 = vmatmul.mubr.f32.gmra.mrb[0].mxu0 %v1147
  %v1244 = vpop.f32.mrb[0].mxu0
  %v1245 = vadd.f32 %v1133, %v1244
  %v1246 = vpop.f32.mrb[0].mxu0
  %1247 = vmatprep.mubr.f32.mxu0 0.0
  %1248 = vmatmul.mubr.f32.gmra.mrb[0].mxu0 %v1150
  %v1249 = vpop.f32.mrb[0].mxu0
  %v1250 = vadd.f32 %v1133, %v1249
  %v1251 = vpop.f32.mrb[0].mxu0
  %1252 = vmatprep.mubr.f32.mxu0 0.0
  %1253 = vmatmul.mubr.f32.gmra.mrb[0].mxu0 %v1153
  %v1254 = vpop.f32.mrb[0].mxu0
  %v1255 = vadd.f32 %v1133, %v1254
  %v1256 = vpop.f32.mrb[0].mxu0
  %1257 = vmatprep.mubr.f32.mxu0 0.0
  %1258 = vmatmul.mubr.f32.gmra.mrb[0].mxu0 %v1156
  %v1259 = vpop.f32.mrb[0].mxu0
  %v1260 = vadd.f32 %v1133, %v1259
  %v1261 = vpop.f32.mrb[0].mxu0
  %1262 = vdwg.mxu0
  %v1263 = vadd.f32 %v1225, %v697
  %v1264 = vadd.f32 %v1230, %v698
  %v1265 = vadd.f32 %v1235, %v699
  %v1266 = vadd.f32 %v1240, %v700
  %v1267 = vadd.f32 %v1245, %v701
  %v1268 = vadd.f32 %v1250, %v702
  %v1269 = vadd.f32 %v1255, %v703
  %v1270 = vadd.f32 %v1260, %v704
  %v1271 = vmax.f32 %v1263, 0.0
  %v1272 = vmax.f32 %v1264, 0.0
  %v1273 = vmax.f32 %v1265, 0.0
  %v1274 = vmax.f32 %v1266, 0.0
  %v1275 = vmax.f32 %v1267, 0.0
  %v1276 = vmax.f32 %v1268, 0.0
  %v1277 = vmax.f32 %v1269, 0.0
  %v1278 = vmax.f32 %v1270, 0.0
  %1279 = vst.msk [vmem:[#allocation2 + $0x1] sm:$0xff] %vm128, %v1271
  %1280 = vst.msk [vmem:[#allocation2 + $0x9] sm:$0xff] %vm128, %v1272
  %1281 = vst.msk [vmem:[#allocation2 + $0x11] sm:$0xff] %vm128, %v1273
  %1282 = vst.msk [vmem:[#allocation2 + $0x19] sm:$0xff] %vm128, %v1274
  %1283 = vst.msk [vmem:[%s125 + $0x1] sm:$0xff] %vm128, %v1275
  %1284 = vst.msk [vmem:[%s125 + $0x9] sm:$0xff] %vm128, %v1276
  %1285 = vst.msk [vmem:[%s125 + $0x11] sm:$0xff] %vm128, %v1277
  %1286 = vst.msk [vmem:[%s125 + $0x19] sm:$0xff] %vm128, %v1278
  %v1287 = vld [vmem:[#allocation2] sm:$0xff]
  %v1288 = vld [vmem:[#allocation2 + $0x8] sm:$0xff]
  %v1289 = vld [vmem:[#allocation2 + $0x10] sm:$0xff]
  %v1290 = vld [vmem:[#allocation2 + $0x18] sm:$0xff]
  %1291 = vst.msk [vmem:[#allocation3] sm:$0xff] %vm128, %v1287
  %1292 = vst.msk [vmem:[#allocation3 + $0x8] sm:$0xff] %vm128, %v1288
  %1293 = vst.msk [vmem:[#allocation3 + $0x10] sm:$0xff] %vm128, %v1289
  %1294 = vst.msk [vmem:[#allocation3 + $0x18] sm:$0xff] %vm128, %v1290
  %v1295 = vld [vmem:[#allocation2 + $0x1] sm:$0xff]
  %v1296 = vld [vmem:[#allocation2 + $0x9] sm:$0xff]
  %v1297 = vld [vmem:[#allocation2 + $0x11] sm:$0xff]
  %v1298 = vld [vmem:[#allocation2 + $0x19] sm:$0xff]
  %1303 = vrot.lane.b32.xlu0 %v1295, 32
  %v1304 = vpop.permute.xlu0 %1303
  %1305 = vrot.lane.b32.xlu0 %v1296, 32
  %v1306 = vpop.permute.xlu0 %1305
  %1307 = vrot.lane.b32.xlu0 %v1297, 32
  %v1308 = vpop.permute.xlu0 %1307
  %1309 = vrot.lane.b32.xlu0 %v1298, 32
  %v1310 = vpop.permute.xlu0 %1309
  %1315 = vst.msk [vmem:[#allocation3] sm:$0xff] %vm165, %v1304
  %1316 = vst.msk [vmem:[#allocation3 + $0x8] sm:$0xff] %vm165, %v1306
  %1317 = vst.msk [vmem:[#allocation3 + $0x10] sm:$0xff] %vm165, %v1308
  %1318 = vst.msk [vmem:[#allocation3 + $0x18] sm:$0xff] %vm165, %v1310
  %v1319 = vld [vmem:[#allocation2 + $0x2] sm:$0xff]
  %v1320 = vld [vmem:[#allocation2 + $0xa] sm:$0xff]
  %v1321 = vld [vmem:[#allocation2 + $0x12] sm:$0xff]
  %v1322 = vld [vmem:[#allocation2 + $0x1a] sm:$0xff]
  %1327 = vrot.lane.b32.xlu0 %v1319, 64
  %v1328 = vpop.permute.xlu0 %1327
  %1329 = vrot.lane.b32.xlu0 %v1320, 64
  %v1330 = vpop.permute.xlu0 %1329
  %1331 = vrot.lane.b32.xlu0 %v1321, 64
  %v1332 = vpop.permute.xlu0 %1331
  %1333 = vrot.lane.b32.xlu0 %v1322, 64
  %v1334 = vpop.permute.xlu0 %1333
  %1339 = vst.msk [vmem:[#allocation3] sm:$0xff] %vm190, %v1328
  %1340 = vst.msk [vmem:[#allocation3 + $0x8] sm:$0xff] %vm190, %v1330
  %1341 = vst.msk [vmem:[#allocation3 + $0x10] sm:$0xff] %vm190, %v1332
  %1342 = vst.msk [vmem:[#allocation3 + $0x18] sm:$0xff] %vm190, %v1334
  %v1343 = vld [vmem:[%s125] sm:$0xff]
  %v1344 = vld [vmem:[%s125 + $0x8] sm:$0xff]
  %v1345 = vld [vmem:[%s125 + $0x10] sm:$0xff]
  %v1346 = vld [vmem:[%s125 + $0x18] sm:$0xff]
  %1347 = vst.msk [vmem:[#allocation3 + $0x20] sm:$0xff] %vm128, %v1343
  %1348 = vst.msk [vmem:[#allocation3 + $0x28] sm:$0xff] %vm128, %v1344
  %1349 = vst.msk [vmem:[#allocation3 + $0x30] sm:$0xff] %vm128, %v1345
  %1350 = vst.msk [vmem:[#allocation3 + $0x38] sm:$0xff] %vm128, %v1346
  %v1351 = vld [vmem:[%s125 + $0x1] sm:$0xff]
  %v1352 = vld [vmem:[%s125 + $0x9] sm:$0xff]
  %v1353 = vld [vmem:[%s125 + $0x11] sm:$0xff]
  %v1354 = vld [vmem:[%s125 + $0x19] sm:$0xff]
  %1359 = vrot.lane.b32.xlu0 %v1351, 32
  %v1360 = vpop.permute.xlu0 %1359
  %1361 = vrot.lane.b32.xlu0 %v1352, 32
  %v1362 = vpop.permute.xlu0 %1361
  %1363 = vrot.lane.b32.xlu0 %v1353, 32
  %v1364 = vpop.permute.xlu0 %1363
  %1365 = vrot.lane.b32.xlu0 %v1354, 32
  %v1366 = vpop.permute.xlu0 %1365
  %1371 = vst.msk [vmem:[#allocation3 + $0x20] sm:$0xff] %vm165, %v1360
  %1372 = vst.msk [vmem:[#allocation3 + $0x28] sm:$0xff] %vm165, %v1362
  %1373 = vst.msk [vmem:[#allocation3 + $0x30] sm:$0xff] %vm165, %v1364
  %1374 = vst.msk [vmem:[#allocation3 + $0x38] sm:$0xff] %vm165, %v1366
  %v1375 = vld [vmem:[%s125 + $0x2] sm:$0xff]
  %v1376 = vld [vmem:[%s125 + $0xa] sm:$0xff]
  %v1377 = vld [vmem:[%s125 + $0x12] sm:$0xff]
  %v1378 = vld [vmem:[%s125 + $0x1a] sm:$0xff]
  %1383 = vrot.lane.b32.xlu0 %v1375, 64
  %v1384 = vpop.permute.xlu0 %1383
  %1385 = vrot.lane.b32.xlu0 %v1376, 64
  %v1386 = vpop.permute.xlu0 %1385
  %1387 = vrot.lane.b32.xlu0 %v1377, 64
  %v1388 = vpop.permute.xlu0 %1387
  %1389 = vrot.lane.b32.xlu0 %v1378, 64
  %v1390 = vpop.permute.xlu0 %1389
  %1395 = vst.msk [vmem:[#allocation3 + $0x20] sm:$0xff] %vm190, %v1384
  %1396 = vst.msk [vmem:[#allocation3 + $0x28] sm:$0xff] %vm190, %v1386
  %1397 = vst.msk [vmem:[#allocation3 + $0x30] sm:$0xff] %vm190, %v1388
  %1398 = vst.msk [vmem:[#allocation3 + $0x38] sm:$0xff] %vm190, %v1390
  %s1399 = scalar_lea.vmem %s3, 384
  %v1400 = vld [vmem:[%s1399] sm:$0xff]
  %v1401 = vld [vmem:[%s1399 + $0x8] sm:$0xff]
  %v1402 = vld [vmem:[%s1399 + $0x10] sm:$0xff]
  %v1403 = vld [vmem:[%s1399 + $0x18] sm:$0xff]
  %v1404 = vld [vmem:[%s1399 + $0x20] sm:$0xff]
  %v1405 = vld [vmem:[%s1399 + $0x28] sm:$0xff]
  %v1406 = vld [vmem:[%s1399 + $0x30] sm:$0xff]
  %v1407 = vld [vmem:[%s1399 + $0x38] sm:$0xff]
  %v1408 = vld [vmem:[%s1399 + $0x40] sm:$0xff]
  %v1409 = vld [vmem:[%s1399 + $0x48] sm:$0xff]
  %v1410 = vld [vmem:[%s1399 + $0x50] sm:$0xff]
  %v1411 = vld [vmem:[%s1399 + $0x58] sm:$0xff]
  %v1412 = vld [vmem:[%s4 + $0x4] sm:$0x1]
  %v1413 = vld [vmem:[#allocation3] sm:$0xff]
  %v1414 = vld [vmem:[#allocation3 + $0x8] sm:$0xff]
  %v1415 = vld [vmem:[#allocation3 + $0x10] sm:$0xff]
  %v1416 = vld [vmem:[#allocation3 + $0x18] sm:$0xff]
  %v1417 = vld [vmem:[#allocation3 + $0x20] sm:$0xff]
  %v1418 = vld [vmem:[#allocation3 + $0x28] sm:$0xff]
  %v1419 = vld [vmem:[#allocation3 + $0x30] sm:$0xff]
  %v1420 = vld [vmem:[#allocation3 + $0x38] sm:$0xff]
  %v1421 = vlaneseq
  %v1422 = vshrl.u32 %v1421, 7
  %v1423 = vsub.s32 0, %v1422
  %v1424 = vrot.slane %v1412, %v1423
  %v1426 = vsel %vm276, %v1413, 0
  %v1429 = vsel %vm276, %v1414, 0
  %v1432 = vsel %vm276, %v1415, 0
  %v1435 = vsel %vm276, %v1416, 0
  %v1438 = vsel %vm276, %v1417, 0
  %v1441 = vsel %vm276, %v1418, 0
  %v1444 = vsel %vm276, %v1419, 0
  %v1447 = vsel %vm276, %v1420, 0
  %1449 = vmatprep.subr.mxu0 0.0
  %1450 = vmatpush1.msra.mxu0 %v1400
  %1451 = vmatprep.subr.mxu0 0.0
  %1452 = vmatpush1.msra.mxu0 %v1401
  %1453 = vmatprep.subr.mxu0 0.0
  %1454 = vmatpush1.msra.mxu0 %v1402
  %1455 = vmatprep.subr.mxu0 0.0
  %1456 = vmatpush1.msra.mxu0 %v1403
  %1457 = vmatprep.subr.mxu0 0.0
  %1458 = vmatpush1.msra.mxu0 %v1404
  %1459 = vmatprep.subr.mxu0 0.0
  %1460 = vmatpush1.msra.mxu0 %v1405
  %1461 = vmatprep.subr.mxu0 0.0
  %1462 = vmatpush1.msra.mxu0 %v1406
  %1463 = vmatprep.subr.mxu0 0.0
  %1464 = vmatpush1.msra.mxu0 %v1407
  %1465 = vmatprep.subr.mxu0 0.0
  %1466 = vmatpush1.msra.mxu0 %v1408
  %1467 = vmatprep.subr.mxu0 0.0
  %1468 = vmatpush1.msra.mxu0 %v1409
  %1469 = vmatprep.subr.mxu0 0.0
  %1470 = vmatpush1.msra.mxu0 %v1410
  %1471 = vmatprep.subr.mxu0 0.0
  %1472 = vmatpush1.msra.mxu0 %v1411
  %1473 = vmatprep.subr.mxu0 0.0
  %1474 = vmatpush1.msra.mxu0 0.0
  %1475 = vmatprep.subr.mxu0 0.0
  %1476 = vmatpush1.msra.mxu0 0.0
  %1477 = vmatprep.subr.mxu0 0.0
  %1478 = vmatpush1.msra.mxu0 0.0
  %1479 = vmatprep.subr.mxu0 0.0
  %1480 = vmatpush1.msra.mxu0 0.0
  %1481 = vmatprep.subr.mxu0 0.0
  %1482 = vmatpush1.msra.mxu0 0.0
  %1483 = vmatprep.subr.mxu0 0.0
  %1484 = vmatpush1.msra.mxu0 0.0
  %1485 = vmatprep.subr.mxu0 0.0
  %1486 = vmatpush1.msra.mxu0 0.0
  %1487 = vmatprep.subr.mxu0 0.0
  %1488 = vmatpush1.msra.mxu0 0.0
  %1489 = vmatprep.subr.mxu0 0.0
  %1490 = vmatpush1.msra.mxu0 0.0
  %1491 = vmatprep.subr.mxu0 0.0
  %1492 = vmatpush1.msra.mxu0 0.0
  %1493 = vmatprep.subr.mxu0 0.0
  %1494 = vmatpush1.msra.mxu0 0.0
  %1495 = vmatprep.subr.mxu0 0.0
  %1496 = vmatpush1.msra.mxu0 0.0
  %1497 = vmatprep.subr.mxu0 0.0
  %1498 = vmatpush1.msra.mxu0 0.0
  %1499 = vmatprep.subr.mxu0 0.0
  %1500 = vmatpush1.msra.mxu0 0.0
  %1501 = vmatprep.subr.mxu0 0.0
  %1502 = vmatpush1.msra.mxu0 0.0
  %1503 = vmatprep.subr.mxu0 0.0
  %1504 = vmatpush1.msra.mxu0 0.0
  %1505 = vmatprep.subr.mxu0 0.0
  %1506 = vmatpush1.msra.mxu0 0.0
  %1507 = vmatprep.subr.mxu0 0.0
  %1508 = vmatpush1.msra.mxu0 0.0
  %1509 = vmatprep.subr.mxu0 0.0
  %1510 = vmatpush1.msra.mxu0 0.0
  %1511 = vmatprep.subr.mxu0 0.0
  %1512 = vmatpush1.msra.mxu0 0.0
  %1513 = vmatprep.mubr.f32.mxu0 0.0
  %1514 = vmatmul.mubr.f32.gmra.mrb[0].mxu0 %v1426
  %v1515 = vpop.f32.mrb[0].mxu0
  %v1516 = vadd.f32 %v1424, %v1515
  %v1517 = vpop.f32.mrb[0].mxu0
  %1518 = vmatprep.mubr.f32.mxu0 0.0
  %1519 = vmatmul.mubr.f32.gmra.mrb[0].mxu0 %v1429
  %v1520 = vpop.f32.mrb[0].mxu0
  %v1521 = vadd.f32 %v1424, %v1520
  %v1522 = vpop.f32.mrb[0].mxu0
  %1523 = vmatprep.mubr.f32.mxu0 0.0
  %1524 = vmatmul.mubr.f32.gmra.mrb[0].mxu0 %v1432
  %v1525 = vpop.f32.mrb[0].mxu0
  %v1526 = vadd.f32 %v1424, %v1525
  %v1527 = vpop.f32.mrb[0].mxu0
  %1528 = vmatprep.mubr.f32.mxu0 0.0
  %1529 = vmatmul.mubr.f32.gmra.mrb[0].mxu0 %v1435
  %v1530 = vpop.f32.mrb[0].mxu0
  %v1531 = vadd.f32 %v1424, %v1530
  %v1532 = vpop.f32.mrb[0].mxu0
  %1533 = vmatprep.mubr.f32.mxu0 0.0
  %1534 = vmatmul.mubr.f32.gmra.mrb[0].mxu0 %v1438
  %v1535 = vpop.f32.mrb[0].mxu0
  %v1536 = vadd.f32 %v1424, %v1535
  %v1537 = vpop.f32.mrb[0].mxu0
  %1538 = vmatprep.mubr.f32.mxu0 0.0
  %1539 = vmatmul.mubr.f32.gmra.mrb[0].mxu0 %v1441
  %v1540 = vpop.f32.mrb[0].mxu0
  %v1541 = vadd.f32 %v1424, %v1540
  %v1542 = vpop.f32.mrb[0].mxu0
  %1543 = vmatprep.mubr.f32.mxu0 0.0
  %1544 = vmatmul.mubr.f32.gmra.mrb[0].mxu0 %v1444
  %v1545 = vpop.f32.mrb[0].mxu0
  %v1546 = vadd.f32 %v1424, %v1545
  %v1547 = vpop.f32.mrb[0].mxu0
  %1548 = vmatprep.mubr.f32.mxu0 0.0
  %1549 = vmatmul.mubr.f32.gmra.mrb[0].mxu0 %v1447
  %v1550 = vpop.f32.mrb[0].mxu0
  %v1551 = vadd.f32 %v1424, %v1550
  %v1552 = vpop.f32.mrb[0].mxu0
  %1553 = vdwg.mxu0
  %v1554 = vmax.f32 %v1516, 0.0
  %v1555 = vmax.f32 %v1521, 0.0
  %v1556 = vmax.f32 %v1526, 0.0
  %v1557 = vmax.f32 %v1531, 0.0
  %v1558 = vmax.f32 %v1536, 0.0
  %v1559 = vmax.f32 %v1541, 0.0
  %v1560 = vmax.f32 %v1546, 0.0
  %v1561 = vmax.f32 %v1551, 0.0
  %1562 = vst.msk [vmem:[#allocation2 + $0x1] sm:$0xff] %vm128, %v1554
  %1563 = vst.msk [vmem:[#allocation2 + $0x9] sm:$0xff] %vm128, %v1555
  %1564 = vst.msk [vmem:[#allocation2 + $0x11] sm:$0xff] %vm128, %v1556
  %1565 = vst.msk [vmem:[#allocation2 + $0x19] sm:$0xff] %vm128, %v1557
  %1566 = vst.msk [vmem:[%s125 + $0x1] sm:$0xff] %vm128, %v1558
  %1567 = vst.msk [vmem:[%s125 + $0x9] sm:$0xff] %vm128, %v1559
  %1568 = vst.msk [vmem:[%s125 + $0x11] sm:$0xff] %vm128, %v1560
  %1569 = vst.msk [vmem:[%s125 + $0x19] sm:$0xff] %vm128, %v1561
  %v1570 = vld [vmem:[#allocation2] sm:$0xff]
  %v1571 = vld [vmem:[#allocation2 + $0x8] sm:$0xff]
  %v1572 = vld [vmem:[#allocation2 + $0x10] sm:$0xff]
  %v1573 = vld [vmem:[#allocation2 + $0x18] sm:$0xff]
  %1574 = vst.msk [vmem:[#allocation3] sm:$0xff] %vm128, %v1570
  %1575 = vst.msk [vmem:[#allocation3 + $0x8] sm:$0xff] %vm128, %v1571
  %1576 = vst.msk [vmem:[#allocation3 + $0x10] sm:$0xff] %vm128, %v1572
  %1577 = vst.msk [vmem:[#allocation3 + $0x18] sm:$0xff] %vm128, %v1573
  %v1578 = vld [vmem:[#allocation2 + $0x1] sm:$0xff]
  %v1579 = vld [vmem:[#allocation2 + $0x9] sm:$0xff]
  %v1580 = vld [vmem:[#allocation2 + $0x11] sm:$0xff]
  %v1581 = vld [vmem:[#allocation2 + $0x19] sm:$0xff]
  %1586 = vrot.lane.b32.xlu0 %v1578, 32
  %v1587 = vpop.permute.xlu0 %1586
  %1588 = vrot.lane.b32.xlu0 %v1579, 32
  %v1589 = vpop.permute.xlu0 %1588
  %1590 = vrot.lane.b32.xlu0 %v1580, 32
  %v1591 = vpop.permute.xlu0 %1590
  %1592 = vrot.lane.b32.xlu0 %v1581, 32
  %v1593 = vpop.permute.xlu0 %1592
  %1598 = vst.msk [vmem:[#allocation3] sm:$0xff] %vm165, %v1587
  %1599 = vst.msk [vmem:[#allocation3 + $0x8] sm:$0xff] %vm165, %v1589
  %1600 = vst.msk [vmem:[#allocation3 + $0x10] sm:$0xff] %vm165, %v1591
  %1601 = vst.msk [vmem:[#allocation3 + $0x18] sm:$0xff] %vm165, %v1593
  %v1602 = vld [vmem:[#allocation2 + $0x2] sm:$0xff]
  %v1603 = vld [vmem:[#allocation2 + $0xa] sm:$0xff]
  %v1604 = vld [vmem:[#allocation2 + $0x12] sm:$0xff]
  %v1605 = vld [vmem:[#allocation2 + $0x1a] sm:$0xff]
  %1610 = vrot.lane.b32.xlu0 %v1602, 64
  %v1611 = vpop.permute.xlu0 %1610
  %1612 = vrot.lane.b32.xlu0 %v1603, 64
  %v1613 = vpop.permute.xlu0 %1612
  %1614 = vrot.lane.b32.xlu0 %v1604, 64
  %v1615 = vpop.permute.xlu0 %1614
  %1616 = vrot.lane.b32.xlu0 %v1605, 64
  %v1617 = vpop.permute.xlu0 %1616
  %1622 = vst.msk [vmem:[#allocation3] sm:$0xff] %vm190, %v1611
  %1623 = vst.msk [vmem:[#allocation3 + $0x8] sm:$0xff] %vm190, %v1613
  %1624 = vst.msk [vmem:[#allocation3 + $0x10] sm:$0xff] %vm190, %v1615
  %1625 = vst.msk [vmem:[#allocation3 + $0x18] sm:$0xff] %vm190, %v1617
  %v1626 = vld [vmem:[%s125] sm:$0xff]
  %v1627 = vld [vmem:[%s125 + $0x8] sm:$0xff]
  %v1628 = vld [vmem:[%s125 + $0x10] sm:$0xff]
  %v1629 = vld [vmem:[%s125 + $0x18] sm:$0xff]
  %1630 = vst.msk [vmem:[#allocation3 + $0x20] sm:$0xff] %vm128, %v1626
  %1631 = vst.msk [vmem:[#allocation3 + $0x28] sm:$0xff] %vm128, %v1627
  %1632 = vst.msk [vmem:[#allocation3 + $0x30] sm:$0xff] %vm128, %v1628
  %1633 = vst.msk [vmem:[#allocation3 + $0x38] sm:$0xff] %vm128, %v1629
  %v1634 = vld [vmem:[%s125 + $0x1] sm:$0xff]
  %v1635 = vld [vmem:[%s125 + $0x9] sm:$0xff]
  %v1636 = vld [vmem:[%s125 + $0x11] sm:$0xff]
  %v1637 = vld [vmem:[%s125 + $0x19] sm:$0xff]
  %1642 = vrot.lane.b32.xlu0 %v1634, 32
  %v1643 = vpop.permute.xlu0 %1642
  %1644 = vrot.lane.b32.xlu0 %v1635, 32
  %v1645 = vpop.permute.xlu0 %1644
  %1646 = vrot.lane.b32.xlu0 %v1636, 32
  %v1647 = vpop.permute.xlu0 %1646
  %1648 = vrot.lane.b32.xlu0 %v1637, 32
  %v1649 = vpop.permute.xlu0 %1648
  %1654 = vst.msk [vmem:[#allocation3 + $0x20] sm:$0xff] %vm165, %v1643
  %1655 = vst.msk [vmem:[#allocation3 + $0x28] sm:$0xff] %vm165, %v1645
  %1656 = vst.msk [vmem:[#allocation3 + $0x30] sm:$0xff] %vm165, %v1647
  %1657 = vst.msk [vmem:[#allocation3 + $0x38] sm:$0xff] %vm165, %v1649
  %v1658 = vld [vmem:[%s125 + $0x2] sm:$0xff]
  %v1659 = vld [vmem:[%s125 + $0xa] sm:$0xff]
  %v1660 = vld [vmem:[%s125 + $0x12] sm:$0xff]
  %v1661 = vld [vmem:[%s125 + $0x1a] sm:$0xff]
  %1666 = vrot.lane.b32.xlu0 %v1658, 64
  %v1667 = vpop.permute.xlu0 %1666
  %1668 = vrot.lane.b32.xlu0 %v1659, 64
  %v1669 = vpop.permute.xlu0 %1668
  %1670 = vrot.lane.b32.xlu0 %v1660, 64
  %v1671 = vpop.permute.xlu0 %1670
  %1672 = vrot.lane.b32.xlu0 %v1661, 64
  %v1673 = vpop.permute.xlu0 %1672
  %1678 = vst.msk [vmem:[#allocation3 + $0x20] sm:$0xff] %vm190, %v1667
  %1679 = vst.msk [vmem:[#allocation3 + $0x28] sm:$0xff] %vm190, %v1669
  %1680 = vst.msk [vmem:[#allocation3 + $0x30] sm:$0xff] %vm190, %v1671
  %1681 = vst.msk [vmem:[#allocation3 + $0x38] sm:$0xff] %vm190, %v1673
  %s1682 = scalar_lea.vmem %s3, 480
  %v1683 = vld [vmem:[%s1682] sm:$0xff]
  %v1684 = vld [vmem:[%s1682 + $0x8] sm:$0xff]
  %v1685 = vld [vmem:[%s1682 + $0x10] sm:$0xff]
  %v1686 = vld [vmem:[%s1682 + $0x18] sm:$0xff]
  %v1687 = vld [vmem:[%s1682 + $0x20] sm:$0xff]
  %v1688 = vld [vmem:[%s1682 + $0x28] sm:$0xff]
  %v1689 = vld [vmem:[%s1682 + $0x30] sm:$0xff]
  %v1690 = vld [vmem:[%s1682 + $0x38] sm:$0xff]
  %v1691 = vld [vmem:[%s1682 + $0x40] sm:$0xff]
  %v1692 = vld [vmem:[%s1682 + $0x48] sm:$0xff]
  %v1693 = vld [vmem:[%s1682 + $0x50] sm:$0xff]
  %v1694 = vld [vmem:[%s1682 + $0x58] sm:$0xff]
  %v1695 = vld [vmem:[%s4 + $0x5] sm:$0x1]
  %v1696 = vld [vmem:[#allocation3] sm:$0xff]
  %v1697 = vld [vmem:[#allocation3 + $0x8] sm:$0xff]
  %v1698 = vld [vmem:[#allocation3 + $0x10] sm:$0xff]
  %v1699 = vld [vmem:[#allocation3 + $0x18] sm:$0xff]
  %v1700 = vld [vmem:[#allocation3 + $0x20] sm:$0xff]
  %v1701 = vld [vmem:[#allocation3 + $0x28] sm:$0xff]
  %v1702 = vld [vmem:[#allocation3 + $0x30] sm:$0xff]
  %v1703 = vld [vmem:[#allocation3 + $0x38] sm:$0xff]
  %v1704 = vlaneseq
  %v1705 = vshrl.u32 %v1704, 7
  %v1706 = vsub.s32 0, %v1705
  %v1707 = vrot.slane %v1695, %v1706
  %v1709 = vsel %vm276, %v1696, 0
  %v1712 = vsel %vm276, %v1697, 0
  %v1715 = vsel %vm276, %v1698, 0
  %v1718 = vsel %vm276, %v1699, 0
  %v1721 = vsel %vm276, %v1700, 0
  %v1724 = vsel %vm276, %v1701, 0
  %v1727 = vsel %vm276, %v1702, 0
  %v1730 = vsel %vm276, %v1703, 0
  %1732 = vmatprep.subr.mxu0 0.0
  %1733 = vmatpush1.msra.mxu0 %v1683
  %1734 = vmatprep.subr.mxu0 0.0
  %1735 = vmatpush1.msra.mxu0 %v1684
  %1736 = vmatprep.subr.mxu0 0.0
  %1737 = vmatpush1.msra.mxu0 %v1685
  %1738 = vmatprep.subr.mxu0 0.0
  %1739 = vmatpush1.msra.mxu0 %v1686
  %1740 = vmatprep.subr.mxu0 0.0
  %1741 = vmatpush1.msra.mxu0 %v1687
  %1742 = vmatprep.subr.mxu0 0.0
  %1743 = vmatpush1.msra.mxu0 %v1688
  %1744 = vmatprep.subr.mxu0 0.0
  %1745 = vmatpush1.msra.mxu0 %v1689
  %1746 = vmatprep.subr.mxu0 0.0
  %1747 = vmatpush1.msra.mxu0 %v1690
  %1748 = vmatprep.subr.mxu0 0.0
  %1749 = vmatpush1.msra.mxu0 %v1691
  %1750 = vmatprep.subr.mxu0 0.0
  %1751 = vmatpush1.msra.mxu0 %v1692
  %1752 = vmatprep.subr.mxu0 0.0
  %1753 = vmatpush1.msra.mxu0 %v1693
  %1754 = vmatprep.subr.mxu0 0.0
  %1755 = vmatpush1.msra.mxu0 %v1694
  %1756 = vmatprep.subr.mxu0 0.0
  %1757 = vmatpush1.msra.mxu0 0.0
  %1758 = vmatprep.subr.mxu0 0.0
  %1759 = vmatpush1.msra.mxu0 0.0
  %1760 = vmatprep.subr.mxu0 0.0
  %1761 = vmatpush1.msra.mxu0 0.0
  %1762 = vmatprep.subr.mxu0 0.0
  %1763 = vmatpush1.msra.mxu0 0.0
  %1764 = vmatprep.subr.mxu0 0.0
  %1765 = vmatpush1.msra.mxu0 0.0
  %1766 = vmatprep.subr.mxu0 0.0
  %1767 = vmatpush1.msra.mxu0 0.0
  %1768 = vmatprep.subr.mxu0 0.0
  %1769 = vmatpush1.msra.mxu0 0.0
  %1770 = vmatprep.subr.mxu0 0.0
  %1771 = vmatpush1.msra.mxu0 0.0
  %1772 = vmatprep.subr.mxu0 0.0
  %1773 = vmatpush1.msra.mxu0 0.0
  %1774 = vmatprep.subr.mxu0 0.0
  %1775 = vmatpush1.msra.mxu0 0.0
  %1776 = vmatprep.subr.mxu0 0.0
  %1777 = vmatpush1.msra.mxu0 0.0
  %1778 = vmatprep.subr.mxu0 0.0
  %1779 = vmatpush1.msra.mxu0 0.0
  %1780 = vmatprep.subr.mxu0 0.0
  %1781 = vmatpush1.msra.mxu0 0.0
  %1782 = vmatprep.subr.mxu0 0.0
  %1783 = vmatpush1.msra.mxu0 0.0
  %1784 = vmatprep.subr.mxu0 0.0
  %1785 = vmatpush1.msra.mxu0 0.0
  %1786 = vmatprep.subr.mxu0 0.0
  %1787 = vmatpush1.msra.mxu0 0.0
  %1788 = vmatprep.subr.mxu0 0.0
  %1789 = vmatpush1.msra.mxu0 0.0
  %1790 = vmatprep.subr.mxu0 0.0
  %1791 = vmatpush1.msra.mxu0 0.0
  %1792 = vmatprep.subr.mxu0 0.0
  %1793 = vmatpush1.msra.mxu0 0.0
  %1794 = vmatprep.subr.mxu0 0.0
  %1795 = vmatpush1.msra.mxu0 0.0
  %1796 = vmatprep.mubr.f32.mxu0 0.0
  %1797 = vmatmul.mubr.f32.gmra.mrb[0].mxu0 %v1709
  %v1798 = vpop.f32.mrb[0].mxu0
  %v1799 = vadd.f32 %v1707, %v1798
  %v1800 = vpop.f32.mrb[0].mxu0
  %1801 = vmatprep.mubr.f32.mxu0 0.0
  %1802 = vmatmul.mubr.f32.gmra.mrb[0].mxu0 %v1712
  %v1803 = vpop.f32.mrb[0].mxu0
  %v1804 = vadd.f32 %v1707, %v1803
  %v1805 = vpop.f32.mrb[0].mxu0
  %1806 = vmatprep.mubr.f32.mxu0 0.0
  %1807 = vmatmul.mubr.f32.gmra.mrb[0].mxu0 %v1715
  %v1808 = vpop.f32.mrb[0].mxu0
  %v1809 = vadd.f32 %v1707, %v1808
  %v1810 = vpop.f32.mrb[0].mxu0
  %1811 = vmatprep.mubr.f32.mxu0 0.0
  %1812 = vmatmul.mubr.f32.gmra.mrb[0].mxu0 %v1718
  %v1813 = vpop.f32.mrb[0].mxu0
  %v1814 = vadd.f32 %v1707, %v1813
  %v1815 = vpop.f32.mrb[0].mxu0
  %1816 = vmatprep.mubr.f32.mxu0 0.0
  %1817 = vmatmul.mubr.f32.gmra.mrb[0].mxu0 %v1721
  %v1818 = vpop.f32.mrb[0].mxu0
  %v1819 = vadd.f32 %v1707, %v1818
  %v1820 = vpop.f32.mrb[0].mxu0
  %1821 = vmatprep.mubr.f32.mxu0 0.0
  %1822 = vmatmul.mubr.f32.gmra.mrb[0].mxu0 %v1724
  %v1823 = vpop.f32.mrb[0].mxu0
  %v1824 = vadd.f32 %v1707, %v1823
  %v1825 = vpop.f32.mrb[0].mxu0
  %1826 = vmatprep.mubr.f32.mxu0 0.0
  %1827 = vmatmul.mubr.f32.gmra.mrb[0].mxu0 %v1727
  %v1828 = vpop.f32.mrb[0].mxu0
  %v1829 = vadd.f32 %v1707, %v1828
  %v1830 = vpop.f32.mrb[0].mxu0
  %1831 = vmatprep.mubr.f32.mxu0 0.0
  %1832 = vmatmul.mubr.f32.gmra.mrb[0].mxu0 %v1730
  %v1833 = vpop.f32.mrb[0].mxu0
  %v1834 = vadd.f32 %v1707, %v1833
  %v1835 = vpop.f32.mrb[0].mxu0
  %1836 = vdwg.mxu0
  %v1837 = vadd.f32 %v1799, %v1271
  %v1838 = vadd.f32 %v1804, %v1272
  %v1839 = vadd.f32 %v1809, %v1273
  %v1840 = vadd.f32 %v1814, %v1274
  %v1841 = vadd.f32 %v1819, %v1275
  %v1842 = vadd.f32 %v1824, %v1276
  %v1843 = vadd.f32 %v1829, %v1277
  %v1844 = vadd.f32 %v1834, %v1278
  %v1845 = vmax.f32 %v1837, 0.0
  %v1846 = vmax.f32 %v1838, 0.0
  %v1847 = vmax.f32 %v1839, 0.0
  %v1848 = vmax.f32 %v1840, 0.0
  %v1849 = vmax.f32 %v1841, 0.0
  %v1850 = vmax.f32 %v1842, 0.0
  %v1851 = vmax.f32 %v1843, 0.0
  %v1852 = vmax.f32 %v1844, 0.0
  %v1853 = vadd.f32 %v114, %v1845
  %v1854 = vadd.f32 %v115, %v1846
  %v1855 = vadd.f32 %v116, %v1847
  %v1856 = vadd.f32 %v117, %v1848
  %v1857 = vadd.f32 %v118, %v1849
  %v1858 = vadd.f32 %v119, %v1850
  %v1859 = vadd.f32 %v120, %v1851
  %v1860 = vadd.f32 %v121, %v1852
  %v1861 = vmax.f32 %v1853, 0.0
  %v1862 = vmax.f32 %v1854, 0.0
  %v1863 = vmax.f32 %v1855, 0.0
  %v1864 = vmax.f32 %v1856, 0.0
  %v1865 = vmax.f32 %v1857, 0.0
  %v1866 = vmax.f32 %v1858, 0.0
  %v1867 = vmax.f32 %v1859, 0.0
  %v1868 = vmax.f32 %v1860, 0.0
  %v1869 = vld [vmem:[%s5] sm:$0xff]
  %v1870 = vld [vmem:[%s5 + $0x8] sm:$0xff]
  %v1872 = vsel %vm128, %v1869, 0
  %v1875 = vsel %vm128, %v1870, 0
  %1877 = vmatprep.subr.mxu0 0.0
  %1878 = vmatpush1.msra.mxu0 %v1861
  %1879 = vmatprep.subr.mxu0 0.0
  %1880 = vmatpush1.msra.mxu0 %v1862
  %1881 = vmatprep.subr.mxu0 0.0
  %1882 = vmatpush1.msra.mxu0 %v1863
  %1883 = vmatprep.subr.mxu0 0.0
  %1884 = vmatpush1.msra.mxu0 %v1864
  %1885 = vmatprep.subr.mxu0 0.0
  %1886 = vmatpush1.msra.mxu0 0.0
  %1887 = vmatprep.subr.mxu0 0.0
  %1888 = vmatpush1.msra.mxu0 0.0
  %1889 = vmatprep.subr.mxu0 0.0
  %1890 = vmatpush1.msra.mxu0 0.0
  %1891 = vmatprep.subr.mxu0 0.0
  %1892 = vmatpush1.msra.mxu0 0.0
  %1893 = vmatprep.subr.mxu0 0.0
  %1894 = vmatpush1.msra.mxu0 0.0
  %1895 = vmatprep.subr.mxu0 0.0
  %1896 = vmatpush1.msra.mxu0 0.0
  %1897 = vmatprep.subr.mxu0 0.0
  %1898 = vmatpush1.msra.mxu0 0.0
  %1899 = vmatprep.subr.mxu0 0.0
  %1900 = vmatpush1.msra.mxu0 0.0
  %1901 = vmatprep.subr.mxu0 0.0
  %1902 = vmatpush1.msra.mxu0 0.0
  %1903 = vmatprep.subr.mxu0 0.0
  %1904 = vmatpush1.msra.mxu0 0.0
  %1905 = vmatprep.subr.mxu0 0.0
  %1906 = vmatpush1.msra.mxu0 0.0
  %1907 = vmatprep.subr.mxu0 0.0
  %1908 = vmatpush1.msra.mxu0 0.0
  %1909 = vmatprep.subr.mxu0 0.0
  %1910 = vmatpush1.msra.mxu0 0.0
  %1911 = vmatprep.subr.mxu0 0.0
  %1912 = vmatpush1.msra.mxu0 0.0
  %1913 = vmatprep.subr.mxu0 0.0
  %1914 = vmatpush1.msra.mxu0 0.0
  %1915 = vmatprep.subr.mxu0 0.0
  %1916 = vmatpush1.msra.mxu0 0.0
  %1917 = vmatprep.subr.mxu0 0.0
  %1918 = vmatpush1.msra.mxu0 0.0
  %1919 = vmatprep.subr.mxu0 0.0
  %1920 = vmatpush1.msra.mxu0 0.0
  %1921 = vmatprep.subr.mxu0 0.0
  %1922 = vmatpush1.msra.mxu0 0.0
  %1923 = vmatprep.subr.mxu0 0.0
  %1924 = vmatpush1.msra.mxu0 0.0
  %1925 = vmatprep.subr.mxu0 0.0
  %1926 = vmatpush1.msra.mxu0 0.0
  %1927 = vmatprep.subr.mxu0 0.0
  %1928 = vmatpush1.msra.mxu0 0.0
  %1929 = vmatprep.subr.mxu0 0.0
  %1930 = vmatpush1.msra.mxu0 0.0
  %1931 = vmatprep.subr.mxu0 0.0
  %1932 = vmatpush1.msra.mxu0 0.0
  %1933 = vmatprep.subr.mxu0 0.0
  %1934 = vmatpush1.msra.mxu0 0.0
  %1935 = vmatprep.subr.mxu0 0.0
  %1936 = vmatpush1.msra.mxu0 0.0
  %1937 = vmatprep.subr.mxu0 0.0
  %1938 = vmatpush1.msra.mxu0 0.0
  %1939 = vmatprep.subr.mxu0 0.0
  %1940 = vmatpush1.msra.mxu0 0.0
  %1941 = vmatprep.mubr.f32.mxu0 0.0
  %1942 = vmatmul.mubr.f32.gmra.mrb[0].mxu0 %v1872
  %v1943 = vpop.f32.mrb[0].mxu0
  %v1944 = vadd.f32 0.0, %v1943
  %v1945 = vpop.f32.mrb[0].mxu0
  %1946 = vmatprep.mubr.f32.mxu0 0.0
  %1947 = vmatmul.mubr.f32.gmra.mrb[0].mxu0 %v1875
  %v1948 = vpop.f32.mrb[0].mxu0
  %v1949 = vadd.f32 0.0, %v1948
  %v1950 = vpop.f32.mrb[0].mxu0
  %1951 = vdwg.mxu0
  %1952 = vst.msk [vmem:[#allocation4] sm:$0x1] %vm122, %v1944
  %v1955 = vunpack.c.l.s4 1983009808
  %v1956 = vunpack.c.0.s8 %v1955
  %v1957 = vlaneseq
  %v1958 = vshrl.u32 %v1957, 7
  %v1959 = vsub.s32 %v1956, %v1958
  %v1960 = vrot.slane %v1944, %v1959
  %v1961 = vrot.slane %v1960, 7
  %v1962 = vrot.slane %v1961, 2
  %1963 = vrot.lane.b32.xlu0 %v1962, 32
  %v1964 = vpop.permute.xlu0 %1963
  %vm1966 = vcmask 516352
  %1967 = vst.msk [vmem:[#allocation4] sm:$0x1] %vm1966, %v1964
  %v1968 = vcombine.high %v1960, %v1960
  %1969 = vrot.lane.b32.xlu0 %v1968, 64
  %v1970 = vpop.permute.xlu0 %1969
  %vm1972 = vcmask 778752
  %1973 = vst.msk [vmem:[#allocation4] sm:$0x1] %vm1972, %v1970
  %v1974 = vrot.slane %v1968, 7
  %v1975 = vrot.slane %v1974, 2
  %1976 = vrot.lane.b32.xlu0 %v1975, 96
  %v1977 = vpop.permute.xlu0 %1976
  %vm1979 = vcmask 1041152
  %1980 = vst.msk [vmem:[#allocation4] sm:$0x1] %vm1979, %v1977
  %v1981 = vcombine.high %v1944, %v1944
  %v1983 = vunpack.c.l.s4 1983009808
  %v1984 = vunpack.c.0.s8 %v1983
  %v1985 = vlaneseq
  %v1986 = vshrl.u32 %v1985, 7
  %v1987 = vsub.s32 %v1984, %v1986
  %v1988 = vrot.slane %v1981, %v1987
  %1990 = vst.msk [vmem:[#allocation4 + $0x2] sm:$0x1] %vm122, %v1988
  %v1991 = vrot.slane %v1988, 7
  %v1992 = vrot.slane %v1991, 2
  %1993 = vrot.lane.b32.xlu0 %v1992, 32
  %v1994 = vpop.permute.xlu0 %1993
  %1996 = vst.msk [vmem:[#allocation4 + $0x2] sm:$0x1] %vm1966, %v1994
  %v1997 = vcombine.high %v1988, %v1988
  %1998 = vrot.lane.b32.xlu0 %v1997, 64
  %v1999 = vpop.permute.xlu0 %1998
  %2001 = vst.msk [vmem:[#allocation4 + $0x2] sm:$0x1] %vm1972, %v1999
  %v2002 = vrot.slane %v1997, 7
  %v2003 = vrot.slane %v2002, 2
  %2004 = vrot.lane.b32.xlu0 %v2003, 96
  %v2005 = vpop.permute.xlu0 %2004
  %2007 = vst.msk [vmem:[#allocation4 + $0x2] sm:$0x1] %vm1979, %v2005
  %2008 = vst.msk [vmem:[#allocation4 + $0x4] sm:$0x1] %vm122, %v1949
  %v2011 = vunpack.c.l.s4 1983009808
  %v2012 = vunpack.c.0.s8 %v2011
  %v2013 = vlaneseq
  %v2014 = vshrl.u32 %v2013, 7
  %v2015 = vsub.s32 %v2012, %v2014
  %v2016 = vrot.slane %v1949, %v2015
  %v2017 = vrot.slane %v2016, 7
  %v2018 = vrot.slane %v2017, 2
  %2019 = vrot.lane.b32.xlu0 %v2018, 32
  %v2020 = vpop.permute.xlu0 %2019
  %2022 = vst.msk [vmem:[#allocation4 + $0x4] sm:$0x1] %vm1966, %v2020
  %v2023 = vcombine.high %v2016, %v2016
  %2024 = vrot.lane.b32.xlu0 %v2023, 64
  %v2025 = vpop.permute.xlu0 %2024
  %2027 = vst.msk [vmem:[#allocation4 + $0x4] sm:$0x1] %vm1972, %v2025
  %v2028 = vrot.slane %v2023, 7
  %v2029 = vrot.slane %v2028, 2
  %2030 = vrot.lane.b32.xlu0 %v2029, 96
  %v2031 = vpop.permute.xlu0 %2030
  %2033 = vst.msk [vmem:[#allocation4 + $0x4] sm:$0x1] %vm1979, %v2031
  %v2034 = vcombine.high %v1949, %v1949
  %v2036 = vunpack.c.l.s4 1983009808
  %v2037 = vunpack.c.0.s8 %v2036
  %v2038 = vlaneseq
  %v2039 = vshrl.u32 %v2038, 7
  %v2040 = vsub.s32 %v2037, %v2039
  %v2041 = vrot.slane %v2034, %v2040
  %2043 = vst.msk [vmem:[#allocation4 + $0x6] sm:$0x1] %vm122, %v2041
  %v2044 = vrot.slane %v2041, 7
  %v2045 = vrot.slane %v2044, 2
  %2046 = vrot.lane.b32.xlu0 %v2045, 32
  %v2047 = vpop.permute.xlu0 %2046
  %2049 = vst.msk [vmem:[#allocation4 + $0x6] sm:$0x1] %vm1966, %v2047
  %v2050 = vcombine.high %v2041, %v2041
  %2051 = vrot.lane.b32.xlu0 %v2050, 64
  %v2052 = vpop.permute.xlu0 %2051
  %2054 = vst.msk [vmem:[#allocation4 + $0x6] sm:$0x1] %vm1972, %v2052
  %v2055 = vrot.slane %v2050, 7
  %v2056 = vrot.slane %v2055, 2
  %2057 = vrot.lane.b32.xlu0 %v2056, 96
  %v2058 = vpop.permute.xlu0 %2057
  %2060 = vst.msk [vmem:[#allocation4 + $0x6] sm:$0x1] %vm1979, %v2058
  %2061 = vmatprep.subr.mxu0 0.0
  %2062 = vmatpush1.msra.mxu0 %v1865
  %2063 = vmatprep.subr.mxu0 0.0
  %2064 = vmatpush1.msra.mxu0 %v1866
  %2065 = vmatprep.subr.mxu0 0.0
  %2066 = vmatpush1.msra.mxu0 %v1867
  %2067 = vmatprep.subr.mxu0 0.0
  %2068 = vmatpush1.msra.mxu0 %v1868
  %2069 = vmatprep.subr.mxu0 0.0
  %2070 = vmatpush1.msra.mxu0 0.0
  %2071 = vmatprep.subr.mxu0 0.0
  %2072 = vmatpush1.msra.mxu0 0.0
  %2073 = vmatprep.subr.mxu0 0.0
  %2074 = vmatpush1.msra.mxu0 0.0
  %2075 = vmatprep.subr.mxu0 0.0
  %2076 = vmatpush1.msra.mxu0 0.0
  %2077 = vmatprep.subr.mxu0 0.0
  %2078 = vmatpush1.msra.mxu0 0.0
  %2079 = vmatprep.subr.mxu0 0.0
  %2080 = vmatpush1.msra.mxu0 0.0
  %2081 = vmatprep.subr.mxu0 0.0
  %2082 = vmatpush1.msra.mxu0 0.0
  %2083 = vmatprep.subr.mxu0 0.0
  %2084 = vmatpush1.msra.mxu0 0.0
  %2085 = vmatprep.subr.mxu0 0.0
  %2086 = vmatpush1.msra.mxu0 0.0
  %2087 = vmatprep.subr.mxu0 0.0
  %2088 = vmatpush1.msra.mxu0 0.0
  %2089 = vmatprep.subr.mxu0 0.0
  %2090 = vmatpush1.msra.mxu0 0.0
  %2091 = vmatprep.subr.mxu0 0.0
  %2092 = vmatpush1.msra.mxu0 0.0
  %2093 = vmatprep.subr.mxu0 0.0
  %2094 = vmatpush1.msra.mxu0 0.0
  %2095 = vmatprep.subr.mxu0 0.0
  %2096 = vmatpush1.msra.mxu0 0.0
  %2097 = vmatprep.subr.mxu0 0.0
  %2098 = vmatpush1.msra.mxu0 0.0
  %2099 = vmatprep.subr.mxu0 0.0
  %2100 = vmatpush1.msra.mxu0 0.0
  %2101 = vmatprep.subr.mxu0 0.0
  %2102 = vmatpush1.msra.mxu0 0.0
  %2103 = vmatprep.subr.mxu0 0.0
  %2104 = vmatpush1.msra.mxu0 0.0
  %2105 = vmatprep.subr.mxu0 0.0
  %2106 = vmatpush1.msra.mxu0 0.0
  %2107 = vmatprep.subr.mxu0 0.0
  %2108 = vmatpush1.msra.mxu0 0.0
  %2109 = vmatprep.subr.mxu0 0.0
  %2110 = vmatpush1.msra.mxu0 0.0
  %2111 = vmatprep.subr.mxu0 0.0
  %2112 = vmatpush1.msra.mxu0 0.0
  %2113 = vmatprep.subr.mxu0 0.0
  %2114 = vmatpush1.msra.mxu0 0.0
  %2115 = vmatprep.subr.mxu0 0.0
  %2116 = vmatpush1.msra.mxu0 0.0
  %2117 = vmatprep.subr.mxu0 0.0
  %2118 = vmatpush1.msra.mxu0 0.0
  %2119 = vmatprep.subr.mxu0 0.0
  %2120 = vmatpush1.msra.mxu0 0.0
  %2121 = vmatprep.subr.mxu0 0.0
  %2122 = vmatpush1.msra.mxu0 0.0
  %2123 = vmatprep.subr.mxu0 0.0
  %2124 = vmatpush1.msra.mxu0 0.0
  %2125 = vmatprep.mubr.f32.mxu0 0.0
  %2126 = vmatmul.mubr.f32.gmra.mrb[0].mxu0 %v1872
  %v2127 = vpop.f32.mrb[0].mxu0
  %v2128 = vadd.f32 0.0, %v2127
  %v2129 = vpop.f32.mrb[0].mxu0
  %2130 = vmatprep.mubr.f32.mxu0 0.0
  %2131 = vmatmul.mubr.f32.gmra.mrb[0].mxu0 %v1875
  %v2132 = vpop.f32.mrb[0].mxu0
  %v2133 = vadd.f32 0.0, %v2132
  %v2134 = vpop.f32.mrb[0].mxu0
  %2135 = vdwg.mxu0
  %2136 = vst.msk [vmem:[#allocation4 + $0x1] sm:$0x1] %vm122, %v2128
  %v2139 = vunpack.c.l.s4 1983009808
  %v2140 = vunpack.c.0.s8 %v2139
  %v2141 = vlaneseq
  %v2142 = vshrl.u32 %v2141, 7
  %v2143 = vsub.s32 %v2140, %v2142
  %v2144 = vrot.slane %v2128, %v2143
  %v2145 = vrot.slane %v2144, 7
  %v2146 = vrot.slane %v2145, 2
  %2147 = vrot.lane.b32.xlu0 %v2146, 32
  %v2148 = vpop.permute.xlu0 %2147
  %2150 = vst.msk [vmem:[#allocation4 + $0x1] sm:$0x1] %vm1966, %v2148
  %v2151 = vcombine.high %v2144, %v2144
  %2152 = vrot.lane.b32.xlu0 %v2151, 64
  %v2153 = vpop.permute.xlu0 %2152
  %2155 = vst.msk [vmem:[#allocation4 + $0x1] sm:$0x1] %vm1972, %v2153
  %v2156 = vrot.slane %v2151, 7
  %v2157 = vrot.slane %v2156, 2
  %2158 = vrot.lane.b32.xlu0 %v2157, 96
  %v2159 = vpop.permute.xlu0 %2158
  %2161 = vst.msk [vmem:[#allocation4 + $0x1] sm:$0x1] %vm1979, %v2159
  %v2162 = vcombine.high %v2128, %v2128
  %v2164 = vunpack.c.l.s4 1983009808
  %v2165 = vunpack.c.0.s8 %v2164
  %v2166 = vlaneseq
  %v2167 = vshrl.u32 %v2166, 7
  %v2168 = vsub.s32 %v2165, %v2167
  %v2169 = vrot.slane %v2162, %v2168
  %2171 = vst.msk [vmem:[#allocation4 + $0x3] sm:$0x1] %vm122, %v2169
  %v2172 = vrot.slane %v2169, 7
  %v2173 = vrot.slane %v2172, 2
  %2174 = vrot.lane.b32.xlu0 %v2173, 32
  %v2175 = vpop.permute.xlu0 %2174
  %2177 = vst.msk [vmem:[#allocation4 + $0x3] sm:$0x1] %vm1966, %v2175
  %v2178 = vcombine.high %v2169, %v2169
  %2179 = vrot.lane.b32.xlu0 %v2178, 64
  %v2180 = vpop.permute.xlu0 %2179
  %2182 = vst.msk [vmem:[#allocation4 + $0x3] sm:$0x1] %vm1972, %v2180
  %v2183 = vrot.slane %v2178, 7
  %v2184 = vrot.slane %v2183, 2
  %2185 = vrot.lane.b32.xlu0 %v2184, 96
  %v2186 = vpop.permute.xlu0 %2185
  %2188 = vst.msk [vmem:[#allocation4 + $0x3] sm:$0x1] %vm1979, %v2186
  %2189 = vst.msk [vmem:[#allocation4 + $0x5] sm:$0x1] %vm122, %v2133
  %v2192 = vunpack.c.l.s4 1983009808
  %v2193 = vunpack.c.0.s8 %v2192
  %v2194 = vlaneseq
  %v2195 = vshrl.u32 %v2194, 7
  %v2196 = vsub.s32 %v2193, %v2195
  %v2197 = vrot.slane %v2133, %v2196
  %v2198 = vrot.slane %v2197, 7
  %v2199 = vrot.slane %v2198, 2
  %2200 = vrot.lane.b32.xlu0 %v2199, 32
  %v2201 = vpop.permute.xlu0 %2200
  %2203 = vst.msk [vmem:[#allocation4 + $0x5] sm:$0x1] %vm1966, %v2201
  %v2204 = vcombine.high %v2197, %v2197
  %2205 = vrot.lane.b32.xlu0 %v2204, 64
  %v2206 = vpop.permute.xlu0 %2205
  %2208 = vst.msk [vmem:[#allocation4 + $0x5] sm:$0x1] %vm1972, %v2206
  %v2209 = vrot.slane %v2204, 7
  %v2210 = vrot.slane %v2209, 2
  %2211 = vrot.lane.b32.xlu0 %v2210, 96
  %v2212 = vpop.permute.xlu0 %2211
  %2214 = vst.msk [vmem:[#allocation4 + $0x5] sm:$0x1] %vm1979, %v2212
  %v2215 = vcombine.high %v2133, %v2133
  %v2217 = vunpack.c.l.s4 1983009808
  %v2218 = vunpack.c.0.s8 %v2217
  %v2219 = vlaneseq
  %v2220 = vshrl.u32 %v2219, 7
  %v2221 = vsub.s32 %v2218, %v2220
  %v2222 = vrot.slane %v2215, %v2221
  %2224 = vst.msk [vmem:[#allocation4 + $0x7] sm:$0x1] %vm122, %v2222
  %v2225 = vrot.slane %v2222, 7
  %v2226 = vrot.slane %v2225, 2
  %2227 = vrot.lane.b32.xlu0 %v2226, 32
  %v2228 = vpop.permute.xlu0 %2227
  %2230 = vst.msk [vmem:[#allocation4 + $0x7] sm:$0x1] %vm1966, %v2228
  %v2231 = vcombine.high %v2222, %v2222
  %2232 = vrot.lane.b32.xlu0 %v2231, 64
  %v2233 = vpop.permute.xlu0 %2232
  %2235 = vst.msk [vmem:[#allocation4 + $0x7] sm:$0x1] %vm1972, %v2233
  %v2236 = vrot.slane %v2231, 7
  %v2237 = vrot.slane %v2236, 2
  %2238 = vrot.lane.b32.xlu0 %v2237, 96
  %v2239 = vpop.permute.xlu0 %2238
  %2241 = vst.msk [vmem:[#allocation4 + $0x7] sm:$0x1] %vm1979, %v2239
  %v2242 = vld [vmem:[#allocation4] sm:$0xff]
  %v2243 = vmax.f32 %v2242, 0.0
  %v2244 = vmin.f32 %v2242, 0.0
  %v2245 = vmul.f32 %v2244, 1.442695
  %v2246 = vpow.pop %v2245
  %v2247 = vadd.f32 %v2243, %v2246
  %v2248 = vsub.f32 %v2247, 1.0
  %v2249 = vld [vmem:[%s6] sm:$0xff]
  %v2250 = vld [vmem:[%s6 + $0x8] sm:$0xff]
  %v2251 = vld [vmem:[%s6 + $0x10] sm:$0xff]
  %v2252 = vld [vmem:[%s6 + $0x18] sm:$0xff]
  %v2253 = vld [vmem:[%s6 + $0x20] sm:$0xff]
  %v2254 = vld [vmem:[%s6 + $0x28] sm:$0xff]
  %v2255 = vld [vmem:[%s6 + $0x30] sm:$0xff]
  %v2256 = vld [vmem:[%s6 + $0x38] sm:$0xff]
  %v2257 = vld [vmem:[%s6 + $0x40] sm:$0xff]
  %v2258 = vld [vmem:[%s6 + $0x48] sm:$0xff]
  %v2259 = vld [vmem:[%s6 + $0x50] sm:$0xff]
  %v2260 = vld [vmem:[%s6 + $0x58] sm:$0xff]
  %v2261 = vld [vmem:[%s6 + $0x60] sm:$0xff]
  %v2262 = vld [vmem:[%s6 + $0x68] sm:$0xff]
  %v2263 = vld [vmem:[%s6 + $0x70] sm:$0xff]
  %v2264 = vld [vmem:[%s6 + $0x78] sm:$0xff]
  %v2265 = vld [vmem:[%s6 + $0x80] sm:$0xff]
  %v2266 = vld [vmem:[%s6 + $0x88] sm:$0xff]
  %v2267 = vld [vmem:[%s6 + $0x90] sm:$0xff]
  %v2268 = vld [vmem:[%s6 + $0x98] sm:$0xff]
  %v2269 = vld [vmem:[%s6 + $0xa0] sm:$0xff]
  %v2270 = vld [vmem:[%s6 + $0xa8] sm:$0xff]
  %v2271 = vld [vmem:[%s6 + $0xb0] sm:$0xff]
  %v2272 = vld [vmem:[%s6 + $0xb8] sm:$0xff]
  %v2273 = vld [vmem:[%s6 + $0xc0] sm:$0xff]
  %v2274 = vld [vmem:[%s6 + $0xc8] sm:$0xff]
  %v2275 = vld [vmem:[%s6 + $0xd0] sm:$0xff]
  %v2276 = vld [vmem:[%s6 + $0xd8] sm:$0xff]
  %v2277 = vld [vmem:[%s6 + $0xe0] sm:$0xff]
  %v2278 = vld [vmem:[%s6 + $0xe8] sm:$0xff]
  %v2279 = vld [vmem:[%s6 + $0xf0] sm:$0xff]
  %v2280 = vld [vmem:[%s6 + $0xf8] sm:$0xff]
  %v2281 = vld [vmem:[%s6 + $0x100] sm:$0xff]
  %v2282 = vld [vmem:[%s6 + $0x108] sm:$0xff]
  %v2283 = vld [vmem:[%s6 + $0x110] sm:$0xff]
  %v2284 = vld [vmem:[%s6 + $0x118] sm:$0xff]
  %v2285 = vld [vmem:[%s6 + $0x120] sm:$0xff]
  %v2286 = vld [vmem:[%s6 + $0x128] sm:$0xff]
  %v2287 = vld [vmem:[%s6 + $0x130] sm:$0xff]
  %v2288 = vld [vmem:[%s6 + $0x138] sm:$0xff]
  %v2289 = vld [vmem:[%s6 + $0x140] sm:$0xff]
  %v2290 = vld [vmem:[%s6 + $0x148] sm:$0xff]
  %v2291 = vld [vmem:[%s6 + $0x150] sm:$0xff]
  %v2292 = vld [vmem:[%s6 + $0x158] sm:$0xff]
  %v2293 = vld [vmem:[%s6 + $0x160] sm:$0xff]
  %v2294 = vld [vmem:[%s6 + $0x168] sm:$0xff]
  %v2295 = vld [vmem:[%s6 + $0x170] sm:$0xff]
  %v2296 = vld [vmem:[%s6 + $0x178] sm:$0xff]
  %v2297 = vld [vmem:[%s6 + $0x180] sm:$0xff]
  %v2298 = vld [vmem:[%s6 + $0x188] sm:$0xff]
  %v2299 = vld [vmem:[%s6 + $0x190] sm:$0xff]
  %v2300 = vld [vmem:[%s6 + $0x198] sm:$0xff]
  %v2301 = vld [vmem:[%s6 + $0x1a0] sm:$0xff]
  %v2302 = vld [vmem:[%s6 + $0x1a8] sm:$0xff]
  %v2303 = vld [vmem:[%s6 + $0x1b0] sm:$0xff]
  %v2304 = vld [vmem:[%s6 + $0x1b8] sm:$0xff]
  %v2305 = vld [vmem:[%s6 + $0x1c0] sm:$0xff]
  %v2306 = vld [vmem:[%s6 + $0x1c8] sm:$0xff]
  %v2307 = vld [vmem:[%s6 + $0x1d0] sm:$0xff]
  %v2308 = vld [vmem:[%s6 + $0x1d8] sm:$0xff]
  %v2309 = vld [vmem:[%s6 + $0x1e0] sm:$0xff]
  %v2310 = vld [vmem:[%s6 + $0x1e8] sm:$0xff]
  %v2311 = vld [vmem:[%s6 + $0x1f0] sm:$0xff]
  %v2312 = vld [vmem:[%s6 + $0x1f8] sm:$0xff]
  %v2313 = vld [vmem:[%s7] sm:$0x1]
  %v2315 = vlaneseq
  %v2316 = vshrl.u32 %v2315, 7
  %v2317 = vsub.s32 0, %v2316
  %v2318 = vrot.slane %v2313, %v2317
  %v2321 = vcombine.high %v2248, %v2248
  %v2323 = vunpack.c.l.s4 1983009808
  %v2324 = vunpack.c.0.s8 %v2323
  %v2325 = vlaneseq
  %v2326 = vshrl.u32 %v2325, 7
  %v2327 = vsub.s32 %v2324, %v2326
  %v2328 = vrot.slane %v2248, %v2327
  %v2330 = vunpack.c.l.s4 1983009808
  %v2331 = vunpack.c.0.s8 %v2330
  %v2332 = vlaneseq
  %v2333 = vshrl.u32 %v2332, 7
  %v2334 = vsub.s32 %v2331, %v2333
  %v2335 = vrot.slane %v2321, %v2334
  %v2336 = vcombine.high %v2328, %v2328
  %v2337 = vcombine.high %v2335, %v2335
  %2342 = vmatprep.subr.mxu0 0.0
  %2343 = vmatpush1.msra.mxu0 %v2249
  %2344 = vmatprep.subr.mxu0 0.0
  %2345 = vmatpush1.msra.mxu0 %v2250
  %2346 = vmatprep.subr.mxu0 0.0
  %2347 = vmatpush1.msra.mxu0 %v2251
  %2348 = vmatprep.subr.mxu0 0.0
  %2349 = vmatpush1.msra.mxu0 %v2252
  %2350 = vmatprep.subr.mxu0 0.0
  %2351 = vmatpush1.msra.mxu0 %v2253
  %2352 = vmatprep.subr.mxu0 0.0
  %2353 = vmatpush1.msra.mxu0 %v2254
  %2354 = vmatprep.subr.mxu0 0.0
  %2355 = vmatpush1.msra.mxu0 %v2255
  %2356 = vmatprep.subr.mxu0 0.0
  %2357 = vmatpush1.msra.mxu0 %v2256
  %2358 = vmatprep.subr.mxu0 0.0
  %2359 = vmatpush1.msra.mxu0 %v2257
  %2360 = vmatprep.subr.mxu0 0.0
  %2361 = vmatpush1.msra.mxu0 %v2258
  %2362 = vmatprep.subr.mxu0 0.0
  %2363 = vmatpush1.msra.mxu0 %v2259
  %2364 = vmatprep.subr.mxu0 0.0
  %2365 = vmatpush1.msra.mxu0 %v2260
  %2366 = vmatprep.subr.mxu0 0.0
  %2367 = vmatpush1.msra.mxu0 %v2261
  %2368 = vmatprep.subr.mxu0 0.0
  %2369 = vmatpush1.msra.mxu0 %v2262
  %2370 = vmatprep.subr.mxu0 0.0
  %2371 = vmatpush1.msra.mxu0 %v2263
  %2372 = vmatprep.subr.mxu0 0.0
  %2373 = vmatpush1.msra.mxu0 %v2264
  %2374 = vmatprep.subr.mxu0 0.0
  %2375 = vmatpush1.msra.mxu0 %v2265
  %2376 = vmatprep.subr.mxu0 0.0
  %2377 = vmatpush1.msra.mxu0 %v2266
  %2378 = vmatprep.subr.mxu0 0.0
  %2379 = vmatpush1.msra.mxu0 %v2267
  %2380 = vmatprep.subr.mxu0 0.0
  %2381 = vmatpush1.msra.mxu0 %v2268
  %2382 = vmatprep.subr.mxu0 0.0
  %2383 = vmatpush1.msra.mxu0 %v2269
  %2384 = vmatprep.subr.mxu0 0.0
  %2385 = vmatpush1.msra.mxu0 %v2270
  %2386 = vmatprep.subr.mxu0 0.0
  %2387 = vmatpush1.msra.mxu0 %v2271
  %2388 = vmatprep.subr.mxu0 0.0
  %2389 = vmatpush1.msra.mxu0 %v2272
  %2390 = vmatprep.subr.mxu0 0.0
  %2391 = vmatpush1.msra.mxu0 %v2273
  %2392 = vmatprep.subr.mxu0 0.0
  %2393 = vmatpush1.msra.mxu0 %v2274
  %2394 = vmatprep.subr.mxu0 0.0
  %2395 = vmatpush1.msra.mxu0 %v2275
  %2396 = vmatprep.subr.mxu0 0.0
  %2397 = vmatpush1.msra.mxu0 %v2276
  %2398 = vmatprep.subr.mxu0 0.0
  %2399 = vmatpush1.msra.mxu0 %v2277
  %2400 = vmatprep.subr.mxu0 0.0
  %2401 = vmatpush1.msra.mxu0 %v2278
  %2402 = vmatprep.subr.mxu0 0.0
  %2403 = vmatpush1.msra.mxu0 %v2279
  %2404 = vmatprep.subr.mxu0 0.0
  %2405 = vmatpush1.msra.mxu0 %v2280
  %2406 = vmatprep.mubr.f32.mxu0 %v2336
  %2407 = vmatmul.mubr.f32.gmra.mrb[0].mxu0 %v2328
  %v2408 = vpop.f32.mrb[0].mxu0
  %v2409 = vadd.f32 %v2318, %v2408
  %v2410 = vpop.f32.mrb[0].mxu0
  %2411 = vdwg.mxu0
  %2412 = vmatprep.subr.mxu0 0.0
  %2413 = vmatpush1.msra.mxu0 %v2281
  %2414 = vmatprep.subr.mxu0 0.0
  %2415 = vmatpush1.msra.mxu0 %v2282
  %2416 = vmatprep.subr.mxu0 0.0
  %2417 = vmatpush1.msra.mxu0 %v2283
  %2418 = vmatprep.subr.mxu0 0.0
  %2419 = vmatpush1.msra.mxu0 %v2284
  %2420 = vmatprep.subr.mxu0 0.0
  %2421 = vmatpush1.msra.mxu0 %v2285
  %2422 = vmatprep.subr.mxu0 0.0
  %2423 = vmatpush1.msra.mxu0 %v2286
  %2424 = vmatprep.subr.mxu0 0.0
  %2425 = vmatpush1.msra.mxu0 %v2287
  %2426 = vmatprep.subr.mxu0 0.0
  %2427 = vmatpush1.msra.mxu0 %v2288
  %2428 = vmatprep.subr.mxu0 0.0
  %2429 = vmatpush1.msra.mxu0 %v2289
  %2430 = vmatprep.subr.mxu0 0.0
  %2431 = vmatpush1.msra.mxu0 %v2290
  %2432 = vmatprep.subr.mxu0 0.0
  %2433 = vmatpush1.msra.mxu0 %v2291
  %2434 = vmatprep.subr.mxu0 0.0
  %2435 = vmatpush1.msra.mxu0 %v2292
  %2436 = vmatprep.subr.mxu0 0.0
  %2437 = vmatpush1.msra.mxu0 %v2293
  %2438 = vmatprep.subr.mxu0 0.0
  %2439 = vmatpush1.msra.mxu0 %v2294
  %2440 = vmatprep.subr.mxu0 0.0
  %2441 = vmatpush1.msra.mxu0 %v2295
  %2442 = vmatprep.subr.mxu0 0.0
  %2443 = vmatpush1.msra.mxu0 %v2296
  %2444 = vmatprep.subr.mxu0 0.0
  %2445 = vmatpush1.msra.mxu0 %v2297
  %2446 = vmatprep.subr.mxu0 0.0
  %2447 = vmatpush1.msra.mxu0 %v2298
  %2448 = vmatprep.subr.mxu0 0.0
  %2449 = vmatpush1.msra.mxu0 %v2299
  %2450 = vmatprep.subr.mxu0 0.0
  %2451 = vmatpush1.msra.mxu0 %v2300
  %2452 = vmatprep.subr.mxu0 0.0
  %2453 = vmatpush1.msra.mxu0 %v2301
  %2454 = vmatprep.subr.mxu0 0.0
  %2455 = vmatpush1.msra.mxu0 %v2302
  %2456 = vmatprep.subr.mxu0 0.0
  %2457 = vmatpush1.msra.mxu0 %v2303
  %2458 = vmatprep.subr.mxu0 0.0
  %2459 = vmatpush1.msra.mxu0 %v2304
  %2460 = vmatprep.subr.mxu0 0.0
  %2461 = vmatpush1.msra.mxu0 %v2305
  %2462 = vmatprep.subr.mxu0 0.0
  %2463 = vmatpush1.msra.mxu0 %v2306
  %2464 = vmatprep.subr.mxu0 0.0
  %2465 = vmatpush1.msra.mxu0 %v2307
  %2466 = vmatprep.subr.mxu0 0.0
  %2467 = vmatpush1.msra.mxu0 %v2308
  %2468 = vmatprep.subr.mxu0 0.0
  %2469 = vmatpush1.msra.mxu0 %v2309
  %2470 = vmatprep.subr.mxu0 0.0
  %2471 = vmatpush1.msra.mxu0 %v2310
  %2472 = vmatprep.subr.mxu0 0.0
  %2473 = vmatpush1.msra.mxu0 %v2311
  %2474 = vmatprep.subr.mxu0 0.0
  %2475 = vmatpush1.msra.mxu0 %v2312
  %2476 = vmatprep.mubr.f32.mxu0 %v2337
  %2477 = vmatmul.mubr.f32.gmra.mrb[0].mxu0 %v2335
  %v2478 = vpop.f32.mrb[0].mxu0
  %v2479 = vadd.f32 %v2409, %v2478
  %v2480 = vpop.f32.mrb[0].mxu0
  %2481 = vdwg.mxu0
  %v2482 = vmax.f32 %v2479, 0.0
  %v2483 = vmin.f32 %v2479, 0.0
  %v2484 = vmul.f32 %v2483, 1.442695
  %v2485 = vpow.pop %v2484
  %v2486 = vadd.f32 %v2482, %v2485
  %v2487 = vsub.f32 %v2486, 1.0
  %v2488 = vld [vmem:[%s8] sm:$0xff]
  %v2489 = vld [vmem:[%s8 + $0x8] sm:$0xff]
  %v2490 = vld [vmem:[%s8 + $0x10] sm:$0xff]
  %v2491 = vld [vmem:[%s8 + $0x18] sm:$0xff]
  %v2492 = vld [vmem:[%s8 + $0x20] sm:$0xff]
  %v2493 = vld [vmem:[%s8 + $0x28] sm:$0xff]
  %v2494 = vld [vmem:[%s8 + $0x30] sm:$0xff]
  %v2495 = vld [vmem:[%s8 + $0x38] sm:$0xff]
  %v2496 = vld [vmem:[%s9] sm:$0x1]
  %v2498 = vlaneseq
  %v2499 = vshrl.u32 %v2498, 7
  %v2500 = vsub.s32 0, %v2499
  %v2501 = vrot.slane %v2496, %v2500
  %vm2503 = vcmask 523264
  %v2505 = vsel %vm2503, %v2487, 0
  %2507 = vmatprep.subr.mxu0 0.0
  %2508 = vmatpush1.msra.mxu0 %v2488
  %2509 = vmatprep.subr.mxu0 0.0
  %2510 = vmatpush1.msra.mxu0 %v2489
  %2511 = vmatprep.subr.mxu0 0.0
  %2512 = vmatpush1.msra.mxu0 %v2490
  %2513 = vmatprep.subr.mxu0 0.0
  %2514 = vmatpush1.msra.mxu0 %v2491
  %2515 = vmatprep.subr.mxu0 0.0
  %2516 = vmatpush1.msra.mxu0 %v2492
  %2517 = vmatprep.subr.mxu0 0.0
  %2518 = vmatpush1.msra.mxu0 %v2493
  %2519 = vmatprep.subr.mxu0 0.0
  %2520 = vmatpush1.msra.mxu0 %v2494
  %2521 = vmatprep.subr.mxu0 0.0
  %2522 = vmatpush1.msra.mxu0 %v2495
  %2523 = vmatprep.subr.mxu0 0.0
  %2524 = vmatpush1.msra.mxu0 0.0
  %2525 = vmatprep.subr.mxu0 0.0
  %2526 = vmatpush1.msra.mxu0 0.0
  %2527 = vmatprep.subr.mxu0 0.0
  %2528 = vmatpush1.msra.mxu0 0.0
  %2529 = vmatprep.subr.mxu0 0.0
  %2530 = vmatpush1.msra.mxu0 0.0
  %2531 = vmatprep.subr.mxu0 0.0
  %2532 = vmatpush1.msra.mxu0 0.0
  %2533 = vmatprep.subr.mxu0 0.0
  %2534 = vmatpush1.msra.mxu0 0.0
  %2535 = vmatprep.subr.mxu0 0.0
  %2536 = vmatpush1.msra.mxu0 0.0
  %2537 = vmatprep.subr.mxu0 0.0
  %2538 = vmatpush1.msra.mxu0 0.0
  %2539 = vmatprep.subr.mxu0 0.0
  %2540 = vmatpush1.msra.mxu0 0.0
  %2541 = vmatprep.subr.mxu0 0.0
  %2542 = vmatpush1.msra.mxu0 0.0
  %2543 = vmatprep.subr.mxu0 0.0
  %2544 = vmatpush1.msra.mxu0 0.0
  %2545 = vmatprep.subr.mxu0 0.0
  %2546 = vmatpush1.msra.mxu0 0.0
  %2547 = vmatprep.subr.mxu0 0.0
  %2548 = vmatpush1.msra.mxu0 0.0
  %2549 = vmatprep.subr.mxu0 0.0
  %2550 = vmatpush1.msra.mxu0 0.0
  %2551 = vmatprep.subr.mxu0 0.0
  %2552 = vmatpush1.msra.mxu0 0.0
  %2553 = vmatprep.subr.mxu0 0.0
  %2554 = vmatpush1.msra.mxu0 0.0
  %2555 = vmatprep.subr.mxu0 0.0
  %2556 = vmatpush1.msra.mxu0 0.0
  %2557 = vmatprep.subr.mxu0 0.0
  %2558 = vmatpush1.msra.mxu0 0.0
  %2559 = vmatprep.subr.mxu0 0.0
  %2560 = vmatpush1.msra.mxu0 0.0
  %2561 = vmatprep.subr.mxu0 0.0
  %2562 = vmatpush1.msra.mxu0 0.0
  %2563 = vmatprep.subr.mxu0 0.0
  %2564 = vmatpush1.msra.mxu0 0.0
  %2565 = vmatprep.subr.mxu0 0.0
  %2566 = vmatpush1.msra.mxu0 0.0
  %2567 = vmatprep.subr.mxu0 0.0
  %2568 = vmatpush1.msra.mxu0 0.0
  %2569 = vmatprep.subr.mxu0 0.0
  %2570 = vmatpush1.msra.mxu0 0.0
  %2571 = vmatprep.mubr.f32.mxu0 0.0
  %2572 = vmatmul.mubr.f32.gmra.mrb[0].mxu0 %v2505
  %v2573 = vpop.f32.mrb[0].mxu0
  %v2574 = vadd.f32 %v2501, %v2573
  %v2575 = vpop.f32.mrb[0].mxu0
  %2576 = vdwg.mxu0
  %v2577 = vmax.f32 %v2574, 0.0
  %v2578 = vmin.f32 %v2574, 0.0
  %v2579 = vmul.f32 %v2578, 1.442695
  %v2580 = vpow.pop %v2579
  %v2581 = vadd.f32 %v2577, %v2580
  %v2582 = vsub.f32 %v2581, 1.0
  %v2583 = vld [vmem:[%s10] sm:$0xff]
  %v2584 = vld [vmem:[%s10 + $0x8] sm:$0x3]
  %v2585 = vlaneseq
  %v2586 = vshrl.u32 %v2585, 7
  %v2587 = vsub.s32 0, %v2586
  %v2588 = vrot.slane %v2583, %v2587
  %vm2589 = vcmp.ge.f32.partialorder %v2582, %v2588
  %v2590 = vlaneseq
  %v2591 = vshrl.u32 %v2590, 7
  %v2592 = vsub.s32 1, %v2591
  %v2593 = vrot.slane %v2583, %v2592
  %vm2594 = vcmp.lt.f32.partialorder %v2582, %v2593
  %vm2595 = vmand %vm2589, %vm2594
  %v2596 = vsel %vm2595, 1, 0
  %v2597 = vcvt.s32.f32 %v2596
  %vm2598 = vcmp.ge.f32.partialorder %v2582, %v2593
  %v2599 = vlaneseq
  %v2600 = vshrl.u32 %v2599, 7
  %v2601 = vsub.s32 2, %v2600
  %v2602 = vrot.slane %v2583, %v2601
  %vm2603 = vcmp.lt.f32.partialorder %v2582, %v2602
  %vm2604 = vmand %vm2598, %vm2603
  %v2605 = vsel %vm2604, 1, 0
  %v2606 = vcvt.s32.f32 %v2605
  %vm2607 = vcmp.ge.f32.partialorder %v2582, %v2602
  %v2608 = vlaneseq
  %v2609 = vshrl.u32 %v2608, 7
  %v2610 = vsub.s32 3, %v2609
  %v2611 = vrot.slane %v2583, %v2610
  %vm2612 = vcmp.lt.f32.partialorder %v2582, %v2611
  %vm2613 = vmand %vm2607, %vm2612
  %v2614 = vsel %vm2613, 1, 0
  %v2615 = vcvt.s32.f32 %v2614
  %vm2616 = vcmp.ge.f32.partialorder %v2582, %v2611
  %v2617 = vlaneseq
  %v2618 = vshrl.u32 %v2617, 7
  %v2619 = vsub.s32 4, %v2618
  %v2620 = vrot.slane %v2583, %v2619
  %vm2621 = vcmp.lt.f32.partialorder %v2582, %v2620
  %vm2622 = vmand %vm2616, %vm2621
  %v2623 = vsel %vm2622, 1, 0
  %v2624 = vcvt.s32.f32 %v2623
  %vm2625 = vcmp.ge.f32.partialorder %v2582, %v2620
  %v2626 = vlaneseq
  %v2627 = vshrl.u32 %v2626, 7
  %v2628 = vsub.s32 5, %v2627
  %v2629 = vrot.slane %v2583, %v2628
  %vm2630 = vcmp.lt.f32.partialorder %v2582, %v2629
  %vm2631 = vmand %vm2625, %vm2630
  %v2632 = vsel %vm2631, 1, 0
  %v2633 = vcvt.s32.f32 %v2632
  %vm2634 = vcmp.ge.f32.partialorder %v2582, %v2629
  %v2635 = vlaneseq
  %v2636 = vshrl.u32 %v2635, 7
  %v2637 = vsub.s32 6, %v2636
  %v2638 = vrot.slane %v2583, %v2637
  %vm2639 = vcmp.lt.f32.partialorder %v2582, %v2638
  %vm2640 = vmand %vm2634, %vm2639
  %v2641 = vsel %vm2640, 1, 0
  %v2642 = vcvt.s32.f32 %v2641
  %vm2643 = vcmp.ge.f32.partialorder %v2582, %v2638
  %v2644 = vlaneseq
  %v2645 = vshrl.u32 %v2644, 7
  %v2646 = vsub.s32 7, %v2645
  %v2647 = vrot.slane %v2583, %v2646
  %vm2648 = vcmp.lt.f32.partialorder %v2582, %v2647
  %vm2649 = vmand %vm2643, %vm2648
  %v2650 = vsel %vm2649, 1, 0
  %v2651 = vcvt.s32.f32 %v2650
  %vm2652 = vcmp.ge.f32.partialorder %v2582, %v2647
  %v2653 = vlaneseq
  %v2654 = vshrl.u32 %v2653, 7
  %v2655 = vsub.s32 0, %v2654
  %v2656 = vrot.slane %v2584, %v2655
  %vm2657 = vcmp.lt.f32.partialorder %v2582, %v2656
  %vm2658 = vmand %vm2652, %vm2657
  %v2659 = vsel %vm2658, 1, 0
  %v2660 = vcvt.s32.f32 %v2659
  %vm2661 = vcmp.ge.f32.partialorder %v2582, %v2656
  %v2662 = vlaneseq
  %v2663 = vshrl.u32 %v2662, 7
  %v2664 = vsub.s32 1, %v2663
  %v2665 = vrot.slane %v2584, %v2664
  %vm2666 = vcmp.lt.f32.partialorder %v2582, %v2665
  %vm2667 = vmand %vm2661, %vm2666
  %v2668 = vsel %vm2667, 1, 0
  %v2669 = vcvt.s32.f32 %v2668
  %v2670 = vsub.f32 %v2582, %v2588
  %v2672 = vrot.slane %v2583, 7
  %v2674 = vsub.f32 %v2583, %v2672
  %v2675 = vlaneseq
  %v2676 = vshrl.u32 %v2675, 7
  %v2677 = vsub.s32 1, %v2676
  %v2678 = vrot.slane %v2674, %v2677
  %v2679 = vrcp.pop %v2678
  %v2680 = vmul.f32 %v2670, %v2679
  %v2681 = vsub.f32 %v2602, %v2582
  %v2682 = vlaneseq
  %v2683 = vshrl.u32 %v2682, 7
  %v2684 = vsub.s32 2, %v2683
  %v2685 = vrot.slane %v2674, %v2684
  %v2686 = vrcp.pop %v2685
  %v2687 = vmul.f32 %v2681, %v2686
  %v2688 = vmul.f32 %v2680, %v2597
  %v2689 = vmul.f32 %v2687, %v2606
  %v2690 = vadd.f32 %v2688, %v2689
  %v2691 = vsub.f32 %v2582, %v2593
  %v2692 = vmul.f32 %v2691, %v2686
  %v2693 = vsub.f32 %v2611, %v2582
  %v2694 = vlaneseq
  %v2695 = vshrl.u32 %v2694, 7
  %v2696 = vsub.s32 3, %v2695
  %v2697 = vrot.slane %v2674, %v2696
  %v2698 = vrcp.pop %v2697
  %v2699 = vmul.f32 %v2693, %v2698
  %v2700 = vmul.f32 %v2692, %v2606
  %v2701 = vmul.f32 %v2699, %v2615
  %v2702 = vadd.f32 %v2700, %v2701
  %v2703 = vsub.f32 %v2582, %v2602
  %v2704 = vmul.f32 %v2703, %v2698
  %v2705 = vsub.f32 %v2620, %v2582
  %v2706 = vlaneseq
  %v2707 = vshrl.u32 %v2706, 7
  %v2708 = vsub.s32 4, %v2707
  %v2709 = vrot.slane %v2674, %v2708
  %v2710 = vrcp.pop %v2709
  %v2711 = vmul.f32 %v2705, %v2710
  %v2712 = vmul.f32 %v2704, %v2615
  %v2713 = vmul.f32 %v2711, %v2624
  %v2714 = vadd.f32 %v2712, %v2713
  %v2715 = vsub.f32 %v2582, %v2611
  %v2716 = vmul.f32 %v2715, %v2710
  %v2717 = vsub.f32 %v2629, %v2582
  %v2718 = vlaneseq
  %v2719 = vshrl.u32 %v2718, 7
  %v2720 = vsub.s32 5, %v2719
  %v2721 = vrot.slane %v2674, %v2720
  %v2722 = vrcp.pop %v2721
  %v2723 = vmul.f32 %v2717, %v2722
  %v2724 = vmul.f32 %v2716, %v2624
  %v2725 = vmul.f32 %v2723, %v2633
  %v2726 = vadd.f32 %v2724, %v2725
  %v2727 = vsub.f32 %v2582, %v2620
  %v2728 = vmul.f32 %v2727, %v2722
  %v2729 = vsub.f32 %v2638, %v2582
  %v2730 = vlaneseq
  %v2731 = vshrl.u32 %v2730, 7
  %v2732 = vsub.s32 6, %v2731
  %v2733 = vrot.slane %v2674, %v2732
  %v2734 = vrcp.pop %v2733
  %v2735 = vmul.f32 %v2729, %v2734
  %v2736 = vmul.f32 %v2728, %v2633
  %v2737 = vmul.f32 %v2735, %v2642
  %v2738 = vadd.f32 %v2736, %v2737
  %v2739 = vsub.f32 %v2582, %v2629
  %v2740 = vmul.f32 %v2739, %v2734
  %v2741 = vsub.f32 %v2647, %v2582
  %v2742 = vlaneseq
  %v2743 = vshrl.u32 %v2742, 7
  %v2744 = vsub.s32 7, %v2743
  %v2745 = vrot.slane %v2674, %v2744
  %v2746 = vrcp.pop %v2745
  %v2747 = vmul.f32 %v2741, %v2746
  %v2748 = vmul.f32 %v2740, %v2642
  %v2749 = vmul.f32 %v2747, %v2651
  %v2750 = vadd.f32 %v2748, %v2749
  %v2751 = vsub.f32 %v2582, %v2638
  %v2752 = vmul.f32 %v2751, %v2746
  %v2753 = vsub.f32 %v2656, %v2582
  %v2754 = vsub.f32 %v2584, %v2672
  %v2755 = vlaneseq
  %v2756 = vshrl.u32 %v2755, 7
  %v2757 = vsub.s32 0, %v2756
  %v2758 = vrot.slane %v2754, %v2757
  %v2759 = vrcp.pop %v2758
  %v2760 = vmul.f32 %v2753, %v2759
  %v2761 = vmul.f32 %v2752, %v2651
  %v2762 = vmul.f32 %v2760, %v2660
  %v2763 = vadd.f32 %v2761, %v2762
  %v2764 = vsub.f32 %v2582, %v2647
  %v2765 = vmul.f32 %v2764, %v2759
  %v2766 = vsub.f32 %v2665, %v2582
  %v2768 = vrot.slane %v2584, 7
  %v2770 = vsub.f32 %v2584, %v2768
  %v2771 = vlaneseq
  %v2772 = vshrl.u32 %v2771, 7
  %v2773 = vsub.s32 1, %v2772
  %v2774 = vrot.slane %v2770, %v2773
  %v2775 = vrcp.pop %v2774
  %v2776 = vmul.f32 %v2766, %v2775
  %v2777 = vmul.f32 %v2765, %v2660
  %v2778 = vmul.f32 %v2776, %v2669
  %v2779 = vadd.f32 %v2777, %v2778
  %v2780 = vrot.slane %v2583, 6
  %v2782 = vsub.f32 %v2583, %v2780
  %v2783 = vlaneseq
  %v2784 = vshrl.u32 %v2783, 7
  %v2785 = vsub.s32 2, %v2784
  %v2786 = vrot.slane %v2782, %v2785
  %v2787 = vrcp.pop %v2786
  %v2788 = vmul.f32 %v2670, %v2787
  %v2789 = vlaneseq
  %v2790 = vshrl.u32 %v2789, 7
  %v2791 = vsub.s32 3, %v2790
  %v2792 = vrot.slane %v2782, %v2791
  %v2793 = vrcp.pop %v2792
  %v2794 = vmul.f32 %v2693, %v2793
  %v2795 = vmul.f32 %v2788, %v2690
  %v2796 = vmul.f32 %v2794, %v2702
  %v2797 = vadd.f32 %v2795, %v2796
  %v2798 = vmul.f32 %v2691, %v2793
  %v2799 = vlaneseq
  %v2800 = vshrl.u32 %v2799, 7
  %v2801 = vsub.s32 4, %v2800
  %v2802 = vrot.slane %v2782, %v2801
  %v2803 = vrcp.pop %v2802
  %v2804 = vmul.f32 %v2705, %v2803
  %v2805 = vmul.f32 %v2798, %v2702
  %v2806 = vmul.f32 %v2804, %v2714
  %v2807 = vadd.f32 %v2805, %v2806
  %v2808 = vmul.f32 %v2703, %v2803
  %v2809 = vlaneseq
  %v2810 = vshrl.u32 %v2809, 7
  %v2811 = vsub.s32 5, %v2810
  %v2812 = vrot.slane %v2782, %v2811
  %v2813 = vrcp.pop %v2812
  %v2814 = vmul.f32 %v2717, %v2813
  %v2815 = vmul.f32 %v2808, %v2714
  %v2816 = vmul.f32 %v2814, %v2726
  %v2817 = vadd.f32 %v2815, %v2816
  %v2818 = vmul.f32 %v2715, %v2813
  %v2819 = vlaneseq
  %v2820 = vshrl.u32 %v2819, 7
  %v2821 = vsub.s32 6, %v2820
  %v2822 = vrot.slane %v2782, %v2821
  %v2823 = vrcp.pop %v2822
  %v2824 = vmul.f32 %v2729, %v2823
  %v2825 = vmul.f32 %v2818, %v2726
  %v2826 = vmul.f32 %v2824, %v2738
  %v2827 = vadd.f32 %v2825, %v2826
  %v2828 = vmul.f32 %v2727, %v2823
  %v2829 = vlaneseq
  %v2830 = vshrl.u32 %v2829, 7
  %v2831 = vsub.s32 7, %v2830
  %v2832 = vrot.slane %v2782, %v2831
  %v2833 = vrcp.pop %v2832
  %v2834 = vmul.f32 %v2741, %v2833
  %v2835 = vmul.f32 %v2828, %v2738
  %v2836 = vmul.f32 %v2834, %v2750
  %v2837 = vadd.f32 %v2835, %v2836
  %v2838 = vmul.f32 %v2739, %v2833
  %v2839 = vsub.f32 %v2584, %v2780
  %v2840 = vlaneseq
  %v2841 = vshrl.u32 %v2840, 7
  %v2842 = vsub.s32 0, %v2841
  %v2843 = vrot.slane %v2839, %v2842
  %v2844 = vrcp.pop %v2843
  %v2845 = vmul.f32 %v2753, %v2844
  %v2846 = vmul.f32 %v2838, %v2750
  %v2847 = vmul.f32 %v2845, %v2763
  %v2848 = vadd.f32 %v2846, %v2847
  %v2849 = vmul.f32 %v2751, %v2844
  %v2850 = vlaneseq
  %v2851 = vshrl.u32 %v2850, 7
  %v2852 = vsub.s32 1, %v2851
  %v2853 = vrot.slane %v2839, %v2852
  %v2854 = vrcp.pop %v2853
  %v2855 = vmul.f32 %v2766, %v2854
  %v2856 = vmul.f32 %v2849, %v2763
  %v2857 = vmul.f32 %v2855, %v2779
  %v2858 = vadd.f32 %v2856, %v2857
  %v2859 = vrot.slane %v2583, 5
  %v2861 = vsub.f32 %v2583, %v2859
  %v2862 = vlaneseq
  %v2863 = vshrl.u32 %v2862, 7
  %v2864 = vsub.s32 3, %v2863
  %v2865 = vrot.slane %v2861, %v2864
  %v2866 = vrcp.pop %v2865
  %v2867 = vmul.f32 %v2670, %v2866
  %v2868 = vlaneseq
  %v2869 = vshrl.u32 %v2868, 7
  %v2870 = vsub.s32 4, %v2869
  %v2871 = vrot.slane %v2861, %v2870
  %v2872 = vrcp.pop %v2871
  %v2873 = vmul.f32 %v2705, %v2872
  %v2874 = vmul.f32 %v2867, %v2797
  %v2875 = vmul.f32 %v2873, %v2807
  %v2876 = vadd.f32 %v2874, %v2875
  %v2877 = vmul.f32 %v2691, %v2872
  %v2878 = vlaneseq
  %v2879 = vshrl.u32 %v2878, 7
  %v2880 = vsub.s32 5, %v2879
  %v2881 = vrot.slane %v2861, %v2880
  %v2882 = vrcp.pop %v2881
  %v2883 = vmul.f32 %v2717, %v2882
  %v2884 = vmul.f32 %v2877, %v2807
  %v2885 = vmul.f32 %v2883, %v2817
  %v2886 = vadd.f32 %v2884, %v2885
  %v2887 = vmul.f32 %v2703, %v2882
  %v2888 = vlaneseq
  %v2889 = vshrl.u32 %v2888, 7
  %v2890 = vsub.s32 6, %v2889
  %v2891 = vrot.slane %v2861, %v2890
  %v2892 = vrcp.pop %v2891
  %v2893 = vmul.f32 %v2729, %v2892
  %v2894 = vmul.f32 %v2887, %v2817
  %v2895 = vmul.f32 %v2893, %v2827
  %v2896 = vadd.f32 %v2894, %v2895
  %v2897 = vmul.f32 %v2715, %v2892
  %v2898 = vlaneseq
  %v2899 = vshrl.u32 %v2898, 7
  %v2900 = vsub.s32 7, %v2899
  %v2901 = vrot.slane %v2861, %v2900
  %v2902 = vrcp.pop %v2901
  %v2903 = vmul.f32 %v2741, %v2902
  %v2904 = vmul.f32 %v2897, %v2827
  %v2905 = vmul.f32 %v2903, %v2837
  %v2906 = vadd.f32 %v2904, %v2905
  %v2907 = vmul.f32 %v2727, %v2902
  %v2908 = vsub.f32 %v2584, %v2859
  %v2909 = vlaneseq
  %v2910 = vshrl.u32 %v2909, 7
  %v2911 = vsub.s32 0, %v2910
  %v2912 = vrot.slane %v2908, %v2911
  %v2913 = vrcp.pop %v2912
  %v2914 = vmul.f32 %v2753, %v2913
  %v2915 = vmul.f32 %v2907, %v2837
  %v2916 = vmul.f32 %v2914, %v2848
  %v2917 = vadd.f32 %v2915, %v2916
  %v2918 = vmul.f32 %v2739, %v2913
  %v2919 = vlaneseq
  %v2920 = vshrl.u32 %v2919, 7
  %v2921 = vsub.s32 1, %v2920
  %v2922 = vrot.slane %v2908, %v2921
  %v2923 = vrcp.pop %v2922
  %v2924 = vmul.f32 %v2766, %v2923
  %v2925 = vmul.f32 %v2918, %v2848
  %v2926 = vmul.f32 %v2924, %v2858
  %v2927 = vadd.f32 %v2925, %v2926
  %v2928 = vsub.f32 0.0, %v2582
  %v2929 = vmul.f32 %v2928, 1.442695
  %v2930 = vpow.pop %v2929
  %v2931 = vadd.f32 %v2930, 1.0
  %v2932 = vrcp.pop %v2931
  %v2933 = vmul.f32 1.0, %v2932
  %v2934 = vmul.f32 %v2582, %v2933
  %v2935 = vld [vmem:[%s11] sm:$0x1]
  %v2937 = vlaneseq
  %v2938 = vshrl.u32 %v2937, 7
  %v2939 = vsub.s32 0, %v2938
  %v2940 = vrot.slane %v2935, %v2939
  %v2942 = vmul.f32 %v2934, %v2940
  %v2943 = vld [vmem:[%s12] sm:$0x1]
  %v2944 = vlaneseq
  %v2945 = vshrl.u32 %v2944, 7
  %v2946 = vsub.s32 0, %v2945
  %v2947 = vrot.slane %v2943, %v2946
  %v2948 = vmul.f32 %v2876, %v2947
  %v2949 = vadd.f32 %v2942, %v2948
  %v2950 = vld [vmem:[%s12 + $0x1] sm:$0x1]
  %v2951 = vlaneseq
  %v2952 = vshrl.u32 %v2951, 7
  %v2953 = vsub.s32 0, %v2952
  %v2954 = vrot.slane %v2950, %v2953
  %v2955 = vmul.f32 %v2886, %v2954
  %v2956 = vadd.f32 %v2949, %v2955
  %v2957 = vld [vmem:[%s12 + $0x2] sm:$0x1]
  %v2958 = vlaneseq
  %v2959 = vshrl.u32 %v2958, 7
  %v2960 = vsub.s32 0, %v2959
  %v2961 = vrot.slane %v2957, %v2960
  %v2962 = vmul.f32 %v2896, %v2961
  %v2963 = vadd.f32 %v2956, %v2962
  %v2964 = vld [vmem:[%s12 + $0x3] sm:$0x1]
  %v2965 = vlaneseq
  %v2966 = vshrl.u32 %v2965, 7
  %v2967 = vsub.s32 0, %v2966
  %v2968 = vrot.slane %v2964, %v2967
  %v2969 = vmul.f32 %v2906, %v2968
  %v2970 = vadd.f32 %v2963, %v2969
  %v2971 = vld [vmem:[%s12 + $0x4] sm:$0x1]
  %v2972 = vlaneseq
  %v2973 = vshrl.u32 %v2972, 7
  %v2974 = vsub.s32 0, %v2973
  %v2975 = vrot.slane %v2971, %v2974
  %v2976 = vmul.f32 %v2917, %v2975
  %v2977 = vadd.f32 %v2970, %v2976
  %v2978 = vld [vmem:[%s12 + $0x5] sm:$0x1]
  %v2979 = vlaneseq
  %v2980 = vshrl.u32 %v2979, 7
  %v2981 = vsub.s32 0, %v2980
  %v2982 = vrot.slane %v2978, %v2981
  %v2983 = vmul.f32 %v2927, %v2982
  %v2984 = vadd.f32 %v2977, %v2983
  %vm2985 = vcmask 123904
  %v2986 = vsel %vm2985, %v2984, 0.0
  %2987 = vadd.xlane.f32.xlu0 %v2986
  %v2988 = vpop.xlane.xlu0 %2987
  %vm2989 = vcmask 1024
  %2990 = vst.msk [vmem:[%s13] sm:$0x3] %vm2989, %v2988
  // Predicated region
  $region54: #{kanreg_forward.1} parent=0 // pred_check
    _
  $region55: #{kanreg_forward.1} parent=0 // pred_check_branch
    %2992 = sbr.rel (0) target = $region57
  $region56: #{kanreg_forward.1} parent=0 // pred_region
    _
  $region57: #{kanreg_forward.1} parent=0 // pred_fallthru
    _
  // Predicated region
  $region58: #{kanreg_forward.1} parent=0 // pred_check
    _
  $region59: #{kanreg_forward.1} parent=0 // pred_check_branch
    %2994 = sbr.rel (0) target = $region61
  $region60: #{kanreg_forward.1} parent=0 // pred_region
    _
  $region61: #{kanreg_forward.1} parent=0 // pred_fallthru
    _

</llo_original>
